<compile_context>
chip_gen: v7x
topology: tpu7x:2x2x1
jax: 0.10.0
libtpu: 0.0.40
codegen_flags: <defaults>
</compile_context>

<pallas_src>
import functools

import jax
import jax.numpy as jnp
from jax.experimental import pallas as pl
from jax.experimental.pallas import tpu as pltpu


# ----------------------------------------------------------------------------
# Fused kernel: all LSTM layers (both directions) + final FC, one invocation.
# ----------------------------------------------------------------------------
def _fused_lstm_kernel(*refs, n_layers, T, B, H):
    """Ref order:
      inputs : x (T,B,E),
               [w_ih_f (D,4H), w_hh_f (H,4H), b_f (1,4H),
                w_ih_b (D,4H), w_hh_b (H,4H), b_b (1,4H)] * n_layers,
               fc_w (2H,out), fc_b (1,out)
      outputs: logits (B,out)
      scratch: xproj_f (T,B,4H), xproj_b (T,B,4H), seq_f (T,B,H), seq_b (T,B,H)
    """
    n_in = 1 + 6 * n_layers + 2
    x_ref = refs[0]
    w_refs = refs[1:1 + 6 * n_layers]
    fc_w_ref = refs[n_in - 2]
    fc_b_ref = refs[n_in - 1]
    logits_ref = refs[n_in]
    xproj_f_sc, xproj_b_sc, seq_f_sc, seq_b_sc = refs[n_in + 1:]

    # Lane mask selecting the g-gate lanes of the (B, 4H) gate vreg so the
    # transcendentals run on full vregs (PyTorch gate order i,f,g,o).
    lane = jax.lax.broadcasted_iota(jnp.int32, (B, 4 * H), 1)
    g_mask = jnp.logical_and(lane >= 2 * H, lane < 3 * H)

    def run_direction(xproj_ref, whh, seq_ref, reverse):
        def body(s, carry):
            h, c = carry
            t = (T - 1 - s) if reverse else s
            gates = xproj_ref[t] + jnp.dot(
                h, whh, preferred_element_type=jnp.float32)      # (B, 4H)
            act = jnp.where(g_mask, jnp.tanh(gates), jax.nn.sigmoid(gates))
            i_g = act[:, 0 * H:1 * H]
            f_g = act[:, 1 * H:2 * H]
            g_g = act[:, 2 * H:3 * H]
            o_g = act[:, 3 * H:4 * H]
            c_new = f_g * c + i_g * g_g
            h_new = o_g * jnp.tanh(c_new)
            seq_ref[t] = h_new
            return h_new, c_new

        init = (jnp.zeros((B, H), jnp.float32),
                jnp.zeros((B, H), jnp.float32))
        # Short fixed trip count -> fully unrolled, visible to the scheduler.
        return jax.lax.fori_loop(0, T, body, init, unroll=(T <= 32))

    h_f = h_b = None
    for layer in range(n_layers):
        wih_f, whh_f, b_f, wih_b, whh_b, b_b = w_refs[6 * layer:6 * layer + 6]

        if layer == 0:
            x_val = x_ref[...]                                   # (T, B, E)
        else:
            # Previous layer's outputs (already in VMEM scratch).
            x_val = jnp.concatenate([seq_f_sc[...], seq_b_sc[...]], axis=-1)
        D = x_val.shape[-1]
        x_flat = x_val.reshape(T * B, D)

        # Hoisted input projections: one big MXU matmul per direction,
        # bias folded in. Only h @ W_hh stays inside the serial loop.
        xproj_f_sc[...] = (
            jnp.dot(x_flat, wih_f[...], preferred_element_type=jnp.float32)
            + b_f[...]).reshape(T, B, 4 * H)
        xproj_b_sc[...] = (
            jnp.dot(x_flat, wih_b[...], preferred_element_type=jnp.float32)
            + b_b[...]).reshape(T, B, 4 * H)

        # TODO(synk): on v7x the two independent directions could be split
        # across the 2 TensorCores via core_map; kept on one core here.
        h_f, _ = run_direction(xproj_f_sc, whh_f[...], seq_f_sc, reverse=False)
        h_b, _ = run_direction(xproj_b_sc, whh_b[...], seq_b_sc, reverse=True)

    # Final Linear folded into the same kernel (hidden already in registers).
    hidden = jnp.concatenate([h_f, h_b], axis=-1)                # (B, 2H)
    logits_ref[...] = (jnp.dot(hidden, fc_w_ref[...],
                               preferred_element_type=jnp.float32)
                       + fc_b_ref[...])


# ----------------------------------------------------------------------------
# Full forward.
# ----------------------------------------------------------------------------
def lstm_sentiment_forward(text, params, n_layers, hidden_dim):
    # Embedding lookup (gather) is glue, done in plain JAX/XLA.
    emb = params["embedding"][text]                 # (B, T, E)
    # Dropout -> identity (inference).
    x = jnp.transpose(emb, (1, 0, 2))               # (T, B, E), time-major
    T, B, E = x.shape

    B_pad = max(8, -(-B // 8) * 8)                  # sublane-align the batch
    if B_pad != B:
        x = jnp.pad(x, ((0, 0), (0, B_pad - B), (0, 0)))

    H = hidden_dim
    out_dim = params["fc_b"].shape[-1]

    inputs = [x]
    for layer in range(n_layers):
        p = params["lstm"][layer]
        inputs += [p["w_ih_f"], p["w_hh_f"], p["b_f"],
                   p["w_ih_b"], p["w_hh_b"], p["b_b"]]
    inputs += [params["fc_w"], params["fc_b"]]

    kernel = functools.partial(_fused_lstm_kernel,
                               n_layers=n_layers, T=T, B=B_pad, H=H)
    logits_pad = pl.pallas_call(
        kernel,
        out_shape=jax.ShapeDtypeStruct((B_pad, out_dim), jnp.float32),
        scratch_shapes=[
            pltpu.VMEM((T, B_pad, 4 * H), jnp.float32),   # xproj fwd
            pltpu.VMEM((T, B_pad, 4 * H), jnp.float32),   # xproj bwd
            pltpu.VMEM((T, B_pad, H), jnp.float32),       # seq fwd
            pltpu.VMEM((T, B_pad, H), jnp.float32),       # seq bwd
        ],
    )(*inputs)
    return logits_pad[:B]


# ----------------------------------------------------------------------------
# Pure-JAX reference (for correctness check).
# ----------------------------------------------------------------------------
def ref_forward(text, params, n_layers, hidden_dim):
    emb = params["embedding"][text]
    x = jnp.transpose(emb, (1, 0, 2))

    def run_dir(xseq, w_ih, w_hh, b):
        Bv = xseq.shape[1]
        h = jnp.zeros((Bv, hidden_dim), jnp.float32)
        c = jnp.zeros((Bv, hidden_dim), jnp.float32)
        outs = []
        for t in range(xseq.shape[0]):
            gates = xseq[t] @ w_ih + h @ w_hh + b
            i_g, f_g, g_g, o_g = jnp.split(gates, 4, axis=-1)
            i_g = jax.nn.sigmoid(i_g)
            f_g = jax.nn.sigmoid(f_g)
            g_g = jnp.tanh(g_g)
            o_g = jax.nn.sigmoid(o_g)
            c = f_g * c + i_g * g_g
            h = o_g * jnp.tanh(c)
            outs.append(h)
        return jnp.stack(outs), h

    h_f = h_b = None
    for layer in range(n_layers):
        p = params["lstm"][layer]
        out_f, h_f = run_dir(x, p["w_ih_f"], p["w_hh_f"], p["b_f"])
        out_b_rev, h_b = run_dir(x[::-1], p["w_ih_b"], p["w_hh_b"], p["b_b"])
        x = jnp.concatenate([out_f, out_b_rev[::-1]], axis=-1)
    hidden = jnp.concatenate([h_f, h_b], axis=-1)
    return hidden @ params["fc_w"] + params["fc_b"]


# ----------------------------------------------------------------------------
# Deterministic parameter init (matching nn.Module shapes).
# ----------------------------------------------------------------------------
def init_params(key, vocab_size, embedding_dim, hidden_dim, output_dim, n_layers):
    keys = iter(jax.random.split(key, 8 + 8 * n_layers))

    def nxt():
        return next(keys)

    emb = jax.random.normal(nxt(), (vocab_size, embedding_dim), jnp.float32)
    emb = emb.at[0].set(0.0)                      # padding_idx=0

    bound = 1.0 / (hidden_dim ** 0.5)

    def uni(shape):
        return jax.random.uniform(nxt(), shape, jnp.float32, -bound, bound)

    lstm_layers = []
    for layer in range(n_layers):
        in_dim = embedding_dim if layer == 0 else 2 * hidden_dim
        layer_p = {}
        for d in ("f", "b"):
            w_ih = uni((4 * hidden_dim, in_dim))   # PyTorch shape (4H, in)
            w_hh = uni((4 * hidden_dim, hidden_dim))
            b_ih = uni((4 * hidden_dim,))
            b_hh = uni((4 * hidden_dim,))
            layer_p[f"w_ih_{d}"] = w_ih.T                 # (in, 4H)
            layer_p[f"w_hh_{d}"] = w_hh.T                 # (H, 4H)
            layer_p[f"b_{d}"] = (b_ih + b_hh)[None, :]    # (1, 4H)
        lstm_layers.append(layer_p)

    fc_w = uni((output_dim, 2 * hidden_dim))       # PyTorch shape (out, 2H)
    fc_b = uni((output_dim,))
    return {
        "embedding": emb,
        "lstm": lstm_layers,
        "fc_w": fc_w.T,            # (2H, out)
        "fc_b": fc_b[None, :],     # (1, out)
    }


if __name__ == "__main__":
    VOCAB = 50
    EMB = 32
    HIDDEN = 32
    OUT = 2
    N_LAYERS = 2
    B, T = 2, 8

    root = jax.random.PRNGKey(0)
    k_par, k_tok = jax.random.split(root)
    params = init_params(k_par, VOCAB, EMB, HIDDEN, OUT, N_LAYERS)
    text = jax.random.randint(k_tok, (B, T), 0, VOCAB, dtype=jnp.int32)

    fwd = jax.jit(functools.partial(lstm_sentiment_forward,
                                    n_layers=N_LAYERS, hidden_dim=HIDDEN))
    logits = fwd(text, params)
    jax.block_until_ready(logits)

    ref = ref_forward(text, params, N_LAYERS, HIDDEN)
    assert logits.shape == (B, OUT), logits.shape
    assert jnp.allclose(logits, ref, rtol=1e-4, atol=1e-4), (logits, ref)

    print("KERNEL_OK")
</pallas_src>

<mosaic_0001>
module attributes {stable_mosaic.version = 11 : i64} {
  func.func @_fused_lstm_kernel(%arg0: memref<8x8x32xf32, #tpu.memory_space<vmem>>, %arg1: memref<32x128xf32, #tpu.memory_space<vmem>>, %arg2: memref<32x128xf32, #tpu.memory_space<vmem>>, %arg3: memref<1x128xf32, #tpu.memory_space<vmem>>, %arg4: memref<32x128xf32, #tpu.memory_space<vmem>>, %arg5: memref<32x128xf32, #tpu.memory_space<vmem>>, %arg6: memref<1x128xf32, #tpu.memory_space<vmem>>, %arg7: memref<64x128xf32, #tpu.memory_space<vmem>>, %arg8: memref<32x128xf32, #tpu.memory_space<vmem>>, %arg9: memref<1x128xf32, #tpu.memory_space<vmem>>, %arg10: memref<64x128xf32, #tpu.memory_space<vmem>>, %arg11: memref<32x128xf32, #tpu.memory_space<vmem>>, %arg12: memref<1x128xf32, #tpu.memory_space<vmem>>, %arg13: memref<64x2xf32, #tpu.memory_space<vmem>>, %arg14: memref<1x2xf32, #tpu.memory_space<vmem>>, %arg15: memref<8x2xf32, #tpu.memory_space<vmem>>, %arg16: memref<8x8x128xf32, #tpu.memory_space<vmem>>, %arg17: memref<8x8x128xf32, #tpu.memory_space<vmem>>, %arg18: memref<8x8x32xf32, #tpu.memory_space<vmem>>, %arg19: memref<8x8x32xf32, #tpu.memory_space<vmem>>) attributes {dimension_semantics = [], scalar_prefetch = 0 : i64, scratch_operands = 4 : i64, tpu.core_type = #tpu.core_type<tc>} {
    %0 = tpu.iota {dimensions = array<i32: 1>} : vector<8x128xi32>
    %c64_i32 = arith.constant 64 : i32
    %1 = vector.broadcast %c64_i32 : i32 to vector<8x128xi32>
    %2 = arith.cmpi sge, %0, %1 : vector<8x128xi32>
    %c96_i32 = arith.constant 96 : i32
    %3 = vector.broadcast %c96_i32 : i32 to vector<8x128xi32>
    %4 = arith.cmpi slt, %0, %3 : vector<8x128xi32>
    %5 = arith.andi %2, %4 : vector<8x128xi1>
    %c0 = arith.constant 0 : index
    %c0_0 = arith.constant 0 : index
    %c0_1 = arith.constant 0 : index
    %6 = vector.load %arg0[%c0, %c0_0, %c0_1] : memref<8x8x32xf32, #tpu.memory_space<vmem>>, vector<8x8x32xf32>
    %7 = vector.shape_cast %6 : vector<8x8x32xf32> to vector<64x32xf32>
    %c0_2 = arith.constant 0 : index
    %c0_3 = arith.constant 0 : index
    %8 = vector.load %arg1[%c0_2, %c0_3] : memref<32x128xf32, #tpu.memory_space<vmem>>, vector<32x128xf32>
    %cst = arith.constant dense<0.000000e+00> : vector<64x128xf32>
    %9 = tpu.matmul %7, %8, %cst {dimension_numbers = #tpu.dot_dimension_numbers<[1], [0], [0], [1], [0, 0, 1, 1], [], []>} : vector<64x32xf32>, vector<32x128xf32>, vector<64x128xf32> -> vector<64x128xf32>
    %c0_4 = arith.constant 0 : index
    %c0_5 = arith.constant 0 : index
    %10 = vector.load %arg3[%c0_4, %c0_5] : memref<1x128xf32, #tpu.memory_space<vmem>>, vector<1x128xf32>
    %11 = vector.broadcast %10 : vector<1x128xf32> to vector<64x128xf32>
    %12 = arith.addf %9, %11 : vector<64x128xf32>
    %13 = vector.shape_cast %12 : vector<64x128xf32> to vector<8x8x128xf32>
    %c0_6 = arith.constant 0 : index
    %c0_7 = arith.constant 0 : index
    %c0_8 = arith.constant 0 : index
    %14 = vector.load %arg16[%c0_6, %c0_7, %c0_8] : memref<8x8x128xf32, #tpu.memory_space<vmem>>, vector<8x8x128xf32>
    tpu.vector_store %arg16[%c0_6, %c0_7, %c0_8], %13 {strides = array<i32>} : memref<8x8x128xf32, #tpu.memory_space<vmem>>, vector<8x8x128xf32>,
    %c0_9 = arith.constant 0 : index
    %c0_10 = arith.constant 0 : index
    %15 = vector.load %arg4[%c0_9, %c0_10] : memref<32x128xf32, #tpu.memory_space<vmem>>, vector<32x128xf32>
    %cst_11 = arith.constant dense<0.000000e+00> : vector<64x128xf32>
    %16 = tpu.matmul %7, %15, %cst_11 {dimension_numbers = #tpu.dot_dimension_numbers<[1], [0], [0], [1], [0, 0, 1, 1], [], []>} : vector<64x32xf32>, vector<32x128xf32>, vector<64x128xf32> -> vector<64x128xf32>
    %c0_12 = arith.constant 0 : index
    %c0_13 = arith.constant 0 : index
    %17 = vector.load %arg6[%c0_12, %c0_13] : memref<1x128xf32, #tpu.memory_space<vmem>>, vector<1x128xf32>
    %18 = vector.broadcast %17 : vector<1x128xf32> to vector<64x128xf32>
    %19 = arith.addf %16, %18 : vector<64x128xf32>
    %20 = vector.shape_cast %19 : vector<64x128xf32> to vector<8x8x128xf32>
    %c0_14 = arith.constant 0 : index
    %c0_15 = arith.constant 0 : index
    %c0_16 = arith.constant 0 : index
    %21 = vector.load %arg17[%c0_14, %c0_15, %c0_16] : memref<8x8x128xf32, #tpu.memory_space<vmem>>, vector<8x8x128xf32>
    tpu.vector_store %arg17[%c0_14, %c0_15, %c0_16], %20 {strides = array<i32>} : memref<8x8x128xf32, #tpu.memory_space<vmem>>, vector<8x8x128xf32>,
    %c0_17 = arith.constant 0 : index
    %c0_18 = arith.constant 0 : index
    %22 = vector.load %arg2[%c0_17, %c0_18] : memref<32x128xf32, #tpu.memory_space<vmem>>, vector<32x128xf32>
    %cst_19 = arith.constant 0.000000e+00 : f32
    %23 = vector.broadcast %cst_19 : f32 to vector<8x32xf32>
    %cst_20 = arith.constant 0.000000e+00 : f32
    %24 = vector.broadcast %cst_20 : f32 to vector<8x32xf32>
    %c0_i32 = arith.constant 0 : i32
    %25 = arith.index_cast %c0_i32 : i32 to index
    %c0_21 = arith.constant 0 : index
    %c0_22 = arith.constant 0 : index
    %26 = vector.load %arg16[%25, %c0_21, %c0_22] : memref<8x8x128xf32, #tpu.memory_space<vmem>>, vector<1x8x128xf32>
    %27 = vector.shape_cast %26 : vector<1x8x128xf32> to vector<8x128xf32>
    %cst_23 = arith.constant dense<0.000000e+00> : vector<8x128xf32>
    %28 = tpu.matmul %23, %22, %cst_23 {dimension_numbers = #tpu.dot_dimension_numbers<[1], [0], [0], [1], [0, 0, 1, 1], [], []>} : vector<8x32xf32>, vector<32x128xf32>, vector<8x128xf32> -> vector<8x128xf32>
    %29 = arith.addf %27, %28 : vector<8x128xf32>
    %30 = math.tanh %29 : vector<8x128xf32>
    %31 = arith.negf %29 : vector<8x128xf32>
    %32 = math.exp %31 : vector<8x128xf32>
    %cst_24 = arith.constant 1.000000e+00 : f32
    %33 = vector.broadcast %cst_24 : f32 to vector<8x128xf32>
    %34 = arith.addf %33, %32 : vector<8x128xf32>
    %35 = arith.divf %33, %34 : vector<8x128xf32>
    %36 = arith.select %5, %30, %35 : vector<8x128xi1>, vector<8x128xf32>
    %37 = vector.extract_strided_slice %36 {offsets = [0, 0], sizes = [8, 32], strides = [1, 1]} : vector<8x128xf32> to vector<8x32xf32>
    %38 = vector.extract_strided_slice %36 {offsets = [0, 32], sizes = [8, 32], strides = [1, 1]} : vector<8x128xf32> to vector<8x32xf32>
    %39 = vector.extract_strided_slice %36 {offsets = [0, 64], sizes = [8, 32], strides = [1, 1]} : vector<8x128xf32> to vector<8x32xf32>
    %40 = vector.extract_strided_slice %36 {offsets = [0, 96], sizes = [8, 32], strides = [1, 1]} : vector<8x128xf32> to vector<8x32xf32>
    %41 = arith.mulf %38, %24 : vector<8x32xf32>
    %42 = arith.mulf %37, %39 : vector<8x32xf32>
    %43 = arith.addf %41, %42 : vector<8x32xf32>
    %44 = math.tanh %43 : vector<8x32xf32>
    %45 = arith.mulf %40, %44 : vector<8x32xf32>
    %46 = arith.index_cast %c0_i32 : i32 to index
    %c0_25 = arith.constant 0 : index
    %c0_26 = arith.constant 0 : index
    %47 = vector.load %arg18[%46, %c0_25, %c0_26] : memref<8x8x32xf32, #tpu.memory_space<vmem>>, vector<1x8x32xf32>
    %48 = vector.shape_cast %47 : vector<1x8x32xf32> to vector<8x32xf32>
    %49 = vector.shape_cast %45 : vector<8x32xf32> to vector<1x8x32xf32>
    tpu.vector_store %arg18[%46, %c0_25, %c0_26], %49 {strides = array<i32>} : memref<8x8x32xf32, #tpu.memory_space<vmem>>, vector<1x8x32xf32>,
    %c1_i32 = arith.constant 1 : i32
    %50 = arith.index_cast %c1_i32 : i32 to index
    %c0_27 = arith.constant 0 : index
    %c0_28 = arith.constant 0 : index
    %51 = vector.load %arg16[%50, %c0_27, %c0_28] : memref<8x8x128xf32, #tpu.memory_space<vmem>>, vector<1x8x128xf32>
    %52 = vector.shape_cast %51 : vector<1x8x128xf32> to vector<8x128xf32>
    %cst_29 = arith.constant dense<0.000000e+00> : vector<8x128xf32>
    %53 = tpu.matmul %45, %22, %cst_29 {dimension_numbers = #tpu.dot_dimension_numbers<[1], [0], [0], [1], [0, 0, 1, 1], [], []>} : vector<8x32xf32>, vector<32x128xf32>, vector<8x128xf32> -> vector<8x128xf32>
    %54 = arith.addf %52, %53 : vector<8x128xf32>
    %55 = math.tanh %54 : vector<8x128xf32>
    %56 = arith.negf %54 : vector<8x128xf32>
    %57 = math.exp %56 : vector<8x128xf32>
    %cst_30 = arith.constant 1.000000e+00 : f32
    %58 = vector.broadcast %cst_30 : f32 to vector<8x128xf32>
    %59 = arith.addf %58, %57 : vector<8x128xf32>
    %60 = arith.divf %58, %59 : vector<8x128xf32>
    %61 = arith.select %5, %55, %60 : vector<8x128xi1>, vector<8x128xf32>
    %62 = vector.extract_strided_slice %61 {offsets = [0, 0], sizes = [8, 32], strides = [1, 1]} : vector<8x128xf32> to vector<8x32xf32>
    %63 = vector.extract_strided_slice %61 {offsets = [0, 32], sizes = [8, 32], strides = [1, 1]} : vector<8x128xf32> to vector<8x32xf32>
    %64 = vector.extract_strided_slice %61 {offsets = [0, 64], sizes = [8, 32], strides = [1, 1]} : vector<8x128xf32> to vector<8x32xf32>
    %65 = vector.extract_strided_slice %61 {offsets = [0, 96], sizes = [8, 32], strides = [1, 1]} : vector<8x128xf32> to vector<8x32xf32>
    %66 = arith.mulf %63, %43 : vector<8x32xf32>
    %67 = arith.mulf %62, %64 : vector<8x32xf32>
    %68 = arith.addf %66, %67 : vector<8x32xf32>
    %69 = math.tanh %68 : vector<8x32xf32>
    %70 = arith.mulf %65, %69 : vector<8x32xf32>
    %71 = arith.index_cast %c1_i32 : i32 to index
    %c0_31 = arith.constant 0 : index
    %c0_32 = arith.constant 0 : index
    %72 = vector.load %arg18[%71, %c0_31, %c0_32] : memref<8x8x32xf32, #tpu.memory_space<vmem>>, vector<1x8x32xf32>
    %73 = vector.shape_cast %72 : vector<1x8x32xf32> to vector<8x32xf32>
    %74 = vector.shape_cast %70 : vector<8x32xf32> to vector<1x8x32xf32>
    tpu.vector_store %arg18[%71, %c0_31, %c0_32], %74 {strides = array<i32>} : memref<8x8x32xf32, #tpu.memory_space<vmem>>, vector<1x8x32xf32>,
    %c2_i32 = arith.constant 2 : i32
    %75 = arith.index_cast %c2_i32 : i32 to index
    %c0_33 = arith.constant 0 : index
    %c0_34 = arith.constant 0 : index
    %76 = vector.load %arg16[%75, %c0_33, %c0_34] : memref<8x8x128xf32, #tpu.memory_space<vmem>>, vector<1x8x128xf32>
    %77 = vector.shape_cast %76 : vector<1x8x128xf32> to vector<8x128xf32>
    %cst_35 = arith.constant dense<0.000000e+00> : vector<8x128xf32>
    %78 = tpu.matmul %70, %22, %cst_35 {dimension_numbers = #tpu.dot_dimension_numbers<[1], [0], [0], [1], [0, 0, 1, 1], [], []>} : vector<8x32xf32>, vector<32x128xf32>, vector<8x128xf32> -> vector<8x128xf32>
    %79 = arith.addf %77, %78 : vector<8x128xf32>
    %80 = math.tanh %79 : vector<8x128xf32>
    %81 = arith.negf %79 : vector<8x128xf32>
    %82 = math.exp %81 : vector<8x128xf32>
    %cst_36 = arith.constant 1.000000e+00 : f32
    %83 = vector.broadcast %cst_36 : f32 to vector<8x128xf32>
    %84 = arith.addf %83, %82 : vector<8x128xf32>
    %85 = arith.divf %83, %84 : vector<8x128xf32>
    %86 = arith.select %5, %80, %85 : vector<8x128xi1>, vector<8x128xf32>
    %87 = vector.extract_strided_slice %86 {offsets = [0, 0], sizes = [8, 32], strides = [1, 1]} : vector<8x128xf32> to vector<8x32xf32>
    %88 = vector.extract_strided_slice %86 {offsets = [0, 32], sizes = [8, 32], strides = [1, 1]} : vector<8x128xf32> to vector<8x32xf32>
    %89 = vector.extract_strided_slice %86 {offsets = [0, 64], sizes = [8, 32], strides = [1, 1]} : vector<8x128xf32> to vector<8x32xf32>
    %90 = vector.extract_strided_slice %86 {offsets = [0, 96], sizes = [8, 32], strides = [1, 1]} : vector<8x128xf32> to vector<8x32xf32>
    %91 = arith.mulf %88, %68 : vector<8x32xf32>
    %92 = arith.mulf %87, %89 : vector<8x32xf32>
    %93 = arith.addf %91, %92 : vector<8x32xf32>
    %94 = math.tanh %93 : vector<8x32xf32>
    %95 = arith.mulf %90, %94 : vector<8x32xf32>
    %96 = arith.index_cast %c2_i32 : i32 to index
    %c0_37 = arith.constant 0 : index
    %c0_38 = arith.constant 0 : index
    %97 = vector.load %arg18[%96, %c0_37, %c0_38] : memref<8x8x32xf32, #tpu.memory_space<vmem>>, vector<1x8x32xf32>
    %98 = vector.shape_cast %97 : vector<1x8x32xf32> to vector<8x32xf32>
    %99 = vector.shape_cast %95 : vector<8x32xf32> to vector<1x8x32xf32>
    tpu.vector_store %arg18[%96, %c0_37, %c0_38], %99 {strides = array<i32>} : memref<8x8x32xf32, #tpu.memory_space<vmem>>, vector<1x8x32xf32>,
    %c3_i32 = arith.constant 3 : i32
    %100 = arith.index_cast %c3_i32 : i32 to index
    %c0_39 = arith.constant 0 : index
    %c0_40 = arith.constant 0 : index
    %101 = vector.load %arg16[%100, %c0_39, %c0_40] : memref<8x8x128xf32, #tpu.memory_space<vmem>>, vector<1x8x128xf32>
    %102 = vector.shape_cast %101 : vector<1x8x128xf32> to vector<8x128xf32>
    %cst_41 = arith.constant dense<0.000000e+00> : vector<8x128xf32>
    %103 = tpu.matmul %95, %22, %cst_41 {dimension_numbers = #tpu.dot_dimension_numbers<[1], [0], [0], [1], [0, 0, 1, 1], [], []>} : vector<8x32xf32>, vector<32x128xf32>, vector<8x128xf32> -> vector<8x128xf32>
    %104 = arith.addf %102, %103 : vector<8x128xf32>
    %105 = math.tanh %104 : vector<8x128xf32>
    %106 = arith.negf %104 : vector<8x128xf32>
    %107 = math.exp %106 : vector<8x128xf32>
    %cst_42 = arith.constant 1.000000e+00 : f32
    %108 = vector.broadcast %cst_42 : f32 to vector<8x128xf32>
    %109 = arith.addf %108, %107 : vector<8x128xf32>
    %110 = arith.divf %108, %109 : vector<8x128xf32>
    %111 = arith.select %5, %105, %110 : vector<8x128xi1>, vector<8x128xf32>
    %112 = vector.extract_strided_slice %111 {offsets = [0, 0], sizes = [8, 32], strides = [1, 1]} : vector<8x128xf32> to vector<8x32xf32>
    %113 = vector.extract_strided_slice %111 {offsets = [0, 32], sizes = [8, 32], strides = [1, 1]} : vector<8x128xf32> to vector<8x32xf32>
    %114 = vector.extract_strided_slice %111 {offsets = [0, 64], sizes = [8, 32], strides = [1, 1]} : vector<8x128xf32> to vector<8x32xf32>
    %115 = vector.extract_strided_slice %111 {offsets = [0, 96], sizes = [8, 32], strides = [1, 1]} : vector<8x128xf32> to vector<8x32xf32>
    %116 = arith.mulf %113, %93 : vector<8x32xf32>
    %117 = arith.mulf %112, %114 : vector<8x32xf32>
    %118 = arith.addf %116, %117 : vector<8x32xf32>
    %119 = math.tanh %118 : vector<8x32xf32>
    %120 = arith.mulf %115, %119 : vector<8x32xf32>
    %121 = arith.index_cast %c3_i32 : i32 to index
    %c0_43 = arith.constant 0 : index
    %c0_44 = arith.constant 0 : index
    %122 = vector.load %arg18[%121, %c0_43, %c0_44] : memref<8x8x32xf32, #tpu.memory_space<vmem>>, vector<1x8x32xf32>
    %123 = vector.shape_cast %122 : vector<1x8x32xf32> to vector<8x32xf32>
    %124 = vector.shape_cast %120 : vector<8x32xf32> to vector<1x8x32xf32>
    tpu.vector_store %arg18[%121, %c0_43, %c0_44], %124 {strides = array<i32>} : memref<8x8x32xf32, #tpu.memory_space<vmem>>, vector<1x8x32xf32>,
    %c4_i32 = arith.constant 4 : i32
    %125 = arith.index_cast %c4_i32 : i32 to index
    %c0_45 = arith.constant 0 : index
    %c0_46 = arith.constant 0 : index
    %126 = vector.load %arg16[%125, %c0_45, %c0_46] : memref<8x8x128xf32, #tpu.memory_space<vmem>>, vector<1x8x128xf32>
    %127 = vector.shape_cast %126 : vector<1x8x128xf32> to vector<8x128xf32>
    %cst_47 = arith.constant dense<0.000000e+00> : vector<8x128xf32>
    %128 = tpu.matmul %120, %22, %cst_47 {dimension_numbers = #tpu.dot_dimension_numbers<[1], [0], [0], [1], [0, 0, 1, 1], [], []>} : vector<8x32xf32>, vector<32x128xf32>, vector<8x128xf32> -> vector<8x128xf32>
    %129 = arith.addf %127, %128 : vector<8x128xf32>
    %130 = math.tanh %129 : vector<8x128xf32>
    %131 = arith.negf %129 : vector<8x128xf32>
    %132 = math.exp %131 : vector<8x128xf32>
    %cst_48 = arith.constant 1.000000e+00 : f32
    %133 = vector.broadcast %cst_48 : f32 to vector<8x128xf32>
    %134 = arith.addf %133, %132 : vector<8x128xf32>
    %135 = arith.divf %133, %134 : vector<8x128xf32>
    %136 = arith.select %5, %130, %135 : vector<8x128xi1>, vector<8x128xf32>
    %137 = vector.extract_strided_slice %136 {offsets = [0, 0], sizes = [8, 32], strides = [1, 1]} : vector<8x128xf32> to vector<8x32xf32>
    %138 = vector.extract_strided_slice %136 {offsets = [0, 32], sizes = [8, 32], strides = [1, 1]} : vector<8x128xf32> to vector<8x32xf32>
    %139 = vector.extract_strided_slice %136 {offsets = [0, 64], sizes = [8, 32], strides = [1, 1]} : vector<8x128xf32> to vector<8x32xf32>
    %140 = vector.extract_strided_slice %136 {offsets = [0, 96], sizes = [8, 32], strides = [1, 1]} : vector<8x128xf32> to vector<8x32xf32>
    %141 = arith.mulf %138, %118 : vector<8x32xf32>
    %142 = arith.mulf %137, %139 : vector<8x32xf32>
    %143 = arith.addf %141, %142 : vector<8x32xf32>
    %144 = math.tanh %143 : vector<8x32xf32>
    %145 = arith.mulf %140, %144 : vector<8x32xf32>
    %146 = arith.index_cast %c4_i32 : i32 to index
    %c0_49 = arith.constant 0 : index
    %c0_50 = arith.constant 0 : index
    %147 = vector.load %arg18[%146, %c0_49, %c0_50] : memref<8x8x32xf32, #tpu.memory_space<vmem>>, vector<1x8x32xf32>
    %148 = vector.shape_cast %147 : vector<1x8x32xf32> to vector<8x32xf32>
    %149 = vector.shape_cast %145 : vector<8x32xf32> to vector<1x8x32xf32>
    tpu.vector_store %arg18[%146, %c0_49, %c0_50], %149 {strides = array<i32>} : memref<8x8x32xf32, #tpu.memory_space<vmem>>, vector<1x8x32xf32>,
    %c5_i32 = arith.constant 5 : i32
    %150 = arith.index_cast %c5_i32 : i32 to index
    %c0_51 = arith.constant 0 : index
    %c0_52 = arith.constant 0 : index
    %151 = vector.load %arg16[%150, %c0_51, %c0_52] : memref<8x8x128xf32, #tpu.memory_space<vmem>>, vector<1x8x128xf32>
    %152 = vector.shape_cast %151 : vector<1x8x128xf32> to vector<8x128xf32>
    %cst_53 = arith.constant dense<0.000000e+00> : vector<8x128xf32>
    %153 = tpu.matmul %145, %22, %cst_53 {dimension_numbers = #tpu.dot_dimension_numbers<[1], [0], [0], [1], [0, 0, 1, 1], [], []>} : vector<8x32xf32>, vector<32x128xf32>, vector<8x128xf32> -> vector<8x128xf32>
    %154 = arith.addf %152, %153 : vector<8x128xf32>
    %155 = math.tanh %154 : vector<8x128xf32>
    %156 = arith.negf %154 : vector<8x128xf32>
    %157 = math.exp %156 : vector<8x128xf32>
    %cst_54 = arith.constant 1.000000e+00 : f32
    %158 = vector.broadcast %cst_54 : f32 to vector<8x128xf32>
    %159 = arith.addf %158, %157 : vector<8x128xf32>
    %160 = arith.divf %158, %159 : vector<8x128xf32>
    %161 = arith.select %5, %155, %160 : vector<8x128xi1>, vector<8x128xf32>
    %162 = vector.extract_strided_slice %161 {offsets = [0, 0], sizes = [8, 32], strides = [1, 1]} : vector<8x128xf32> to vector<8x32xf32>
    %163 = vector.extract_strided_slice %161 {offsets = [0, 32], sizes = [8, 32], strides = [1, 1]} : vector<8x128xf32> to vector<8x32xf32>
    %164 = vector.extract_strided_slice %161 {offsets = [0, 64], sizes = [8, 32], strides = [1, 1]} : vector<8x128xf32> to vector<8x32xf32>
    %165 = vector.extract_strided_slice %161 {offsets = [0, 96], sizes = [8, 32], strides = [1, 1]} : vector<8x128xf32> to vector<8x32xf32>
    %166 = arith.mulf %163, %143 : vector<8x32xf32>
    %167 = arith.mulf %162, %164 : vector<8x32xf32>
    %168 = arith.addf %166, %167 : vector<8x32xf32>
    %169 = math.tanh %168 : vector<8x32xf32>
    %170 = arith.mulf %165, %169 : vector<8x32xf32>
    %171 = arith.index_cast %c5_i32 : i32 to index
    %c0_55 = arith.constant 0 : index
    %c0_56 = arith.constant 0 : index
    %172 = vector.load %arg18[%171, %c0_55, %c0_56] : memref<8x8x32xf32, #tpu.memory_space<vmem>>, vector<1x8x32xf32>
    %173 = vector.shape_cast %172 : vector<1x8x32xf32> to vector<8x32xf32>
    %174 = vector.shape_cast %170 : vector<8x32xf32> to vector<1x8x32xf32>
    tpu.vector_store %arg18[%171, %c0_55, %c0_56], %174 {strides = array<i32>} : memref<8x8x32xf32, #tpu.memory_space<vmem>>, vector<1x8x32xf32>,
    %c6_i32 = arith.constant 6 : i32
    %175 = arith.index_cast %c6_i32 : i32 to index
    %c0_57 = arith.constant 0 : index
    %c0_58 = arith.constant 0 : index
    %176 = vector.load %arg16[%175, %c0_57, %c0_58] : memref<8x8x128xf32, #tpu.memory_space<vmem>>, vector<1x8x128xf32>
    %177 = vector.shape_cast %176 : vector<1x8x128xf32> to vector<8x128xf32>
    %cst_59 = arith.constant dense<0.000000e+00> : vector<8x128xf32>
    %178 = tpu.matmul %170, %22, %cst_59 {dimension_numbers = #tpu.dot_dimension_numbers<[1], [0], [0], [1], [0, 0, 1, 1], [], []>} : vector<8x32xf32>, vector<32x128xf32>, vector<8x128xf32> -> vector<8x128xf32>
    %179 = arith.addf %177, %178 : vector<8x128xf32>
    %180 = math.tanh %179 : vector<8x128xf32>
    %181 = arith.negf %179 : vector<8x128xf32>
    %182 = math.exp %181 : vector<8x128xf32>
    %cst_60 = arith.constant 1.000000e+00 : f32
    %183 = vector.broadcast %cst_60 : f32 to vector<8x128xf32>
    %184 = arith.addf %183, %182 : vector<8x128xf32>
    %185 = arith.divf %183, %184 : vector<8x128xf32>
    %186 = arith.select %5, %180, %185 : vector<8x128xi1>, vector<8x128xf32>
    %187 = vector.extract_strided_slice %186 {offsets = [0, 0], sizes = [8, 32], strides = [1, 1]} : vector<8x128xf32> to vector<8x32xf32>
    %188 = vector.extract_strided_slice %186 {offsets = [0, 32], sizes = [8, 32], strides = [1, 1]} : vector<8x128xf32> to vector<8x32xf32>
    %189 = vector.extract_strided_slice %186 {offsets = [0, 64], sizes = [8, 32], strides = [1, 1]} : vector<8x128xf32> to vector<8x32xf32>
    %190 = vector.extract_strided_slice %186 {offsets = [0, 96], sizes = [8, 32], strides = [1, 1]} : vector<8x128xf32> to vector<8x32xf32>
    %191 = arith.mulf %188, %168 : vector<8x32xf32>
    %192 = arith.mulf %187, %189 : vector<8x32xf32>
    %193 = arith.addf %191, %192 : vector<8x32xf32>
    %194 = math.tanh %193 : vector<8x32xf32>
    %195 = arith.mulf %190, %194 : vector<8x32xf32>
    %196 = arith.index_cast %c6_i32 : i32 to index
    %c0_61 = arith.constant 0 : index
    %c0_62 = arith.constant 0 : index
    %197 = vector.load %arg18[%196, %c0_61, %c0_62] : memref<8x8x32xf32, #tpu.memory_space<vmem>>, vector<1x8x32xf32>
    %198 = vector.shape_cast %197 : vector<1x8x32xf32> to vector<8x32xf32>
    %199 = vector.shape_cast %195 : vector<8x32xf32> to vector<1x8x32xf32>
    tpu.vector_store %arg18[%196, %c0_61, %c0_62], %199 {strides = array<i32>} : memref<8x8x32xf32, #tpu.memory_space<vmem>>, vector<1x8x32xf32>,
    %c7_i32 = arith.constant 7 : i32
    %200 = arith.index_cast %c7_i32 : i32 to index
    %c0_63 = arith.constant 0 : index
    %c0_64 = arith.constant 0 : index
    %201 = vector.load %arg16[%200, %c0_63, %c0_64] : memref<8x8x128xf32, #tpu.memory_space<vmem>>, vector<1x8x128xf32>
    %202 = vector.shape_cast %201 : vector<1x8x128xf32> to vector<8x128xf32>
    %cst_65 = arith.constant dense<0.000000e+00> : vector<8x128xf32>
    %203 = tpu.matmul %195, %22, %cst_65 {dimension_numbers = #tpu.dot_dimension_numbers<[1], [0], [0], [1], [0, 0, 1, 1], [], []>} : vector<8x32xf32>, vector<32x128xf32>, vector<8x128xf32> -> vector<8x128xf32>
    %204 = arith.addf %202, %203 : vector<8x128xf32>
    %205 = math.tanh %204 : vector<8x128xf32>
    %206 = arith.negf %204 : vector<8x128xf32>
    %207 = math.exp %206 : vector<8x128xf32>
    %cst_66 = arith.constant 1.000000e+00 : f32
    %208 = vector.broadcast %cst_66 : f32 to vector<8x128xf32>
    %209 = arith.addf %208, %207 : vector<8x128xf32>
    %210 = arith.divf %208, %209 : vector<8x128xf32>
    %211 = arith.select %5, %205, %210 : vector<8x128xi1>, vector<8x128xf32>
    %212 = vector.extract_strided_slice %211 {offsets = [0, 0], sizes = [8, 32], strides = [1, 1]} : vector<8x128xf32> to vector<8x32xf32>
    %213 = vector.extract_strided_slice %211 {offsets = [0, 32], sizes = [8, 32], strides = [1, 1]} : vector<8x128xf32> to vector<8x32xf32>
    %214 = vector.extract_strided_slice %211 {offsets = [0, 64], sizes = [8, 32], strides = [1, 1]} : vector<8x128xf32> to vector<8x32xf32>
    %215 = vector.extract_strided_slice %211 {offsets = [0, 96], sizes = [8, 32], strides = [1, 1]} : vector<8x128xf32> to vector<8x32xf32>
    %216 = arith.mulf %213, %193 : vector<8x32xf32>
    %217 = arith.mulf %212, %214 : vector<8x32xf32>
    %218 = arith.addf %216, %217 : vector<8x32xf32>
    %219 = math.tanh %218 : vector<8x32xf32>
    %220 = arith.mulf %215, %219 : vector<8x32xf32>
    %221 = arith.index_cast %c7_i32 : i32 to index
    %c0_67 = arith.constant 0 : index
    %c0_68 = arith.constant 0 : index
    %222 = vector.load %arg18[%221, %c0_67, %c0_68] : memref<8x8x32xf32, #tpu.memory_space<vmem>>, vector<1x8x32xf32>
    %223 = vector.shape_cast %222 : vector<1x8x32xf32> to vector<8x32xf32>
    %224 = vector.shape_cast %220 : vector<8x32xf32> to vector<1x8x32xf32>
    tpu.vector_store %arg18[%221, %c0_67, %c0_68], %224 {strides = array<i32>} : memref<8x8x32xf32, #tpu.memory_space<vmem>>, vector<1x8x32xf32>,
    %c8_i32 = arith.constant 8 : i32
    %c0_69 = arith.constant 0 : index
    %c0_70 = arith.constant 0 : index
    %225 = vector.load %arg5[%c0_69, %c0_70] : memref<32x128xf32, #tpu.memory_space<vmem>>, vector<32x128xf32>
    %cst_71 = arith.constant 0.000000e+00 : f32
    %226 = vector.broadcast %cst_71 : f32 to vector<8x32xf32>
    %cst_72 = arith.constant 0.000000e+00 : f32
    %227 = vector.broadcast %cst_72 : f32 to vector<8x32xf32>
    %c0_i32_73 = arith.constant 0 : i32
    %c7_i32_74 = arith.constant 7 : i32
    %228 = arith.subi %c7_i32_74, %c0_i32_73 : i32
    %229 = arith.index_cast %228 : i32 to index
    %c0_75 = arith.constant 0 : index
    %c0_76 = arith.constant 0 : index
    %230 = vector.load %arg17[%229, %c0_75, %c0_76] : memref<8x8x128xf32, #tpu.memory_space<vmem>>, vector<1x8x128xf32>
    %231 = vector.shape_cast %230 : vector<1x8x128xf32> to vector<8x128xf32>
    %cst_77 = arith.constant dense<0.000000e+00> : vector<8x128xf32>
    %232 = tpu.matmul %226, %225, %cst_77 {dimension_numbers = #tpu.dot_dimension_numbers<[1], [0], [0], [1], [0, 0, 1, 1], [], []>} : vector<8x32xf32>, vector<32x128xf32>, vector<8x128xf32> -> vector<8x128xf32>
    %233 = arith.addf %231, %232 : vector<8x128xf32>
    %234 = math.tanh %233 : vector<8x128xf32>
    %235 = arith.negf %233 : vector<8x128xf32>
    %236 = math.exp %235 : vector<8x128xf32>
    %cst_78 = arith.constant 1.000000e+00 : f32
    %237 = vector.broadcast %cst_78 : f32 to vector<8x128xf32>
    %238 = arith.addf %237, %236 : vector<8x128xf32>
    %239 = arith.divf %237, %238 : vector<8x128xf32>
    %240 = arith.select %5, %234, %239 : vector<8x128xi1>, vector<8x128xf32>
    %241 = vector.extract_strided_slice %240 {offsets = [0, 0], sizes = [8, 32], strides = [1, 1]} : vector<8x128xf32> to vector<8x32xf32>
    %242 = vector.extract_strided_slice %240 {offsets = [0, 32], sizes = [8, 32], strides = [1, 1]} : vector<8x128xf32> to vector<8x32xf32>
    %243 = vector.extract_strided_slice %240 {offsets = [0, 64], sizes = [8, 32], strides = [1, 1]} : vector<8x128xf32> to vector<8x32xf32>
    %244 = vector.extract_strided_slice %240 {offsets = [0, 96], sizes = [8, 32], strides = [1, 1]} : vector<8x128xf32> to vector<8x32xf32>
    %245 = arith.mulf %242, %227 : vector<8x32xf32>
    %246 = arith.mulf %241, %243 : vector<8x32xf32>
    %247 = arith.addf %245, %246 : vector<8x32xf32>
    %248 = math.tanh %247 : vector<8x32xf32>
    %249 = arith.mulf %244, %248 : vector<8x32xf32>
    %250 = arith.index_cast %228 : i32 to index
    %c0_79 = arith.constant 0 : index
    %c0_80 = arith.constant 0 : index
    %251 = vector.load %arg19[%250, %c0_79, %c0_80] : memref<8x8x32xf32, #tpu.memory_space<vmem>>, vector<1x8x32xf32>
    %252 = vector.shape_cast %251 : vector<1x8x32xf32> to vector<8x32xf32>
    %253 = vector.shape_cast %249 : vector<8x32xf32> to vector<1x8x32xf32>
    tpu.vector_store %arg19[%250, %c0_79, %c0_80], %253 {strides = array<i32>} : memref<8x8x32xf32, #tpu.memory_space<vmem>>, vector<1x8x32xf32>,
    %c1_i32_81 = arith.constant 1 : i32
    %c7_i32_82 = arith.constant 7 : i32
    %254 = arith.subi %c7_i32_82, %c1_i32_81 : i32
    %255 = arith.index_cast %254 : i32 to index
    %c0_83 = arith.constant 0 : index
    %c0_84 = arith.constant 0 : index
    %256 = vector.load %arg17[%255, %c0_83, %c0_84] : memref<8x8x128xf32, #tpu.memory_space<vmem>>, vector<1x8x128xf32>
    %257 = vector.shape_cast %256 : vector<1x8x128xf32> to vector<8x128xf32>
    %cst_85 = arith.constant dense<0.000000e+00> : vector<8x128xf32>
    %258 = tpu.matmul %249, %225, %cst_85 {dimension_numbers = #tpu.dot_dimension_numbers<[1], [0], [0], [1], [0, 0, 1, 1], [], []>} : vector<8x32xf32>, vector<32x128xf32>, vector<8x128xf32> -> vector<8x128xf32>
    %259 = arith.addf %257, %258 : vector<8x128xf32>
    %260 = math.tanh %259 : vector<8x128xf32>
    %261 = arith.negf %259 : vector<8x128xf32>
    %262 = math.exp %261 : vector<8x128xf32>
    %cst_86 = arith.constant 1.000000e+00 : f32
    %263 = vector.broadcast %cst_86 : f32 to vector<8x128xf32>
    %264 = arith.addf %263, %262 : vector<8x128xf32>
    %265 = arith.divf %263, %264 : vector<8x128xf32>
    %266 = arith.select %5, %260, %265 : vector<8x128xi1>, vector<8x128xf32>
    %267 = vector.extract_strided_slice %266 {offsets = [0, 0], sizes = [8, 32], strides = [1, 1]} : vector<8x128xf32> to vector<8x32xf32>
    %268 = vector.extract_strided_slice %266 {offsets = [0, 32], sizes = [8, 32], strides = [1, 1]} : vector<8x128xf32> to vector<8x32xf32>
    %269 = vector.extract_strided_slice %266 {offsets = [0, 64], sizes = [8, 32], strides = [1, 1]} : vector<8x128xf32> to vector<8x32xf32>
    %270 = vector.extract_strided_slice %266 {offsets = [0, 96], sizes = [8, 32], strides = [1, 1]} : vector<8x128xf32> to vector<8x32xf32>
    %271 = arith.mulf %268, %247 : vector<8x32xf32>
    %272 = arith.mulf %267, %269 : vector<8x32xf32>
    %273 = arith.addf %271, %272 : vector<8x32xf32>
    %274 = math.tanh %273 : vector<8x32xf32>
    %275 = arith.mulf %270, %274 : vector<8x32xf32>
    %276 = arith.index_cast %254 : i32 to index
    %c0_87 = arith.constant 0 : index
    %c0_88 = arith.constant 0 : index
    %277 = vector.load %arg19[%276, %c0_87, %c0_88] : memref<8x8x32xf32, #tpu.memory_space<vmem>>, vector<1x8x32xf32>
    %278 = vector.shape_cast %277 : vector<1x8x32xf32> to vector<8x32xf32>
    %279 = vector.shape_cast %275 : vector<8x32xf32> to vector<1x8x32xf32>
    tpu.vector_store %arg19[%276, %c0_87, %c0_88], %279 {strides = array<i32>} : memref<8x8x32xf32, #tpu.memory_space<vmem>>, vector<1x8x32xf32>,
    %c2_i32_89 = arith.constant 2 : i32
    %c7_i32_90 = arith.constant 7 : i32
    %280 = arith.subi %c7_i32_90, %c2_i32_89 : i32
    %281 = arith.index_cast %280 : i32 to index
    %c0_91 = arith.constant 0 : index
    %c0_92 = arith.constant 0 : index
    %282 = vector.load %arg17[%281, %c0_91, %c0_92] : memref<8x8x128xf32, #tpu.memory_space<vmem>>, vector<1x8x128xf32>
    %283 = vector.shape_cast %282 : vector<1x8x128xf32> to vector<8x128xf32>
    %cst_93 = arith.constant dense<0.000000e+00> : vector<8x128xf32>
    %284 = tpu.matmul %275, %225, %cst_93 {dimension_numbers = #tpu.dot_dimension_numbers<[1], [0], [0], [1], [0, 0, 1, 1], [], []>} : vector<8x32xf32>, vector<32x128xf32>, vector<8x128xf32> -> vector<8x128xf32>
    %285 = arith.addf %283, %284 : vector<8x128xf32>
    %286 = math.tanh %285 : vector<8x128xf32>
    %287 = arith.negf %285 : vector<8x128xf32>
    %288 = math.exp %287 : vector<8x128xf32>
    %cst_94 = arith.constant 1.000000e+00 : f32
    %289 = vector.broadcast %cst_94 : f32 to vector<8x128xf32>
    %290 = arith.addf %289, %288 : vector<8x128xf32>
    %291 = arith.divf %289, %290 : vector<8x128xf32>
    %292 = arith.select %5, %286, %291 : vector<8x128xi1>, vector<8x128xf32>
    %293 = vector.extract_strided_slice %292 {offsets = [0, 0], sizes = [8, 32], strides = [1, 1]} : vector<8x128xf32> to vector<8x32xf32>
    %294 = vector.extract_strided_slice %292 {offsets = [0, 32], sizes = [8, 32], strides = [1, 1]} : vector<8x128xf32> to vector<8x32xf32>
    %295 = vector.extract_strided_slice %292 {offsets = [0, 64], sizes = [8, 32], strides = [1, 1]} : vector<8x128xf32> to vector<8x32xf32>
    %296 = vector.extract_strided_slice %292 {offsets = [0, 96], sizes = [8, 32], strides = [1, 1]} : vector<8x128xf32> to vector<8x32xf32>
    %297 = arith.mulf %294, %273 : vector<8x32xf32>
    %298 = arith.mulf %293, %295 : vector<8x32xf32>
    %299 = arith.addf %297, %298 : vector<8x32xf32>
    %300 = math.tanh %299 : vector<8x32xf32>
    %301 = arith.mulf %296, %300 : vector<8x32xf32>
    %302 = arith.index_cast %280 : i32 to index
    %c0_95 = arith.constant 0 : index
    %c0_96 = arith.constant 0 : index
    %303 = vector.load %arg19[%302, %c0_95, %c0_96] : memref<8x8x32xf32, #tpu.memory_space<vmem>>, vector<1x8x32xf32>
    %304 = vector.shape_cast %303 : vector<1x8x32xf32> to vector<8x32xf32>
    %305 = vector.shape_cast %301 : vector<8x32xf32> to vector<1x8x32xf32>
    tpu.vector_store %arg19[%302, %c0_95, %c0_96], %305 {strides = array<i32>} : memref<8x8x32xf32, #tpu.memory_space<vmem>>, vector<1x8x32xf32>,
    %c3_i32_97 = arith.constant 3 : i32
    %c7_i32_98 = arith.constant 7 : i32
    %306 = arith.subi %c7_i32_98, %c3_i32_97 : i32
    %307 = arith.index_cast %306 : i32 to index
    %c0_99 = arith.constant 0 : index
    %c0_100 = arith.constant 0 : index
    %308 = vector.load %arg17[%307, %c0_99, %c0_100] : memref<8x8x128xf32, #tpu.memory_space<vmem>>, vector<1x8x128xf32>
    %309 = vector.shape_cast %308 : vector<1x8x128xf32> to vector<8x128xf32>
    %cst_101 = arith.constant dense<0.000000e+00> : vector<8x128xf32>
    %310 = tpu.matmul %301, %225, %cst_101 {dimension_numbers = #tpu.dot_dimension_numbers<[1], [0], [0], [1], [0, 0, 1, 1], [], []>} : vector<8x32xf32>, vector<32x128xf32>, vector<8x128xf32> -> vector<8x128xf32>
    %311 = arith.addf %309, %310 : vector<8x128xf32>
    %312 = math.tanh %311 : vector<8x128xf32>
    %313 = arith.negf %311 : vector<8x128xf32>
    %314 = math.exp %313 : vector<8x128xf32>
    %cst_102 = arith.constant 1.000000e+00 : f32
    %315 = vector.broadcast %cst_102 : f32 to vector<8x128xf32>
    %316 = arith.addf %315, %314 : vector<8x128xf32>
    %317 = arith.divf %315, %316 : vector<8x128xf32>
    %318 = arith.select %5, %312, %317 : vector<8x128xi1>, vector<8x128xf32>
    %319 = vector.extract_strided_slice %318 {offsets = [0, 0], sizes = [8, 32], strides = [1, 1]} : vector<8x128xf32> to vector<8x32xf32>
    %320 = vector.extract_strided_slice %318 {offsets = [0, 32], sizes = [8, 32], strides = [1, 1]} : vector<8x128xf32> to vector<8x32xf32>
    %321 = vector.extract_strided_slice %318 {offsets = [0, 64], sizes = [8, 32], strides = [1, 1]} : vector<8x128xf32> to vector<8x32xf32>
    %322 = vector.extract_strided_slice %318 {offsets = [0, 96], sizes = [8, 32], strides = [1, 1]} : vector<8x128xf32> to vector<8x32xf32>
    %323 = arith.mulf %320, %299 : vector<8x32xf32>
    %324 = arith.mulf %319, %321 : vector<8x32xf32>
    %325 = arith.addf %323, %324 : vector<8x32xf32>
    %326 = math.tanh %325 : vector<8x32xf32>
    %327 = arith.mulf %322, %326 : vector<8x32xf32>
    %328 = arith.index_cast %306 : i32 to index
    %c0_103 = arith.constant 0 : index
    %c0_104 = arith.constant 0 : index
    %329 = vector.load %arg19[%328, %c0_103, %c0_104] : memref<8x8x32xf32, #tpu.memory_space<vmem>>, vector<1x8x32xf32>
    %330 = vector.shape_cast %329 : vector<1x8x32xf32> to vector<8x32xf32>
    %331 = vector.shape_cast %327 : vector<8x32xf32> to vector<1x8x32xf32>
    tpu.vector_store %arg19[%328, %c0_103, %c0_104], %331 {strides = array<i32>} : memref<8x8x32xf32, #tpu.memory_space<vmem>>, vector<1x8x32xf32>,
    %c4_i32_105 = arith.constant 4 : i32
    %c7_i32_106 = arith.constant 7 : i32
    %332 = arith.subi %c7_i32_106, %c4_i32_105 : i32
    %333 = arith.index_cast %332 : i32 to index
    %c0_107 = arith.constant 0 : index
    %c0_108 = arith.constant 0 : index
    %334 = vector.load %arg17[%333, %c0_107, %c0_108] : memref<8x8x128xf32, #tpu.memory_space<vmem>>, vector<1x8x128xf32>
    %335 = vector.shape_cast %334 : vector<1x8x128xf32> to vector<8x128xf32>
    %cst_109 = arith.constant dense<0.000000e+00> : vector<8x128xf32>
    %336 = tpu.matmul %327, %225, %cst_109 {dimension_numbers = #tpu.dot_dimension_numbers<[1], [0], [0], [1], [0, 0, 1, 1], [], []>} : vector<8x32xf32>, vector<32x128xf32>, vector<8x128xf32> -> vector<8x128xf32>
    %337 = arith.addf %335, %336 : vector<8x128xf32>
    %338 = math.tanh %337 : vector<8x128xf32>
    %339 = arith.negf %337 : vector<8x128xf32>
    %340 = math.exp %339 : vector<8x128xf32>
    %cst_110 = arith.constant 1.000000e+00 : f32
    %341 = vector.broadcast %cst_110 : f32 to vector<8x128xf32>
    %342 = arith.addf %341, %340 : vector<8x128xf32>
    %343 = arith.divf %341, %342 : vector<8x128xf32>
    %344 = arith.select %5, %338, %343 : vector<8x128xi1>, vector<8x128xf32>
    %345 = vector.extract_strided_slice %344 {offsets = [0, 0], sizes = [8, 32], strides = [1, 1]} : vector<8x128xf32> to vector<8x32xf32>
    %346 = vector.extract_strided_slice %344 {offsets = [0, 32], sizes = [8, 32], strides = [1, 1]} : vector<8x128xf32> to vector<8x32xf32>
    %347 = vector.extract_strided_slice %344 {offsets = [0, 64], sizes = [8, 32], strides = [1, 1]} : vector<8x128xf32> to vector<8x32xf32>
    %348 = vector.extract_strided_slice %344 {offsets = [0, 96], sizes = [8, 32], strides = [1, 1]} : vector<8x128xf32> to vector<8x32xf32>
    %349 = arith.mulf %346, %325 : vector<8x32xf32>
    %350 = arith.mulf %345, %347 : vector<8x32xf32>
    %351 = arith.addf %349, %350 : vector<8x32xf32>
    %352 = math.tanh %351 : vector<8x32xf32>
    %353 = arith.mulf %348, %352 : vector<8x32xf32>
    %354 = arith.index_cast %332 : i32 to index
    %c0_111 = arith.constant 0 : index
    %c0_112 = arith.constant 0 : index
    %355 = vector.load %arg19[%354, %c0_111, %c0_112] : memref<8x8x32xf32, #tpu.memory_space<vmem>>, vector<1x8x32xf32>
    %356 = vector.shape_cast %355 : vector<1x8x32xf32> to vector<8x32xf32>
    %357 = vector.shape_cast %353 : vector<8x32xf32> to vector<1x8x32xf32>
    tpu.vector_store %arg19[%354, %c0_111, %c0_112], %357 {strides = array<i32>} : memref<8x8x32xf32, #tpu.memory_space<vmem>>, vector<1x8x32xf32>,
    %c5_i32_113 = arith.constant 5 : i32
    %c7_i32_114 = arith.constant 7 : i32
    %358 = arith.subi %c7_i32_114, %c5_i32_113 : i32
    %359 = arith.index_cast %358 : i32 to index
    %c0_115 = arith.constant 0 : index
    %c0_116 = arith.constant 0 : index
    %360 = vector.load %arg17[%359, %c0_115, %c0_116] : memref<8x8x128xf32, #tpu.memory_space<vmem>>, vector<1x8x128xf32>
    %361 = vector.shape_cast %360 : vector<1x8x128xf32> to vector<8x128xf32>
    %cst_117 = arith.constant dense<0.000000e+00> : vector<8x128xf32>
    %362 = tpu.matmul %353, %225, %cst_117 {dimension_numbers = #tpu.dot_dimension_numbers<[1], [0], [0], [1], [0, 0, 1, 1], [], []>} : vector<8x32xf32>, vector<32x128xf32>, vector<8x128xf32> -> vector<8x128xf32>
    %363 = arith.addf %361, %362 : vector<8x128xf32>
    %364 = math.tanh %363 : vector<8x128xf32>
    %365 = arith.negf %363 : vector<8x128xf32>
    %366 = math.exp %365 : vector<8x128xf32>
    %cst_118 = arith.constant 1.000000e+00 : f32
    %367 = vector.broadcast %cst_118 : f32 to vector<8x128xf32>
    %368 = arith.addf %367, %366 : vector<8x128xf32>
    %369 = arith.divf %367, %368 : vector<8x128xf32>
    %370 = arith.select %5, %364, %369 : vector<8x128xi1>, vector<8x128xf32>
    %371 = vector.extract_strided_slice %370 {offsets = [0, 0], sizes = [8, 32], strides = [1, 1]} : vector<8x128xf32> to vector<8x32xf32>
    %372 = vector.extract_strided_slice %370 {offsets = [0, 32], sizes = [8, 32], strides = [1, 1]} : vector<8x128xf32> to vector<8x32xf32>
    %373 = vector.extract_strided_slice %370 {offsets = [0, 64], sizes = [8, 32], strides = [1, 1]} : vector<8x128xf32> to vector<8x32xf32>
    %374 = vector.extract_strided_slice %370 {offsets = [0, 96], sizes = [8, 32], strides = [1, 1]} : vector<8x128xf32> to vector<8x32xf32>
    %375 = arith.mulf %372, %351 : vector<8x32xf32>
    %376 = arith.mulf %371, %373 : vector<8x32xf32>
    %377 = arith.addf %375, %376 : vector<8x32xf32>
    %378 = math.tanh %377 : vector<8x32xf32>
    %379 = arith.mulf %374, %378 : vector<8x32xf32>
    %380 = arith.index_cast %358 : i32 to index
    %c0_119 = arith.constant 0 : index
    %c0_120 = arith.constant 0 : index
    %381 = vector.load %arg19[%380, %c0_119, %c0_120] : memref<8x8x32xf32, #tpu.memory_space<vmem>>, vector<1x8x32xf32>
    %382 = vector.shape_cast %381 : vector<1x8x32xf32> to vector<8x32xf32>
    %383 = vector.shape_cast %379 : vector<8x32xf32> to vector<1x8x32xf32>
    tpu.vector_store %arg19[%380, %c0_119, %c0_120], %383 {strides = array<i32>} : memref<8x8x32xf32, #tpu.memory_space<vmem>>, vector<1x8x32xf32>,
    %c6_i32_121 = arith.constant 6 : i32
    %c7_i32_122 = arith.constant 7 : i32
    %384 = arith.subi %c7_i32_122, %c6_i32_121 : i32
    %385 = arith.index_cast %384 : i32 to index
    %c0_123 = arith.constant 0 : index
    %c0_124 = arith.constant 0 : index
    %386 = vector.load %arg17[%385, %c0_123, %c0_124] : memref<8x8x128xf32, #tpu.memory_space<vmem>>, vector<1x8x128xf32>
    %387 = vector.shape_cast %386 : vector<1x8x128xf32> to vector<8x128xf32>
    %cst_125 = arith.constant dense<0.000000e+00> : vector<8x128xf32>
    %388 = tpu.matmul %379, %225, %cst_125 {dimension_numbers = #tpu.dot_dimension_numbers<[1], [0], [0], [1], [0, 0, 1, 1], [], []>} : vector<8x32xf32>, vector<32x128xf32>, vector<8x128xf32> -> vector<8x128xf32>
    %389 = arith.addf %387, %388 : vector<8x128xf32>
    %390 = math.tanh %389 : vector<8x128xf32>
    %391 = arith.negf %389 : vector<8x128xf32>
    %392 = math.exp %391 : vector<8x128xf32>
    %cst_126 = arith.constant 1.000000e+00 : f32
    %393 = vector.broadcast %cst_126 : f32 to vector<8x128xf32>
    %394 = arith.addf %393, %392 : vector<8x128xf32>
    %395 = arith.divf %393, %394 : vector<8x128xf32>
    %396 = arith.select %5, %390, %395 : vector<8x128xi1>, vector<8x128xf32>
    %397 = vector.extract_strided_slice %396 {offsets = [0, 0], sizes = [8, 32], strides = [1, 1]} : vector<8x128xf32> to vector<8x32xf32>
    %398 = vector.extract_strided_slice %396 {offsets = [0, 32], sizes = [8, 32], strides = [1, 1]} : vector<8x128xf32> to vector<8x32xf32>
    %399 = vector.extract_strided_slice %396 {offsets = [0, 64], sizes = [8, 32], strides = [1, 1]} : vector<8x128xf32> to vector<8x32xf32>
    %400 = vector.extract_strided_slice %396 {offsets = [0, 96], sizes = [8, 32], strides = [1, 1]} : vector<8x128xf32> to vector<8x32xf32>
    %401 = arith.mulf %398, %377 : vector<8x32xf32>
    %402 = arith.mulf %397, %399 : vector<8x32xf32>
    %403 = arith.addf %401, %402 : vector<8x32xf32>
    %404 = math.tanh %403 : vector<8x32xf32>
    %405 = arith.mulf %400, %404 : vector<8x32xf32>
    %406 = arith.index_cast %384 : i32 to index
    %c0_127 = arith.constant 0 : index
    %c0_128 = arith.constant 0 : index
    %407 = vector.load %arg19[%406, %c0_127, %c0_128] : memref<8x8x32xf32, #tpu.memory_space<vmem>>, vector<1x8x32xf32>
    %408 = vector.shape_cast %407 : vector<1x8x32xf32> to vector<8x32xf32>
    %409 = vector.shape_cast %405 : vector<8x32xf32> to vector<1x8x32xf32>
    tpu.vector_store %arg19[%406, %c0_127, %c0_128], %409 {strides = array<i32>} : memref<8x8x32xf32, #tpu.memory_space<vmem>>, vector<1x8x32xf32>,
    %c7_i32_129 = arith.constant 7 : i32
    %c7_i32_130 = arith.constant 7 : i32
    %410 = arith.subi %c7_i32_130, %c7_i32_129 : i32
    %411 = arith.index_cast %410 : i32 to index
    %c0_131 = arith.constant 0 : index
    %c0_132 = arith.constant 0 : index
    %412 = vector.load %arg17[%411, %c0_131, %c0_132] : memref<8x8x128xf32, #tpu.memory_space<vmem>>, vector<1x8x128xf32>
    %413 = vector.shape_cast %412 : vector<1x8x128xf32> to vector<8x128xf32>
    %cst_133 = arith.constant dense<0.000000e+00> : vector<8x128xf32>
    %414 = tpu.matmul %405, %225, %cst_133 {dimension_numbers = #tpu.dot_dimension_numbers<[1], [0], [0], [1], [0, 0, 1, 1], [], []>} : vector<8x32xf32>, vector<32x128xf32>, vector<8x128xf32> -> vector<8x128xf32>
    %415 = arith.addf %413, %414 : vector<8x128xf32>
    %416 = math.tanh %415 : vector<8x128xf32>
    %417 = arith.negf %415 : vector<8x128xf32>
    %418 = math.exp %417 : vector<8x128xf32>
    %cst_134 = arith.constant 1.000000e+00 : f32
    %419 = vector.broadcast %cst_134 : f32 to vector<8x128xf32>
    %420 = arith.addf %419, %418 : vector<8x128xf32>
    %421 = arith.divf %419, %420 : vector<8x128xf32>
    %422 = arith.select %5, %416, %421 : vector<8x128xi1>, vector<8x128xf32>
    %423 = vector.extract_strided_slice %422 {offsets = [0, 0], sizes = [8, 32], strides = [1, 1]} : vector<8x128xf32> to vector<8x32xf32>
    %424 = vector.extract_strided_slice %422 {offsets = [0, 32], sizes = [8, 32], strides = [1, 1]} : vector<8x128xf32> to vector<8x32xf32>
    %425 = vector.extract_strided_slice %422 {offsets = [0, 64], sizes = [8, 32], strides = [1, 1]} : vector<8x128xf32> to vector<8x32xf32>
    %426 = vector.extract_strided_slice %422 {offsets = [0, 96], sizes = [8, 32], strides = [1, 1]} : vector<8x128xf32> to vector<8x32xf32>
    %427 = arith.mulf %424, %403 : vector<8x32xf32>
    %428 = arith.mulf %423, %425 : vector<8x32xf32>
    %429 = arith.addf %427, %428 : vector<8x32xf32>
    %430 = math.tanh %429 : vector<8x32xf32>
    %431 = arith.mulf %426, %430 : vector<8x32xf32>
    %432 = arith.index_cast %410 : i32 to index
    %c0_135 = arith.constant 0 : index
    %c0_136 = arith.constant 0 : index
    %433 = vector.load %arg19[%432, %c0_135, %c0_136] : memref<8x8x32xf32, #tpu.memory_space<vmem>>, vector<1x8x32xf32>
    %434 = vector.shape_cast %433 : vector<1x8x32xf32> to vector<8x32xf32>
    %435 = vector.shape_cast %431 : vector<8x32xf32> to vector<1x8x32xf32>
    tpu.vector_store %arg19[%432, %c0_135, %c0_136], %435 {strides = array<i32>} : memref<8x8x32xf32, #tpu.memory_space<vmem>>, vector<1x8x32xf32>,
    %c8_i32_137 = arith.constant 8 : i32
    %c0_138 = arith.constant 0 : index
    %c0_139 = arith.constant 0 : index
    %c0_140 = arith.constant 0 : index
    %436 = vector.load %arg18[%c0_138, %c0_139, %c0_140] : memref<8x8x32xf32, #tpu.memory_space<vmem>>, vector<8x8x32xf32>
    %c0_141 = arith.constant 0 : index
    %c0_142 = arith.constant 0 : index
    %c0_143 = arith.constant 0 : index
    %437 = vector.load %arg19[%c0_141, %c0_142, %c0_143] : memref<8x8x32xf32, #tpu.memory_space<vmem>>, vector<8x8x32xf32>
    %438 = tpu.concatenate %436, %437 in 2 : vector<8x8x32xf32>, vector<8x8x32xf32> -> vector<8x8x64xf32>
    %439 = vector.shape_cast %438 : vector<8x8x64xf32> to vector<64x64xf32>
    %c0_144 = arith.constant 0 : index
    %c0_145 = arith.constant 0 : index
    %440 = vector.load %arg7[%c0_144, %c0_145] : memref<64x128xf32, #tpu.memory_space<vmem>>, vector<64x128xf32>
    %cst_146 = arith.constant dense<0.000000e+00> : vector<64x128xf32>
    %441 = tpu.matmul %439, %440, %cst_146 {dimension_numbers = #tpu.dot_dimension_numbers<[1], [0], [0], [1], [0, 0, 1, 1], [], []>} : vector<64x64xf32>, vector<64x128xf32>, vector<64x128xf32> -> vector<64x128xf32>
    %c0_147 = arith.constant 0 : index
    %c0_148 = arith.constant 0 : index
    %442 = vector.load %arg9[%c0_147, %c0_148] : memref<1x128xf32, #tpu.memory_space<vmem>>, vector<1x128xf32>
    %443 = vector.broadcast %442 : vector<1x128xf32> to vector<64x128xf32>
    %444 = arith.addf %441, %443 : vector<64x128xf32>
    %445 = vector.shape_cast %444 : vector<64x128xf32> to vector<8x8x128xf32>
    %c0_149 = arith.constant 0 : index
    %c0_150 = arith.constant 0 : index
    %c0_151 = arith.constant 0 : index
    %446 = vector.load %arg16[%c0_149, %c0_150, %c0_151] : memref<8x8x128xf32, #tpu.memory_space<vmem>>, vector<8x8x128xf32>
    tpu.vector_store %arg16[%c0_149, %c0_150, %c0_151], %445 {strides = array<i32>} : memref<8x8x128xf32, #tpu.memory_space<vmem>>, vector<8x8x128xf32>,
    %c0_152 = arith.constant 0 : index
    %c0_153 = arith.constant 0 : index
    %447 = vector.load %arg10[%c0_152, %c0_153] : memref<64x128xf32, #tpu.memory_space<vmem>>, vector<64x128xf32>
    %cst_154 = arith.constant dense<0.000000e+00> : vector<64x128xf32>
    %448 = tpu.matmul %439, %447, %cst_154 {dimension_numbers = #tpu.dot_dimension_numbers<[1], [0], [0], [1], [0, 0, 1, 1], [], []>} : vector<64x64xf32>, vector<64x128xf32>, vector<64x128xf32> -> vector<64x128xf32>
    %c0_155 = arith.constant 0 : index
    %c0_156 = arith.constant 0 : index
    %449 = vector.load %arg12[%c0_155, %c0_156] : memref<1x128xf32, #tpu.memory_space<vmem>>, vector<1x128xf32>
    %450 = vector.broadcast %449 : vector<1x128xf32> to vector<64x128xf32>
    %451 = arith.addf %448, %450 : vector<64x128xf32>
    %452 = vector.shape_cast %451 : vector<64x128xf32> to vector<8x8x128xf32>
    %c0_157 = arith.constant 0 : index
    %c0_158 = arith.constant 0 : index
    %c0_159 = arith.constant 0 : index
    %453 = vector.load %arg17[%c0_157, %c0_158, %c0_159] : memref<8x8x128xf32, #tpu.memory_space<vmem>>, vector<8x8x128xf32>
    tpu.vector_store %arg17[%c0_157, %c0_158, %c0_159], %452 {strides = array<i32>} : memref<8x8x128xf32, #tpu.memory_space<vmem>>, vector<8x8x128xf32>,
    %c0_160 = arith.constant 0 : index
    %c0_161 = arith.constant 0 : index
    %454 = vector.load %arg8[%c0_160, %c0_161] : memref<32x128xf32, #tpu.memory_space<vmem>>, vector<32x128xf32>
    %cst_162 = arith.constant 0.000000e+00 : f32
    %455 = vector.broadcast %cst_162 : f32 to vector<8x32xf32>
    %cst_163 = arith.constant 0.000000e+00 : f32
    %456 = vector.broadcast %cst_163 : f32 to vector<8x32xf32>
    %c0_i32_164 = arith.constant 0 : i32
    %457 = arith.index_cast %c0_i32_164 : i32 to index
    %c0_165 = arith.constant 0 : index
    %c0_166 = arith.constant 0 : index
    %458 = vector.load %arg16[%457, %c0_165, %c0_166] : memref<8x8x128xf32, #tpu.memory_space<vmem>>, vector<1x8x128xf32>
    %459 = vector.shape_cast %458 : vector<1x8x128xf32> to vector<8x128xf32>
    %cst_167 = arith.constant dense<0.000000e+00> : vector<8x128xf32>
    %460 = tpu.matmul %455, %454, %cst_167 {dimension_numbers = #tpu.dot_dimension_numbers<[1], [0], [0], [1], [0, 0, 1, 1], [], []>} : vector<8x32xf32>, vector<32x128xf32>, vector<8x128xf32> -> vector<8x128xf32>
    %461 = arith.addf %459, %460 : vector<8x128xf32>
    %462 = math.tanh %461 : vector<8x128xf32>
    %463 = arith.negf %461 : vector<8x128xf32>
    %464 = math.exp %463 : vector<8x128xf32>
    %cst_168 = arith.constant 1.000000e+00 : f32
    %465 = vector.broadcast %cst_168 : f32 to vector<8x128xf32>
    %466 = arith.addf %465, %464 : vector<8x128xf32>
    %467 = arith.divf %465, %466 : vector<8x128xf32>
    %468 = arith.select %5, %462, %467 : vector<8x128xi1>, vector<8x128xf32>
    %469 = vector.extract_strided_slice %468 {offsets = [0, 0], sizes = [8, 32], strides = [1, 1]} : vector<8x128xf32> to vector<8x32xf32>
    %470 = vector.extract_strided_slice %468 {offsets = [0, 32], sizes = [8, 32], strides = [1, 1]} : vector<8x128xf32> to vector<8x32xf32>
    %471 = vector.extract_strided_slice %468 {offsets = [0, 64], sizes = [8, 32], strides = [1, 1]} : vector<8x128xf32> to vector<8x32xf32>
    %472 = vector.extract_strided_slice %468 {offsets = [0, 96], sizes = [8, 32], strides = [1, 1]} : vector<8x128xf32> to vector<8x32xf32>
    %473 = arith.mulf %470, %456 : vector<8x32xf32>
    %474 = arith.mulf %469, %471 : vector<8x32xf32>
    %475 = arith.addf %473, %474 : vector<8x32xf32>
    %476 = math.tanh %475 : vector<8x32xf32>
    %477 = arith.mulf %472, %476 : vector<8x32xf32>
    %478 = arith.index_cast %c0_i32_164 : i32 to index
    %c0_169 = arith.constant 0 : index
    %c0_170 = arith.constant 0 : index
    %479 = vector.load %arg18[%478, %c0_169, %c0_170] : memref<8x8x32xf32, #tpu.memory_space<vmem>>, vector<1x8x32xf32>
    %480 = vector.shape_cast %479 : vector<1x8x32xf32> to vector<8x32xf32>
    %481 = vector.shape_cast %477 : vector<8x32xf32> to vector<1x8x32xf32>
    tpu.vector_store %arg18[%478, %c0_169, %c0_170], %481 {strides = array<i32>} : memref<8x8x32xf32, #tpu.memory_space<vmem>>, vector<1x8x32xf32>,
    %c1_i32_171 = arith.constant 1 : i32
    %482 = arith.index_cast %c1_i32_171 : i32 to index
    %c0_172 = arith.constant 0 : index
    %c0_173 = arith.constant 0 : index
    %483 = vector.load %arg16[%482, %c0_172, %c0_173] : memref<8x8x128xf32, #tpu.memory_space<vmem>>, vector<1x8x128xf32>
    %484 = vector.shape_cast %483 : vector<1x8x128xf32> to vector<8x128xf32>
    %cst_174 = arith.constant dense<0.000000e+00> : vector<8x128xf32>
    %485 = tpu.matmul %477, %454, %cst_174 {dimension_numbers = #tpu.dot_dimension_numbers<[1], [0], [0], [1], [0, 0, 1, 1], [], []>} : vector<8x32xf32>, vector<32x128xf32>, vector<8x128xf32> -> vector<8x128xf32>
    %486 = arith.addf %484, %485 : vector<8x128xf32>
    %487 = math.tanh %486 : vector<8x128xf32>
    %488 = arith.negf %486 : vector<8x128xf32>
    %489 = math.exp %488 : vector<8x128xf32>
    %cst_175 = arith.constant 1.000000e+00 : f32
    %490 = vector.broadcast %cst_175 : f32 to vector<8x128xf32>
    %491 = arith.addf %490, %489 : vector<8x128xf32>
    %492 = arith.divf %490, %491 : vector<8x128xf32>
    %493 = arith.select %5, %487, %492 : vector<8x128xi1>, vector<8x128xf32>
    %494 = vector.extract_strided_slice %493 {offsets = [0, 0], sizes = [8, 32], strides = [1, 1]} : vector<8x128xf32> to vector<8x32xf32>
    %495 = vector.extract_strided_slice %493 {offsets = [0, 32], sizes = [8, 32], strides = [1, 1]} : vector<8x128xf32> to vector<8x32xf32>
    %496 = vector.extract_strided_slice %493 {offsets = [0, 64], sizes = [8, 32], strides = [1, 1]} : vector<8x128xf32> to vector<8x32xf32>
    %497 = vector.extract_strided_slice %493 {offsets = [0, 96], sizes = [8, 32], strides = [1, 1]} : vector<8x128xf32> to vector<8x32xf32>
    %498 = arith.mulf %495, %475 : vector<8x32xf32>
    %499 = arith.mulf %494, %496 : vector<8x32xf32>
    %500 = arith.addf %498, %499 : vector<8x32xf32>
    %501 = math.tanh %500 : vector<8x32xf32>
    %502 = arith.mulf %497, %501 : vector<8x32xf32>
    %503 = arith.index_cast %c1_i32_171 : i32 to index
    %c0_176 = arith.constant 0 : index
    %c0_177 = arith.constant 0 : index
    %504 = vector.load %arg18[%503, %c0_176, %c0_177] : memref<8x8x32xf32, #tpu.memory_space<vmem>>, vector<1x8x32xf32>
    %505 = vector.shape_cast %504 : vector<1x8x32xf32> to vector<8x32xf32>
    %506 = vector.shape_cast %502 : vector<8x32xf32> to vector<1x8x32xf32>
    tpu.vector_store %arg18[%503, %c0_176, %c0_177], %506 {strides = array<i32>} : memref<8x8x32xf32, #tpu.memory_space<vmem>>, vector<1x8x32xf32>,
    %c2_i32_178 = arith.constant 2 : i32
    %507 = arith.index_cast %c2_i32_178 : i32 to index
    %c0_179 = arith.constant 0 : index
    %c0_180 = arith.constant 0 : index
    %508 = vector.load %arg16[%507, %c0_179, %c0_180] : memref<8x8x128xf32, #tpu.memory_space<vmem>>, vector<1x8x128xf32>
    %509 = vector.shape_cast %508 : vector<1x8x128xf32> to vector<8x128xf32>
    %cst_181 = arith.constant dense<0.000000e+00> : vector<8x128xf32>
    %510 = tpu.matmul %502, %454, %cst_181 {dimension_numbers = #tpu.dot_dimension_numbers<[1], [0], [0], [1], [0, 0, 1, 1], [], []>} : vector<8x32xf32>, vector<32x128xf32>, vector<8x128xf32> -> vector<8x128xf32>
    %511 = arith.addf %509, %510 : vector<8x128xf32>
    %512 = math.tanh %511 : vector<8x128xf32>
    %513 = arith.negf %511 : vector<8x128xf32>
    %514 = math.exp %513 : vector<8x128xf32>
    %cst_182 = arith.constant 1.000000e+00 : f32
    %515 = vector.broadcast %cst_182 : f32 to vector<8x128xf32>
    %516 = arith.addf %515, %514 : vector<8x128xf32>
    %517 = arith.divf %515, %516 : vector<8x128xf32>
    %518 = arith.select %5, %512, %517 : vector<8x128xi1>, vector<8x128xf32>
    %519 = vector.extract_strided_slice %518 {offsets = [0, 0], sizes = [8, 32], strides = [1, 1]} : vector<8x128xf32> to vector<8x32xf32>
    %520 = vector.extract_strided_slice %518 {offsets = [0, 32], sizes = [8, 32], strides = [1, 1]} : vector<8x128xf32> to vector<8x32xf32>
    %521 = vector.extract_strided_slice %518 {offsets = [0, 64], sizes = [8, 32], strides = [1, 1]} : vector<8x128xf32> to vector<8x32xf32>
    %522 = vector.extract_strided_slice %518 {offsets = [0, 96], sizes = [8, 32], strides = [1, 1]} : vector<8x128xf32> to vector<8x32xf32>
    %523 = arith.mulf %520, %500 : vector<8x32xf32>
    %524 = arith.mulf %519, %521 : vector<8x32xf32>
    %525 = arith.addf %523, %524 : vector<8x32xf32>
    %526 = math.tanh %525 : vector<8x32xf32>
    %527 = arith.mulf %522, %526 : vector<8x32xf32>
    %528 = arith.index_cast %c2_i32_178 : i32 to index
    %c0_183 = arith.constant 0 : index
    %c0_184 = arith.constant 0 : index
    %529 = vector.load %arg18[%528, %c0_183, %c0_184] : memref<8x8x32xf32, #tpu.memory_space<vmem>>, vector<1x8x32xf32>
    %530 = vector.shape_cast %529 : vector<1x8x32xf32> to vector<8x32xf32>
    %531 = vector.shape_cast %527 : vector<8x32xf32> to vector<1x8x32xf32>
    tpu.vector_store %arg18[%528, %c0_183, %c0_184], %531 {strides = array<i32>} : memref<8x8x32xf32, #tpu.memory_space<vmem>>, vector<1x8x32xf32>,
    %c3_i32_185 = arith.constant 3 : i32
    %532 = arith.index_cast %c3_i32_185 : i32 to index
    %c0_186 = arith.constant 0 : index
    %c0_187 = arith.constant 0 : index
    %533 = vector.load %arg16[%532, %c0_186, %c0_187] : memref<8x8x128xf32, #tpu.memory_space<vmem>>, vector<1x8x128xf32>
    %534 = vector.shape_cast %533 : vector<1x8x128xf32> to vector<8x128xf32>
    %cst_188 = arith.constant dense<0.000000e+00> : vector<8x128xf32>
    %535 = tpu.matmul %527, %454, %cst_188 {dimension_numbers = #tpu.dot_dimension_numbers<[1], [0], [0], [1], [0, 0, 1, 1], [], []>} : vector<8x32xf32>, vector<32x128xf32>, vector<8x128xf32> -> vector<8x128xf32>
    %536 = arith.addf %534, %535 : vector<8x128xf32>
    %537 = math.tanh %536 : vector<8x128xf32>
    %538 = arith.negf %536 : vector<8x128xf32>
    %539 = math.exp %538 : vector<8x128xf32>
    %cst_189 = arith.constant 1.000000e+00 : f32
    %540 = vector.broadcast %cst_189 : f32 to vector<8x128xf32>
    %541 = arith.addf %540, %539 : vector<8x128xf32>
    %542 = arith.divf %540, %541 : vector<8x128xf32>
    %543 = arith.select %5, %537, %542 : vector<8x128xi1>, vector<8x128xf32>
    %544 = vector.extract_strided_slice %543 {offsets = [0, 0], sizes = [8, 32], strides = [1, 1]} : vector<8x128xf32> to vector<8x32xf32>
    %545 = vector.extract_strided_slice %543 {offsets = [0, 32], sizes = [8, 32], strides = [1, 1]} : vector<8x128xf32> to vector<8x32xf32>
    %546 = vector.extract_strided_slice %543 {offsets = [0, 64], sizes = [8, 32], strides = [1, 1]} : vector<8x128xf32> to vector<8x32xf32>
    %547 = vector.extract_strided_slice %543 {offsets = [0, 96], sizes = [8, 32], strides = [1, 1]} : vector<8x128xf32> to vector<8x32xf32>
    %548 = arith.mulf %545, %525 : vector<8x32xf32>
    %549 = arith.mulf %544, %546 : vector<8x32xf32>
    %550 = arith.addf %548, %549 : vector<8x32xf32>
    %551 = math.tanh %550 : vector<8x32xf32>
    %552 = arith.mulf %547, %551 : vector<8x32xf32>
    %553 = arith.index_cast %c3_i32_185 : i32 to index
    %c0_190 = arith.constant 0 : index
    %c0_191 = arith.constant 0 : index
    %554 = vector.load %arg18[%553, %c0_190, %c0_191] : memref<8x8x32xf32, #tpu.memory_space<vmem>>, vector<1x8x32xf32>
    %555 = vector.shape_cast %554 : vector<1x8x32xf32> to vector<8x32xf32>
    %556 = vector.shape_cast %552 : vector<8x32xf32> to vector<1x8x32xf32>
    tpu.vector_store %arg18[%553, %c0_190, %c0_191], %556 {strides = array<i32>} : memref<8x8x32xf32, #tpu.memory_space<vmem>>, vector<1x8x32xf32>,
    %c4_i32_192 = arith.constant 4 : i32
    %557 = arith.index_cast %c4_i32_192 : i32 to index
    %c0_193 = arith.constant 0 : index
    %c0_194 = arith.constant 0 : index
    %558 = vector.load %arg16[%557, %c0_193, %c0_194] : memref<8x8x128xf32, #tpu.memory_space<vmem>>, vector<1x8x128xf32>
    %559 = vector.shape_cast %558 : vector<1x8x128xf32> to vector<8x128xf32>
    %cst_195 = arith.constant dense<0.000000e+00> : vector<8x128xf32>
    %560 = tpu.matmul %552, %454, %cst_195 {dimension_numbers = #tpu.dot_dimension_numbers<[1], [0], [0], [1], [0, 0, 1, 1], [], []>} : vector<8x32xf32>, vector<32x128xf32>, vector<8x128xf32> -> vector<8x128xf32>
    %561 = arith.addf %559, %560 : vector<8x128xf32>
    %562 = math.tanh %561 : vector<8x128xf32>
    %563 = arith.negf %561 : vector<8x128xf32>
    %564 = math.exp %563 : vector<8x128xf32>
    %cst_196 = arith.constant 1.000000e+00 : f32
    %565 = vector.broadcast %cst_196 : f32 to vector<8x128xf32>
    %566 = arith.addf %565, %564 : vector<8x128xf32>
    %567 = arith.divf %565, %566 : vector<8x128xf32>
    %568 = arith.select %5, %562, %567 : vector<8x128xi1>, vector<8x128xf32>
    %569 = vector.extract_strided_slice %568 {offsets = [0, 0], sizes = [8, 32], strides = [1, 1]} : vector<8x128xf32> to vector<8x32xf32>
    %570 = vector.extract_strided_slice %568 {offsets = [0, 32], sizes = [8, 32], strides = [1, 1]} : vector<8x128xf32> to vector<8x32xf32>
    %571 = vector.extract_strided_slice %568 {offsets = [0, 64], sizes = [8, 32], strides = [1, 1]} : vector<8x128xf32> to vector<8x32xf32>
    %572 = vector.extract_strided_slice %568 {offsets = [0, 96], sizes = [8, 32], strides = [1, 1]} : vector<8x128xf32> to vector<8x32xf32>
    %573 = arith.mulf %570, %550 : vector<8x32xf32>
    %574 = arith.mulf %569, %571 : vector<8x32xf32>
    %575 = arith.addf %573, %574 : vector<8x32xf32>
    %576 = math.tanh %575 : vector<8x32xf32>
    %577 = arith.mulf %572, %576 : vector<8x32xf32>
    %578 = arith.index_cast %c4_i32_192 : i32 to index
    %c0_197 = arith.constant 0 : index
    %c0_198 = arith.constant 0 : index
    %579 = vector.load %arg18[%578, %c0_197, %c0_198] : memref<8x8x32xf32, #tpu.memory_space<vmem>>, vector<1x8x32xf32>
    %580 = vector.shape_cast %579 : vector<1x8x32xf32> to vector<8x32xf32>
    %581 = vector.shape_cast %577 : vector<8x32xf32> to vector<1x8x32xf32>
    tpu.vector_store %arg18[%578, %c0_197, %c0_198], %581 {strides = array<i32>} : memref<8x8x32xf32, #tpu.memory_space<vmem>>, vector<1x8x32xf32>,
    %c5_i32_199 = arith.constant 5 : i32
    %582 = arith.index_cast %c5_i32_199 : i32 to index
    %c0_200 = arith.constant 0 : index
    %c0_201 = arith.constant 0 : index
    %583 = vector.load %arg16[%582, %c0_200, %c0_201] : memref<8x8x128xf32, #tpu.memory_space<vmem>>, vector<1x8x128xf32>
    %584 = vector.shape_cast %583 : vector<1x8x128xf32> to vector<8x128xf32>
    %cst_202 = arith.constant dense<0.000000e+00> : vector<8x128xf32>
    %585 = tpu.matmul %577, %454, %cst_202 {dimension_numbers = #tpu.dot_dimension_numbers<[1], [0], [0], [1], [0, 0, 1, 1], [], []>} : vector<8x32xf32>, vector<32x128xf32>, vector<8x128xf32> -> vector<8x128xf32>
    %586 = arith.addf %584, %585 : vector<8x128xf32>
    %587 = math.tanh %586 : vector<8x128xf32>
    %588 = arith.negf %586 : vector<8x128xf32>
    %589 = math.exp %588 : vector<8x128xf32>
    %cst_203 = arith.constant 1.000000e+00 : f32
    %590 = vector.broadcast %cst_203 : f32 to vector<8x128xf32>
    %591 = arith.addf %590, %589 : vector<8x128xf32>
    %592 = arith.divf %590, %591 : vector<8x128xf32>
    %593 = arith.select %5, %587, %592 : vector<8x128xi1>, vector<8x128xf32>
    %594 = vector.extract_strided_slice %593 {offsets = [0, 0], sizes = [8, 32], strides = [1, 1]} : vector<8x128xf32> to vector<8x32xf32>
    %595 = vector.extract_strided_slice %593 {offsets = [0, 32], sizes = [8, 32], strides = [1, 1]} : vector<8x128xf32> to vector<8x32xf32>
    %596 = vector.extract_strided_slice %593 {offsets = [0, 64], sizes = [8, 32], strides = [1, 1]} : vector<8x128xf32> to vector<8x32xf32>
    %597 = vector.extract_strided_slice %593 {offsets = [0, 96], sizes = [8, 32], strides = [1, 1]} : vector<8x128xf32> to vector<8x32xf32>
    %598 = arith.mulf %595, %575 : vector<8x32xf32>
    %599 = arith.mulf %594, %596 : vector<8x32xf32>
    %600 = arith.addf %598, %599 : vector<8x32xf32>
    %601 = math.tanh %600 : vector<8x32xf32>
    %602 = arith.mulf %597, %601 : vector<8x32xf32>
    %603 = arith.index_cast %c5_i32_199 : i32 to index
    %c0_204 = arith.constant 0 : index
    %c0_205 = arith.constant 0 : index
    %604 = vector.load %arg18[%603, %c0_204, %c0_205] : memref<8x8x32xf32, #tpu.memory_space<vmem>>, vector<1x8x32xf32>
    %605 = vector.shape_cast %604 : vector<1x8x32xf32> to vector<8x32xf32>
    %606 = vector.shape_cast %602 : vector<8x32xf32> to vector<1x8x32xf32>
    tpu.vector_store %arg18[%603, %c0_204, %c0_205], %606 {strides = array<i32>} : memref<8x8x32xf32, #tpu.memory_space<vmem>>, vector<1x8x32xf32>,
    %c6_i32_206 = arith.constant 6 : i32
    %607 = arith.index_cast %c6_i32_206 : i32 to index
    %c0_207 = arith.constant 0 : index
    %c0_208 = arith.constant 0 : index
    %608 = vector.load %arg16[%607, %c0_207, %c0_208] : memref<8x8x128xf32, #tpu.memory_space<vmem>>, vector<1x8x128xf32>
    %609 = vector.shape_cast %608 : vector<1x8x128xf32> to vector<8x128xf32>
    %cst_209 = arith.constant dense<0.000000e+00> : vector<8x128xf32>
    %610 = tpu.matmul %602, %454, %cst_209 {dimension_numbers = #tpu.dot_dimension_numbers<[1], [0], [0], [1], [0, 0, 1, 1], [], []>} : vector<8x32xf32>, vector<32x128xf32>, vector<8x128xf32> -> vector<8x128xf32>
    %611 = arith.addf %609, %610 : vector<8x128xf32>
    %612 = math.tanh %611 : vector<8x128xf32>
    %613 = arith.negf %611 : vector<8x128xf32>
    %614 = math.exp %613 : vector<8x128xf32>
    %cst_210 = arith.constant 1.000000e+00 : f32
    %615 = vector.broadcast %cst_210 : f32 to vector<8x128xf32>
    %616 = arith.addf %615, %614 : vector<8x128xf32>
    %617 = arith.divf %615, %616 : vector<8x128xf32>
    %618 = arith.select %5, %612, %617 : vector<8x128xi1>, vector<8x128xf32>
    %619 = vector.extract_strided_slice %618 {offsets = [0, 0], sizes = [8, 32], strides = [1, 1]} : vector<8x128xf32> to vector<8x32xf32>
    %620 = vector.extract_strided_slice %618 {offsets = [0, 32], sizes = [8, 32], strides = [1, 1]} : vector<8x128xf32> to vector<8x32xf32>
    %621 = vector.extract_strided_slice %618 {offsets = [0, 64], sizes = [8, 32], strides = [1, 1]} : vector<8x128xf32> to vector<8x32xf32>
    %622 = vector.extract_strided_slice %618 {offsets = [0, 96], sizes = [8, 32], strides = [1, 1]} : vector<8x128xf32> to vector<8x32xf32>
    %623 = arith.mulf %620, %600 : vector<8x32xf32>
    %624 = arith.mulf %619, %621 : vector<8x32xf32>
    %625 = arith.addf %623, %624 : vector<8x32xf32>
    %626 = math.tanh %625 : vector<8x32xf32>
    %627 = arith.mulf %622, %626 : vector<8x32xf32>
    %628 = arith.index_cast %c6_i32_206 : i32 to index
    %c0_211 = arith.constant 0 : index
    %c0_212 = arith.constant 0 : index
    %629 = vector.load %arg18[%628, %c0_211, %c0_212] : memref<8x8x32xf32, #tpu.memory_space<vmem>>, vector<1x8x32xf32>
    %630 = vector.shape_cast %629 : vector<1x8x32xf32> to vector<8x32xf32>
    %631 = vector.shape_cast %627 : vector<8x32xf32> to vector<1x8x32xf32>
    tpu.vector_store %arg18[%628, %c0_211, %c0_212], %631 {strides = array<i32>} : memref<8x8x32xf32, #tpu.memory_space<vmem>>, vector<1x8x32xf32>,
    %c7_i32_213 = arith.constant 7 : i32
    %632 = arith.index_cast %c7_i32_213 : i32 to index
    %c0_214 = arith.constant 0 : index
    %c0_215 = arith.constant 0 : index
    %633 = vector.load %arg16[%632, %c0_214, %c0_215] : memref<8x8x128xf32, #tpu.memory_space<vmem>>, vector<1x8x128xf32>
    %634 = vector.shape_cast %633 : vector<1x8x128xf32> to vector<8x128xf32>
    %cst_216 = arith.constant dense<0.000000e+00> : vector<8x128xf32>
    %635 = tpu.matmul %627, %454, %cst_216 {dimension_numbers = #tpu.dot_dimension_numbers<[1], [0], [0], [1], [0, 0, 1, 1], [], []>} : vector<8x32xf32>, vector<32x128xf32>, vector<8x128xf32> -> vector<8x128xf32>
    %636 = arith.addf %634, %635 : vector<8x128xf32>
    %637 = math.tanh %636 : vector<8x128xf32>
    %638 = arith.negf %636 : vector<8x128xf32>
    %639 = math.exp %638 : vector<8x128xf32>
    %cst_217 = arith.constant 1.000000e+00 : f32
    %640 = vector.broadcast %cst_217 : f32 to vector<8x128xf32>
    %641 = arith.addf %640, %639 : vector<8x128xf32>
    %642 = arith.divf %640, %641 : vector<8x128xf32>
    %643 = arith.select %5, %637, %642 : vector<8x128xi1>, vector<8x128xf32>
    %644 = vector.extract_strided_slice %643 {offsets = [0, 0], sizes = [8, 32], strides = [1, 1]} : vector<8x128xf32> to vector<8x32xf32>
    %645 = vector.extract_strided_slice %643 {offsets = [0, 32], sizes = [8, 32], strides = [1, 1]} : vector<8x128xf32> to vector<8x32xf32>
    %646 = vector.extract_strided_slice %643 {offsets = [0, 64], sizes = [8, 32], strides = [1, 1]} : vector<8x128xf32> to vector<8x32xf32>
    %647 = vector.extract_strided_slice %643 {offsets = [0, 96], sizes = [8, 32], strides = [1, 1]} : vector<8x128xf32> to vector<8x32xf32>
    %648 = arith.mulf %645, %625 : vector<8x32xf32>
    %649 = arith.mulf %644, %646 : vector<8x32xf32>
    %650 = arith.addf %648, %649 : vector<8x32xf32>
    %651 = math.tanh %650 : vector<8x32xf32>
    %652 = arith.mulf %647, %651 : vector<8x32xf32>
    %653 = arith.index_cast %c7_i32_213 : i32 to index
    %c0_218 = arith.constant 0 : index
    %c0_219 = arith.constant 0 : index
    %654 = vector.load %arg18[%653, %c0_218, %c0_219] : memref<8x8x32xf32, #tpu.memory_space<vmem>>, vector<1x8x32xf32>
    %655 = vector.shape_cast %654 : vector<1x8x32xf32> to vector<8x32xf32>
    %656 = vector.shape_cast %652 : vector<8x32xf32> to vector<1x8x32xf32>
    tpu.vector_store %arg18[%653, %c0_218, %c0_219], %656 {strides = array<i32>} : memref<8x8x32xf32, #tpu.memory_space<vmem>>, vector<1x8x32xf32>,
    %c8_i32_220 = arith.constant 8 : i32
    %c0_221 = arith.constant 0 : index
    %c0_222 = arith.constant 0 : index
    %657 = vector.load %arg11[%c0_221, %c0_222] : memref<32x128xf32, #tpu.memory_space<vmem>>, vector<32x128xf32>
    %cst_223 = arith.constant 0.000000e+00 : f32
    %658 = vector.broadcast %cst_223 : f32 to vector<8x32xf32>
    %cst_224 = arith.constant 0.000000e+00 : f32
    %659 = vector.broadcast %cst_224 : f32 to vector<8x32xf32>
    %c0_i32_225 = arith.constant 0 : i32
    %c7_i32_226 = arith.constant 7 : i32
    %660 = arith.subi %c7_i32_226, %c0_i32_225 : i32
    %661 = arith.index_cast %660 : i32 to index
    %c0_227 = arith.constant 0 : index
    %c0_228 = arith.constant 0 : index
    %662 = vector.load %arg17[%661, %c0_227, %c0_228] : memref<8x8x128xf32, #tpu.memory_space<vmem>>, vector<1x8x128xf32>
    %663 = vector.shape_cast %662 : vector<1x8x128xf32> to vector<8x128xf32>
    %cst_229 = arith.constant dense<0.000000e+00> : vector<8x128xf32>
    %664 = tpu.matmul %658, %657, %cst_229 {dimension_numbers = #tpu.dot_dimension_numbers<[1], [0], [0], [1], [0, 0, 1, 1], [], []>} : vector<8x32xf32>, vector<32x128xf32>, vector<8x128xf32> -> vector<8x128xf32>
    %665 = arith.addf %663, %664 : vector<8x128xf32>
    %666 = math.tanh %665 : vector<8x128xf32>
    %667 = arith.negf %665 : vector<8x128xf32>
    %668 = math.exp %667 : vector<8x128xf32>
    %cst_230 = arith.constant 1.000000e+00 : f32
    %669 = vector.broadcast %cst_230 : f32 to vector<8x128xf32>
    %670 = arith.addf %669, %668 : vector<8x128xf32>
    %671 = arith.divf %669, %670 : vector<8x128xf32>
    %672 = arith.select %5, %666, %671 : vector<8x128xi1>, vector<8x128xf32>
    %673 = vector.extract_strided_slice %672 {offsets = [0, 0], sizes = [8, 32], strides = [1, 1]} : vector<8x128xf32> to vector<8x32xf32>
    %674 = vector.extract_strided_slice %672 {offsets = [0, 32], sizes = [8, 32], strides = [1, 1]} : vector<8x128xf32> to vector<8x32xf32>
    %675 = vector.extract_strided_slice %672 {offsets = [0, 64], sizes = [8, 32], strides = [1, 1]} : vector<8x128xf32> to vector<8x32xf32>
    %676 = vector.extract_strided_slice %672 {offsets = [0, 96], sizes = [8, 32], strides = [1, 1]} : vector<8x128xf32> to vector<8x32xf32>
    %677 = arith.mulf %674, %659 : vector<8x32xf32>
    %678 = arith.mulf %673, %675 : vector<8x32xf32>
    %679 = arith.addf %677, %678 : vector<8x32xf32>
    %680 = math.tanh %679 : vector<8x32xf32>
    %681 = arith.mulf %676, %680 : vector<8x32xf32>
    %682 = arith.index_cast %660 : i32 to index
    %c0_231 = arith.constant 0 : index
    %c0_232 = arith.constant 0 : index
    %683 = vector.load %arg19[%682, %c0_231, %c0_232] : memref<8x8x32xf32, #tpu.memory_space<vmem>>, vector<1x8x32xf32>
    %684 = vector.shape_cast %683 : vector<1x8x32xf32> to vector<8x32xf32>
    %685 = vector.shape_cast %681 : vector<8x32xf32> to vector<1x8x32xf32>
    tpu.vector_store %arg19[%682, %c0_231, %c0_232], %685 {strides = array<i32>} : memref<8x8x32xf32, #tpu.memory_space<vmem>>, vector<1x8x32xf32>,
    %c1_i32_233 = arith.constant 1 : i32
    %c7_i32_234 = arith.constant 7 : i32
    %686 = arith.subi %c7_i32_234, %c1_i32_233 : i32
    %687 = arith.index_cast %686 : i32 to index
    %c0_235 = arith.constant 0 : index
    %c0_236 = arith.constant 0 : index
    %688 = vector.load %arg17[%687, %c0_235, %c0_236] : memref<8x8x128xf32, #tpu.memory_space<vmem>>, vector<1x8x128xf32>
    %689 = vector.shape_cast %688 : vector<1x8x128xf32> to vector<8x128xf32>
    %cst_237 = arith.constant dense<0.000000e+00> : vector<8x128xf32>
    %690 = tpu.matmul %681, %657, %cst_237 {dimension_numbers = #tpu.dot_dimension_numbers<[1], [0], [0], [1], [0, 0, 1, 1], [], []>} : vector<8x32xf32>, vector<32x128xf32>, vector<8x128xf32> -> vector<8x128xf32>
    %691 = arith.addf %689, %690 : vector<8x128xf32>
    %692 = math.tanh %691 : vector<8x128xf32>
    %693 = arith.negf %691 : vector<8x128xf32>
    %694 = math.exp %693 : vector<8x128xf32>
    %cst_238 = arith.constant 1.000000e+00 : f32
    %695 = vector.broadcast %cst_238 : f32 to vector<8x128xf32>
    %696 = arith.addf %695, %694 : vector<8x128xf32>
    %697 = arith.divf %695, %696 : vector<8x128xf32>
    %698 = arith.select %5, %692, %697 : vector<8x128xi1>, vector<8x128xf32>
    %699 = vector.extract_strided_slice %698 {offsets = [0, 0], sizes = [8, 32], strides = [1, 1]} : vector<8x128xf32> to vector<8x32xf32>
    %700 = vector.extract_strided_slice %698 {offsets = [0, 32], sizes = [8, 32], strides = [1, 1]} : vector<8x128xf32> to vector<8x32xf32>
    %701 = vector.extract_strided_slice %698 {offsets = [0, 64], sizes = [8, 32], strides = [1, 1]} : vector<8x128xf32> to vector<8x32xf32>
    %702 = vector.extract_strided_slice %698 {offsets = [0, 96], sizes = [8, 32], strides = [1, 1]} : vector<8x128xf32> to vector<8x32xf32>
    %703 = arith.mulf %700, %679 : vector<8x32xf32>
    %704 = arith.mulf %699, %701 : vector<8x32xf32>
    %705 = arith.addf %703, %704 : vector<8x32xf32>
    %706 = math.tanh %705 : vector<8x32xf32>
    %707 = arith.mulf %702, %706 : vector<8x32xf32>
    %708 = arith.index_cast %686 : i32 to index
    %c0_239 = arith.constant 0 : index
    %c0_240 = arith.constant 0 : index
    %709 = vector.load %arg19[%708, %c0_239, %c0_240] : memref<8x8x32xf32, #tpu.memory_space<vmem>>, vector<1x8x32xf32>
    %710 = vector.shape_cast %709 : vector<1x8x32xf32> to vector<8x32xf32>
    %711 = vector.shape_cast %707 : vector<8x32xf32> to vector<1x8x32xf32>
    tpu.vector_store %arg19[%708, %c0_239, %c0_240], %711 {strides = array<i32>} : memref<8x8x32xf32, #tpu.memory_space<vmem>>, vector<1x8x32xf32>,
    %c2_i32_241 = arith.constant 2 : i32
    %c7_i32_242 = arith.constant 7 : i32
    %712 = arith.subi %c7_i32_242, %c2_i32_241 : i32
    %713 = arith.index_cast %712 : i32 to index
    %c0_243 = arith.constant 0 : index
    %c0_244 = arith.constant 0 : index
    %714 = vector.load %arg17[%713, %c0_243, %c0_244] : memref<8x8x128xf32, #tpu.memory_space<vmem>>, vector<1x8x128xf32>
    %715 = vector.shape_cast %714 : vector<1x8x128xf32> to vector<8x128xf32>
    %cst_245 = arith.constant dense<0.000000e+00> : vector<8x128xf32>
    %716 = tpu.matmul %707, %657, %cst_245 {dimension_numbers = #tpu.dot_dimension_numbers<[1], [0], [0], [1], [0, 0, 1, 1], [], []>} : vector<8x32xf32>, vector<32x128xf32>, vector<8x128xf32> -> vector<8x128xf32>
    %717 = arith.addf %715, %716 : vector<8x128xf32>
    %718 = math.tanh %717 : vector<8x128xf32>
    %719 = arith.negf %717 : vector<8x128xf32>
    %720 = math.exp %719 : vector<8x128xf32>
    %cst_246 = arith.constant 1.000000e+00 : f32
    %721 = vector.broadcast %cst_246 : f32 to vector<8x128xf32>
    %722 = arith.addf %721, %720 : vector<8x128xf32>
    %723 = arith.divf %721, %722 : vector<8x128xf32>
    %724 = arith.select %5, %718, %723 : vector<8x128xi1>, vector<8x128xf32>
    %725 = vector.extract_strided_slice %724 {offsets = [0, 0], sizes = [8, 32], strides = [1, 1]} : vector<8x128xf32> to vector<8x32xf32>
    %726 = vector.extract_strided_slice %724 {offsets = [0, 32], sizes = [8, 32], strides = [1, 1]} : vector<8x128xf32> to vector<8x32xf32>
    %727 = vector.extract_strided_slice %724 {offsets = [0, 64], sizes = [8, 32], strides = [1, 1]} : vector<8x128xf32> to vector<8x32xf32>
    %728 = vector.extract_strided_slice %724 {offsets = [0, 96], sizes = [8, 32], strides = [1, 1]} : vector<8x128xf32> to vector<8x32xf32>
    %729 = arith.mulf %726, %705 : vector<8x32xf32>
    %730 = arith.mulf %725, %727 : vector<8x32xf32>
    %731 = arith.addf %729, %730 : vector<8x32xf32>
    %732 = math.tanh %731 : vector<8x32xf32>
    %733 = arith.mulf %728, %732 : vector<8x32xf32>
    %734 = arith.index_cast %712 : i32 to index
    %c0_247 = arith.constant 0 : index
    %c0_248 = arith.constant 0 : index
    %735 = vector.load %arg19[%734, %c0_247, %c0_248] : memref<8x8x32xf32, #tpu.memory_space<vmem>>, vector<1x8x32xf32>
    %736 = vector.shape_cast %735 : vector<1x8x32xf32> to vector<8x32xf32>
    %737 = vector.shape_cast %733 : vector<8x32xf32> to vector<1x8x32xf32>
    tpu.vector_store %arg19[%734, %c0_247, %c0_248], %737 {strides = array<i32>} : memref<8x8x32xf32, #tpu.memory_space<vmem>>, vector<1x8x32xf32>,
    %c3_i32_249 = arith.constant 3 : i32
    %c7_i32_250 = arith.constant 7 : i32
    %738 = arith.subi %c7_i32_250, %c3_i32_249 : i32
    %739 = arith.index_cast %738 : i32 to index
    %c0_251 = arith.constant 0 : index
    %c0_252 = arith.constant 0 : index
    %740 = vector.load %arg17[%739, %c0_251, %c0_252] : memref<8x8x128xf32, #tpu.memory_space<vmem>>, vector<1x8x128xf32>
    %741 = vector.shape_cast %740 : vector<1x8x128xf32> to vector<8x128xf32>
    %cst_253 = arith.constant dense<0.000000e+00> : vector<8x128xf32>
    %742 = tpu.matmul %733, %657, %cst_253 {dimension_numbers = #tpu.dot_dimension_numbers<[1], [0], [0], [1], [0, 0, 1, 1], [], []>} : vector<8x32xf32>, vector<32x128xf32>, vector<8x128xf32> -> vector<8x128xf32>
    %743 = arith.addf %741, %742 : vector<8x128xf32>
    %744 = math.tanh %743 : vector<8x128xf32>
    %745 = arith.negf %743 : vector<8x128xf32>
    %746 = math.exp %745 : vector<8x128xf32>
    %cst_254 = arith.constant 1.000000e+00 : f32
    %747 = vector.broadcast %cst_254 : f32 to vector<8x128xf32>
    %748 = arith.addf %747, %746 : vector<8x128xf32>
    %749 = arith.divf %747, %748 : vector<8x128xf32>
    %750 = arith.select %5, %744, %749 : vector<8x128xi1>, vector<8x128xf32>
    %751 = vector.extract_strided_slice %750 {offsets = [0, 0], sizes = [8, 32], strides = [1, 1]} : vector<8x128xf32> to vector<8x32xf32>
    %752 = vector.extract_strided_slice %750 {offsets = [0, 32], sizes = [8, 32], strides = [1, 1]} : vector<8x128xf32> to vector<8x32xf32>
    %753 = vector.extract_strided_slice %750 {offsets = [0, 64], sizes = [8, 32], strides = [1, 1]} : vector<8x128xf32> to vector<8x32xf32>
    %754 = vector.extract_strided_slice %750 {offsets = [0, 96], sizes = [8, 32], strides = [1, 1]} : vector<8x128xf32> to vector<8x32xf32>
    %755 = arith.mulf %752, %731 : vector<8x32xf32>
    %756 = arith.mulf %751, %753 : vector<8x32xf32>
    %757 = arith.addf %755, %756 : vector<8x32xf32>
    %758 = math.tanh %757 : vector<8x32xf32>
    %759 = arith.mulf %754, %758 : vector<8x32xf32>
    %760 = arith.index_cast %738 : i32 to index
    %c0_255 = arith.constant 0 : index
    %c0_256 = arith.constant 0 : index
    %761 = vector.load %arg19[%760, %c0_255, %c0_256] : memref<8x8x32xf32, #tpu.memory_space<vmem>>, vector<1x8x32xf32>
    %762 = vector.shape_cast %761 : vector<1x8x32xf32> to vector<8x32xf32>
    %763 = vector.shape_cast %759 : vector<8x32xf32> to vector<1x8x32xf32>
    tpu.vector_store %arg19[%760, %c0_255, %c0_256], %763 {strides = array<i32>} : memref<8x8x32xf32, #tpu.memory_space<vmem>>, vector<1x8x32xf32>,
    %c4_i32_257 = arith.constant 4 : i32
    %c7_i32_258 = arith.constant 7 : i32
    %764 = arith.subi %c7_i32_258, %c4_i32_257 : i32
    %765 = arith.index_cast %764 : i32 to index
    %c0_259 = arith.constant 0 : index
    %c0_260 = arith.constant 0 : index
    %766 = vector.load %arg17[%765, %c0_259, %c0_260] : memref<8x8x128xf32, #tpu.memory_space<vmem>>, vector<1x8x128xf32>
    %767 = vector.shape_cast %766 : vector<1x8x128xf32> to vector<8x128xf32>
    %cst_261 = arith.constant dense<0.000000e+00> : vector<8x128xf32>
    %768 = tpu.matmul %759, %657, %cst_261 {dimension_numbers = #tpu.dot_dimension_numbers<[1], [0], [0], [1], [0, 0, 1, 1], [], []>} : vector<8x32xf32>, vector<32x128xf32>, vector<8x128xf32> -> vector<8x128xf32>
    %769 = arith.addf %767, %768 : vector<8x128xf32>
    %770 = math.tanh %769 : vector<8x128xf32>
    %771 = arith.negf %769 : vector<8x128xf32>
    %772 = math.exp %771 : vector<8x128xf32>
    %cst_262 = arith.constant 1.000000e+00 : f32
    %773 = vector.broadcast %cst_262 : f32 to vector<8x128xf32>
    %774 = arith.addf %773, %772 : vector<8x128xf32>
    %775 = arith.divf %773, %774 : vector<8x128xf32>
    %776 = arith.select %5, %770, %775 : vector<8x128xi1>, vector<8x128xf32>
    %777 = vector.extract_strided_slice %776 {offsets = [0, 0], sizes = [8, 32], strides = [1, 1]} : vector<8x128xf32> to vector<8x32xf32>
    %778 = vector.extract_strided_slice %776 {offsets = [0, 32], sizes = [8, 32], strides = [1, 1]} : vector<8x128xf32> to vector<8x32xf32>
    %779 = vector.extract_strided_slice %776 {offsets = [0, 64], sizes = [8, 32], strides = [1, 1]} : vector<8x128xf32> to vector<8x32xf32>
    %780 = vector.extract_strided_slice %776 {offsets = [0, 96], sizes = [8, 32], strides = [1, 1]} : vector<8x128xf32> to vector<8x32xf32>
    %781 = arith.mulf %778, %757 : vector<8x32xf32>
    %782 = arith.mulf %777, %779 : vector<8x32xf32>
    %783 = arith.addf %781, %782 : vector<8x32xf32>
    %784 = math.tanh %783 : vector<8x32xf32>
    %785 = arith.mulf %780, %784 : vector<8x32xf32>
    %786 = arith.index_cast %764 : i32 to index
    %c0_263 = arith.constant 0 : index
    %c0_264 = arith.constant 0 : index
    %787 = vector.load %arg19[%786, %c0_263, %c0_264] : memref<8x8x32xf32, #tpu.memory_space<vmem>>, vector<1x8x32xf32>
    %788 = vector.shape_cast %787 : vector<1x8x32xf32> to vector<8x32xf32>
    %789 = vector.shape_cast %785 : vector<8x32xf32> to vector<1x8x32xf32>
    tpu.vector_store %arg19[%786, %c0_263, %c0_264], %789 {strides = array<i32>} : memref<8x8x32xf32, #tpu.memory_space<vmem>>, vector<1x8x32xf32>,
    %c5_i32_265 = arith.constant 5 : i32
    %c7_i32_266 = arith.constant 7 : i32
    %790 = arith.subi %c7_i32_266, %c5_i32_265 : i32
    %791 = arith.index_cast %790 : i32 to index
    %c0_267 = arith.constant 0 : index
    %c0_268 = arith.constant 0 : index
    %792 = vector.load %arg17[%791, %c0_267, %c0_268] : memref<8x8x128xf32, #tpu.memory_space<vmem>>, vector<1x8x128xf32>
    %793 = vector.shape_cast %792 : vector<1x8x128xf32> to vector<8x128xf32>
    %cst_269 = arith.constant dense<0.000000e+00> : vector<8x128xf32>
    %794 = tpu.matmul %785, %657, %cst_269 {dimension_numbers = #tpu.dot_dimension_numbers<[1], [0], [0], [1], [0, 0, 1, 1], [], []>} : vector<8x32xf32>, vector<32x128xf32>, vector<8x128xf32> -> vector<8x128xf32>
    %795 = arith.addf %793, %794 : vector<8x128xf32>
    %796 = math.tanh %795 : vector<8x128xf32>
    %797 = arith.negf %795 : vector<8x128xf32>
    %798 = math.exp %797 : vector<8x128xf32>
    %cst_270 = arith.constant 1.000000e+00 : f32
    %799 = vector.broadcast %cst_270 : f32 to vector<8x128xf32>
    %800 = arith.addf %799, %798 : vector<8x128xf32>
    %801 = arith.divf %799, %800 : vector<8x128xf32>
    %802 = arith.select %5, %796, %801 : vector<8x128xi1>, vector<8x128xf32>
    %803 = vector.extract_strided_slice %802 {offsets = [0, 0], sizes = [8, 32], strides = [1, 1]} : vector<8x128xf32> to vector<8x32xf32>
    %804 = vector.extract_strided_slice %802 {offsets = [0, 32], sizes = [8, 32], strides = [1, 1]} : vector<8x128xf32> to vector<8x32xf32>
    %805 = vector.extract_strided_slice %802 {offsets = [0, 64], sizes = [8, 32], strides = [1, 1]} : vector<8x128xf32> to vector<8x32xf32>
    %806 = vector.extract_strided_slice %802 {offsets = [0, 96], sizes = [8, 32], strides = [1, 1]} : vector<8x128xf32> to vector<8x32xf32>
    %807 = arith.mulf %804, %783 : vector<8x32xf32>
    %808 = arith.mulf %803, %805 : vector<8x32xf32>
    %809 = arith.addf %807, %808 : vector<8x32xf32>
    %810 = math.tanh %809 : vector<8x32xf32>
    %811 = arith.mulf %806, %810 : vector<8x32xf32>
    %812 = arith.index_cast %790 : i32 to index
    %c0_271 = arith.constant 0 : index
    %c0_272 = arith.constant 0 : index
    %813 = vector.load %arg19[%812, %c0_271, %c0_272] : memref<8x8x32xf32, #tpu.memory_space<vmem>>, vector<1x8x32xf32>
    %814 = vector.shape_cast %813 : vector<1x8x32xf32> to vector<8x32xf32>
    %815 = vector.shape_cast %811 : vector<8x32xf32> to vector<1x8x32xf32>
    tpu.vector_store %arg19[%812, %c0_271, %c0_272], %815 {strides = array<i32>} : memref<8x8x32xf32, #tpu.memory_space<vmem>>, vector<1x8x32xf32>,
    %c6_i32_273 = arith.constant 6 : i32
    %c7_i32_274 = arith.constant 7 : i32
    %816 = arith.subi %c7_i32_274, %c6_i32_273 : i32
    %817 = arith.index_cast %816 : i32 to index
    %c0_275 = arith.constant 0 : index
    %c0_276 = arith.constant 0 : index
    %818 = vector.load %arg17[%817, %c0_275, %c0_276] : memref<8x8x128xf32, #tpu.memory_space<vmem>>, vector<1x8x128xf32>
    %819 = vector.shape_cast %818 : vector<1x8x128xf32> to vector<8x128xf32>
    %cst_277 = arith.constant dense<0.000000e+00> : vector<8x128xf32>
    %820 = tpu.matmul %811, %657, %cst_277 {dimension_numbers = #tpu.dot_dimension_numbers<[1], [0], [0], [1], [0, 0, 1, 1], [], []>} : vector<8x32xf32>, vector<32x128xf32>, vector<8x128xf32> -> vector<8x128xf32>
    %821 = arith.addf %819, %820 : vector<8x128xf32>
    %822 = math.tanh %821 : vector<8x128xf32>
    %823 = arith.negf %821 : vector<8x128xf32>
    %824 = math.exp %823 : vector<8x128xf32>
    %cst_278 = arith.constant 1.000000e+00 : f32
    %825 = vector.broadcast %cst_278 : f32 to vector<8x128xf32>
    %826 = arith.addf %825, %824 : vector<8x128xf32>
    %827 = arith.divf %825, %826 : vector<8x128xf32>
    %828 = arith.select %5, %822, %827 : vector<8x128xi1>, vector<8x128xf32>
    %829 = vector.extract_strided_slice %828 {offsets = [0, 0], sizes = [8, 32], strides = [1, 1]} : vector<8x128xf32> to vector<8x32xf32>
    %830 = vector.extract_strided_slice %828 {offsets = [0, 32], sizes = [8, 32], strides = [1, 1]} : vector<8x128xf32> to vector<8x32xf32>
    %831 = vector.extract_strided_slice %828 {offsets = [0, 64], sizes = [8, 32], strides = [1, 1]} : vector<8x128xf32> to vector<8x32xf32>
    %832 = vector.extract_strided_slice %828 {offsets = [0, 96], sizes = [8, 32], strides = [1, 1]} : vector<8x128xf32> to vector<8x32xf32>
    %833 = arith.mulf %830, %809 : vector<8x32xf32>
    %834 = arith.mulf %829, %831 : vector<8x32xf32>
    %835 = arith.addf %833, %834 : vector<8x32xf32>
    %836 = math.tanh %835 : vector<8x32xf32>
    %837 = arith.mulf %832, %836 : vector<8x32xf32>
    %838 = arith.index_cast %816 : i32 to index
    %c0_279 = arith.constant 0 : index
    %c0_280 = arith.constant 0 : index
    %839 = vector.load %arg19[%838, %c0_279, %c0_280] : memref<8x8x32xf32, #tpu.memory_space<vmem>>, vector<1x8x32xf32>
    %840 = vector.shape_cast %839 : vector<1x8x32xf32> to vector<8x32xf32>
    %841 = vector.shape_cast %837 : vector<8x32xf32> to vector<1x8x32xf32>
    tpu.vector_store %arg19[%838, %c0_279, %c0_280], %841 {strides = array<i32>} : memref<8x8x32xf32, #tpu.memory_space<vmem>>, vector<1x8x32xf32>,
    %c7_i32_281 = arith.constant 7 : i32
    %c7_i32_282 = arith.constant 7 : i32
    %842 = arith.subi %c7_i32_282, %c7_i32_281 : i32
    %843 = arith.index_cast %842 : i32 to index
    %c0_283 = arith.constant 0 : index
    %c0_284 = arith.constant 0 : index
    %844 = vector.load %arg17[%843, %c0_283, %c0_284] : memref<8x8x128xf32, #tpu.memory_space<vmem>>, vector<1x8x128xf32>
    %845 = vector.shape_cast %844 : vector<1x8x128xf32> to vector<8x128xf32>
    %cst_285 = arith.constant dense<0.000000e+00> : vector<8x128xf32>
    %846 = tpu.matmul %837, %657, %cst_285 {dimension_numbers = #tpu.dot_dimension_numbers<[1], [0], [0], [1], [0, 0, 1, 1], [], []>} : vector<8x32xf32>, vector<32x128xf32>, vector<8x128xf32> -> vector<8x128xf32>
    %847 = arith.addf %845, %846 : vector<8x128xf32>
    %848 = math.tanh %847 : vector<8x128xf32>
    %849 = arith.negf %847 : vector<8x128xf32>
    %850 = math.exp %849 : vector<8x128xf32>
    %cst_286 = arith.constant 1.000000e+00 : f32
    %851 = vector.broadcast %cst_286 : f32 to vector<8x128xf32>
    %852 = arith.addf %851, %850 : vector<8x128xf32>
    %853 = arith.divf %851, %852 : vector<8x128xf32>
    %854 = arith.select %5, %848, %853 : vector<8x128xi1>, vector<8x128xf32>
    %855 = vector.extract_strided_slice %854 {offsets = [0, 0], sizes = [8, 32], strides = [1, 1]} : vector<8x128xf32> to vector<8x32xf32>
    %856 = vector.extract_strided_slice %854 {offsets = [0, 32], sizes = [8, 32], strides = [1, 1]} : vector<8x128xf32> to vector<8x32xf32>
    %857 = vector.extract_strided_slice %854 {offsets = [0, 64], sizes = [8, 32], strides = [1, 1]} : vector<8x128xf32> to vector<8x32xf32>
    %858 = vector.extract_strided_slice %854 {offsets = [0, 96], sizes = [8, 32], strides = [1, 1]} : vector<8x128xf32> to vector<8x32xf32>
    %859 = arith.mulf %856, %835 : vector<8x32xf32>
    %860 = arith.mulf %855, %857 : vector<8x32xf32>
    %861 = arith.addf %859, %860 : vector<8x32xf32>
    %862 = math.tanh %861 : vector<8x32xf32>
    %863 = arith.mulf %858, %862 : vector<8x32xf32>
    %864 = arith.index_cast %842 : i32 to index
    %c0_287 = arith.constant 0 : index
    %c0_288 = arith.constant 0 : index
    %865 = vector.load %arg19[%864, %c0_287, %c0_288] : memref<8x8x32xf32, #tpu.memory_space<vmem>>, vector<1x8x32xf32>
    %866 = vector.shape_cast %865 : vector<1x8x32xf32> to vector<8x32xf32>
    %867 = vector.shape_cast %863 : vector<8x32xf32> to vector<1x8x32xf32>
    tpu.vector_store %arg19[%864, %c0_287, %c0_288], %867 {strides = array<i32>} : memref<8x8x32xf32, #tpu.memory_space<vmem>>, vector<1x8x32xf32>,
    %c8_i32_289 = arith.constant 8 : i32
    %868 = tpu.concatenate %652, %863 in 1 : vector<8x32xf32>, vector<8x32xf32> -> vector<8x64xf32>
    %c0_290 = arith.constant 0 : index
    %c0_291 = arith.constant 0 : index
    %869 = vector.load %arg13[%c0_290, %c0_291] : memref<64x2xf32, #tpu.memory_space<vmem>>, vector<64x2xf32>
    %cst_292 = arith.constant dense<0.000000e+00> : vector<8x2xf32>
    %870 = tpu.matmul %868, %869, %cst_292 {dimension_numbers = #tpu.dot_dimension_numbers<[1], [0], [0], [1], [0, 0, 1, 1], [], []>} : vector<8x64xf32>, vector<64x2xf32>, vector<8x2xf32> -> vector<8x2xf32>
    %c0_293 = arith.constant 0 : index
    %c0_294 = arith.constant 0 : index
    %871 = vector.load %arg14[%c0_293, %c0_294] : memref<1x2xf32, #tpu.memory_space<vmem>>, vector<1x2xf32>
    %872 = vector.broadcast %871 : vector<1x2xf32> to vector<8x2xf32>
    %873 = arith.addf %870, %872 : vector<8x2xf32>
    %c0_295 = arith.constant 0 : index
    %c0_296 = arith.constant 0 : index
    %874 = vector.load %arg15[%c0_295, %c0_296] : memref<8x2xf32, #tpu.memory_space<vmem>>, vector<8x2xf32>
    tpu.vector_store %arg15[%c0_295, %c0_296], %873 {strides = array<i32>} : memref<8x2xf32, #tpu.memory_space<vmem>>, vector<8x2xf32>,
    return
  }
}

</mosaic_0001>

<llo_original>
// kernel: lstm_sentiment_forward.1
$region0: #{lstm_sentiment_forward.1}
  #allocation0 [shape = 'u32[]', space=smem, size = 0x4, offset = 0x4, fixed_abs, tag = 'smem constant byte address 0x4 - core index']
  #allocation1 [shape = 'u32[144,128]{1,0:T(1,128)}', space=vmem, size = 0x12000, scoped, tag = 'internal scratch']
  #allocation2 [shape = 'f32[8,8,128]{2,1,0:T(8,128)}', space=vmem, size = 0x8000, scoped, tag = 'scratch operand']
  #allocation3 [shape = 'f32[8,8,128]{2,1,0:T(8,128)}', space=vmem, size = 0x8000, scoped, tag = 'scratch operand']
  #allocation4 [shape = 'f32[8,8,32]{2,1,0:T(8,128)}', space=vmem, size = 0x8000, scoped, tag = 'scratch operand']
  #allocation5 [shape = 'f32[8,8,32]{2,1,0:T(8,128)}', space=vmem, size = 0x8000, scoped, tag = 'scratch operand']
  %s0 = inlined_call_operand.vmem [shape: f32[8,8,32], index: 0, kind: input, shape index: {}]
  %s1 = inlined_call_operand.vmem [shape: f32[32,128], index: 1, kind: input, shape index: {}]
  %s2 = inlined_call_operand.vmem [shape: f32[32,128], index: 2, kind: input, shape index: {}]
  %s3 = inlined_call_operand.vmem [shape: f32[1,128], index: 3, kind: input, shape index: {}]
  %s4 = inlined_call_operand.vmem [shape: f32[32,128], index: 4, kind: input, shape index: {}]
  %s5 = inlined_call_operand.vmem [shape: f32[32,128], index: 5, kind: input, shape index: {}]
  %s6 = inlined_call_operand.vmem [shape: f32[1,128], index: 6, kind: input, shape index: {}]
  %s7 = inlined_call_operand.vmem [shape: f32[64,128], index: 7, kind: input, shape index: {}]
  %s8 = inlined_call_operand.vmem [shape: f32[32,128], index: 8, kind: input, shape index: {}]
  %s9 = inlined_call_operand.vmem [shape: f32[1,128], index: 9, kind: input, shape index: {}]
  %s10 = inlined_call_operand.vmem [shape: f32[64,128], index: 10, kind: input, shape index: {}]
  %s11 = inlined_call_operand.vmem [shape: f32[32,128], index: 11, kind: input, shape index: {}]
  %s12 = inlined_call_operand.vmem [shape: f32[1,128], index: 12, kind: input, shape index: {}]
  %s13 = inlined_call_operand.vmem [shape: f32[64,2], index: 13, kind: input, shape index: {}]
  %s14 = inlined_call_operand.vmem [shape: f32[1,2], index: 14, kind: input, shape index: {}]
  %s15 = inlined_call_operand.vmem [shape: f32[8,2], index: 15, kind: output, shape index: {}]
  %s16 = sld [smem:[#allocation0]]
  $region70: #{lstm_sentiment_forward.1} parent=0
    _
  %s18 = ssub.s32 1, %s16
  %s19 = scalar_select 0, %s18, %s16
  // Predicated region
  $region2: #{lstm_sentiment_forward.1} parent=0 // pred_check
    _
  $region3: #{lstm_sentiment_forward.1} parent=0 // pred_check_branch
    %21 = sbr.rel (0) target = $region5
  $region4: #{lstm_sentiment_forward.1} parent=0 // pred_region
    _
  $region5: #{lstm_sentiment_forward.1} parent=0 // pred_fallthru
    _
  // Predicated region
  $region6: #{lstm_sentiment_forward.1} parent=0 // pred_check
    _
  $region7: #{lstm_sentiment_forward.1} parent=0 // pred_check_branch
    %23 = sbr.rel (0) target = $region9
  $region8: #{lstm_sentiment_forward.1} parent=0 // pred_region
    _
  $region9: #{lstm_sentiment_forward.1} parent=0 // pred_fallthru
    _
  // Predicated region
  $region10: #{lstm_sentiment_forward.1} parent=0 // pred_check
    _
  $region11: #{lstm_sentiment_forward.1} parent=0 // pred_check_branch
    %25 = sbr.rel (0) target = $region13
  $region12: #{lstm_sentiment_forward.1} parent=0 // pred_region
    _
  $region13: #{lstm_sentiment_forward.1} parent=0 // pred_fallthru
    _
  // Predicated region
  $region14: #{lstm_sentiment_forward.1} parent=0 // pred_check
    _
  $region15: #{lstm_sentiment_forward.1} parent=0 // pred_check_branch
    %27 = sbr.rel (0) target = $region17
  $region16: #{lstm_sentiment_forward.1} parent=0 // pred_region
    _
  $region17: #{lstm_sentiment_forward.1} parent=0 // pred_fallthru
    _
  // Predicated region
  $region18: #{lstm_sentiment_forward.1} parent=0 // pred_check
    _
  $region19: #{lstm_sentiment_forward.1} parent=0 // pred_check_branch
    %29 = sbr.rel (0) target = $region21
  $region20: #{lstm_sentiment_forward.1} parent=0 // pred_region
    _
  $region21: #{lstm_sentiment_forward.1} parent=0 // pred_fallthru
    _
  // Predicated region
  $region22: #{lstm_sentiment_forward.1} parent=0 // pred_check
    _
  $region23: #{lstm_sentiment_forward.1} parent=0 // pred_check_branch
    %31 = sbr.rel (0) target = $region25
  $region24: #{lstm_sentiment_forward.1} parent=0 // pred_region
    _
  $region25: #{lstm_sentiment_forward.1} parent=0 // pred_fallthru
    _
  // Predicated region
  $region26: #{lstm_sentiment_forward.1} parent=0 // pred_check
    _
  $region27: #{lstm_sentiment_forward.1} parent=0 // pred_check_branch
    %33 = sbr.rel (0) target = $region29
  $region28: #{lstm_sentiment_forward.1} parent=0 // pred_region
    _
  $region29: #{lstm_sentiment_forward.1} parent=0 // pred_fallthru
    _
  // Predicated region
  $region30: #{lstm_sentiment_forward.1} parent=0 // pred_check
    _
  $region31: #{lstm_sentiment_forward.1} parent=0 // pred_check_branch
    %35 = sbr.rel (0) target = $region33
  $region32: #{lstm_sentiment_forward.1} parent=0 // pred_region
    _
  $region33: #{lstm_sentiment_forward.1} parent=0 // pred_fallthru
    _
  // Predicated region
  $region34: #{lstm_sentiment_forward.1} parent=0 // pred_check
    _
  $region35: #{lstm_sentiment_forward.1} parent=0 // pred_check_branch
    %37 = sbr.rel (0) target = $region37
  $region36: #{lstm_sentiment_forward.1} parent=0 // pred_region
    _
  $region37: #{lstm_sentiment_forward.1} parent=0 // pred_fallthru
    _
  // Predicated region
  $region38: #{lstm_sentiment_forward.1} parent=0 // pred_check
    _
  $region39: #{lstm_sentiment_forward.1} parent=0 // pred_check_branch
    %39 = sbr.rel (0) target = $region41
  $region40: #{lstm_sentiment_forward.1} parent=0 // pred_region
    _
  $region41: #{lstm_sentiment_forward.1} parent=0 // pred_fallthru
    _
  // Predicated region
  $region42: #{lstm_sentiment_forward.1} parent=0 // pred_check
    _
  $region43: #{lstm_sentiment_forward.1} parent=0 // pred_check_branch
    %41 = sbr.rel (0) target = $region45
  $region44: #{lstm_sentiment_forward.1} parent=0 // pred_region
    _
  $region45: #{lstm_sentiment_forward.1} parent=0 // pred_fallthru
    _
  // Predicated region
  $region46: #{lstm_sentiment_forward.1} parent=0 // pred_check
    _
  $region47: #{lstm_sentiment_forward.1} parent=0 // pred_check_branch
    %43 = sbr.rel (0) target = $region49
  $region48: #{lstm_sentiment_forward.1} parent=0 // pred_region
    _
  $region49: #{lstm_sentiment_forward.1} parent=0 // pred_fallthru
    _
  // Predicated region
  $region50: #{lstm_sentiment_forward.1} parent=0 // pred_check
    _
  $region51: #{lstm_sentiment_forward.1} parent=0 // pred_check_branch
    %45 = sbr.rel (0) target = $region53
  $region52: #{lstm_sentiment_forward.1} parent=0 // pred_region
    _
  $region53: #{lstm_sentiment_forward.1} parent=0 // pred_fallthru
    _
  // Predicated region
  $region54: #{lstm_sentiment_forward.1} parent=0 // pred_check
    _
  $region55: #{lstm_sentiment_forward.1} parent=0 // pred_check_branch
    %47 = sbr.rel (0) target = $region57
  $region56: #{lstm_sentiment_forward.1} parent=0 // pred_region
    _
  $region57: #{lstm_sentiment_forward.1} parent=0 // pred_fallthru
    _
  // Predicated region
  $region58: #{lstm_sentiment_forward.1} parent=0 // pred_check
    _
  $region59: #{lstm_sentiment_forward.1} parent=0 // pred_check_branch
    %49 = sbr.rel (0) target = $region61
  $region60: #{lstm_sentiment_forward.1} parent=0 // pred_region
    _
  $region61: #{lstm_sentiment_forward.1} parent=0 // pred_fallthru
    _
  %v50 = vlaneseq
  %v51 = vand.u32 %v50, 127
  %vm52 = vcmp.ge.s32.totalorder %v51, 64
  %vm53 = vcmp.lt.s32.totalorder %v51, 96
  %vm54 = vmand %vm52, %vm53
  %v55 = vld [vmem:[%s0] sm:$0xff]
  %v56 = vld [vmem:[%s0 + $0x8] sm:$0xff]
  %v57 = vld [vmem:[%s0 + $0x10] sm:$0xff]
  %v58 = vld [vmem:[%s0 + $0x18] sm:$0xff]
  %v59 = vld [vmem:[%s0 + $0x20] sm:$0xff]
  %v60 = vld [vmem:[%s0 + $0x28] sm:$0xff]
  %v61 = vld [vmem:[%s0 + $0x30] sm:$0xff]
  %v62 = vld [vmem:[%s0 + $0x38] sm:$0xff]
  %v63 = vld [vmem:[%s1] sm:$0xff]
  %v64 = vld [vmem:[%s1 + $0x8] sm:$0xff]
  %v65 = vld [vmem:[%s1 + $0x10] sm:$0xff]
  %v66 = vld [vmem:[%s1 + $0x18] sm:$0xff]
  %v67 = vld [vmem:[%s3] sm:$0x1]
  %v69 = vlaneseq
  %v70 = vshrl.u32 %v69, 7
  %v71 = vsub.s32 0, %v70
  %v72 = vrot.slane %v67, %v71
  %vm74 = vcmask 261120
  %v76 = vsel %vm74, %v55, 0
  %v79 = vsel %vm74, %v56, 0
  %v82 = vsel %vm74, %v57, 0
  %v85 = vsel %vm74, %v58, 0
  %v88 = vsel %vm74, %v59, 0
  %v91 = vsel %vm74, %v60, 0
  %v94 = vsel %vm74, %v61, 0
  %v97 = vsel %vm74, %v62, 0
  %99 = vmatprep.subr.mxu0 0.0
  %100 = vmatpush1.msra.mxu0 %v63
  %101 = vmatprep.subr.mxu0 0.0
  %102 = vmatpush1.msra.mxu0 %v64
  %103 = vmatprep.subr.mxu0 0.0
  %104 = vmatpush1.msra.mxu0 %v65
  %105 = vmatprep.subr.mxu0 0.0
  %106 = vmatpush1.msra.mxu0 %v66
  %107 = vmatprep.subr.mxu0 0.0
  %108 = vmatpush1.msra.mxu0 0.0
  %109 = vmatprep.subr.mxu0 0.0
  %110 = vmatpush1.msra.mxu0 0.0
  %111 = vmatprep.subr.mxu0 0.0
  %112 = vmatpush1.msra.mxu0 0.0
  %113 = vmatprep.subr.mxu0 0.0
  %114 = vmatpush1.msra.mxu0 0.0
  %115 = vmatprep.subr.mxu0 0.0
  %116 = vmatpush1.msra.mxu0 0.0
  %117 = vmatprep.subr.mxu0 0.0
  %118 = vmatpush1.msra.mxu0 0.0
  %119 = vmatprep.subr.mxu0 0.0
  %120 = vmatpush1.msra.mxu0 0.0
  %121 = vmatprep.subr.mxu0 0.0
  %122 = vmatpush1.msra.mxu0 0.0
  %123 = vmatprep.subr.mxu0 0.0
  %124 = vmatpush1.msra.mxu0 0.0
  %125 = vmatprep.subr.mxu0 0.0
  %126 = vmatpush1.msra.mxu0 0.0
  %127 = vmatprep.subr.mxu0 0.0
  %128 = vmatpush1.msra.mxu0 0.0
  %129 = vmatprep.subr.mxu0 0.0
  %130 = vmatpush1.msra.mxu0 0.0
  %131 = vmatprep.subr.mxu0 0.0
  %132 = vmatpush1.msra.mxu0 0.0
  %133 = vmatprep.subr.mxu0 0.0
  %134 = vmatpush1.msra.mxu0 0.0
  %135 = vmatprep.subr.mxu0 0.0
  %136 = vmatpush1.msra.mxu0 0.0
  %137 = vmatprep.subr.mxu0 0.0
  %138 = vmatpush1.msra.mxu0 0.0
  %139 = vmatprep.subr.mxu0 0.0
  %140 = vmatpush1.msra.mxu0 0.0
  %141 = vmatprep.subr.mxu0 0.0
  %142 = vmatpush1.msra.mxu0 0.0
  %143 = vmatprep.subr.mxu0 0.0
  %144 = vmatpush1.msra.mxu0 0.0
  %145 = vmatprep.subr.mxu0 0.0
  %146 = vmatpush1.msra.mxu0 0.0
  %147 = vmatprep.subr.mxu0 0.0
  %148 = vmatpush1.msra.mxu0 0.0
  %149 = vmatprep.subr.mxu0 0.0
  %150 = vmatpush1.msra.mxu0 0.0
  %151 = vmatprep.subr.mxu0 0.0
  %152 = vmatpush1.msra.mxu0 0.0
  %153 = vmatprep.subr.mxu0 0.0
  %154 = vmatpush1.msra.mxu0 0.0
  %155 = vmatprep.subr.mxu0 0.0
  %156 = vmatpush1.msra.mxu0 0.0
  %157 = vmatprep.subr.mxu0 0.0
  %158 = vmatpush1.msra.mxu0 0.0
  %159 = vmatprep.subr.mxu0 0.0
  %160 = vmatpush1.msra.mxu0 0.0
  %161 = vmatprep.subr.mxu0 0.0
  %162 = vmatpush1.msra.mxu0 0.0
  %163 = vmatprep.mubr.f32.mxu0 0.0
  %164 = vmatmul.mubr.f32.gmra.mrb[0].mxu0 %v76
  %v165 = vpop.f32.mrb[0].mxu0
  %v166 = vadd.f32 %v72, %v165
  %v167 = vpop.f32.mrb[0].mxu0
  %168 = vmatprep.mubr.f32.mxu0 0.0
  %169 = vmatmul.mubr.f32.gmra.mrb[0].mxu0 %v79
  %v170 = vpop.f32.mrb[0].mxu0
  %v171 = vadd.f32 %v72, %v170
  %v172 = vpop.f32.mrb[0].mxu0
  %173 = vmatprep.mubr.f32.mxu0 0.0
  %174 = vmatmul.mubr.f32.gmra.mrb[0].mxu0 %v82
  %v175 = vpop.f32.mrb[0].mxu0
  %v176 = vadd.f32 %v72, %v175
  %v177 = vpop.f32.mrb[0].mxu0
  %178 = vmatprep.mubr.f32.mxu0 0.0
  %179 = vmatmul.mubr.f32.gmra.mrb[0].mxu0 %v85
  %v180 = vpop.f32.mrb[0].mxu0
  %v181 = vadd.f32 %v72, %v180
  %v182 = vpop.f32.mrb[0].mxu0
  %183 = vmatprep.mubr.f32.mxu0 0.0
  %184 = vmatmul.mubr.f32.gmra.mrb[0].mxu0 %v88
  %v185 = vpop.f32.mrb[0].mxu0
  %v186 = vadd.f32 %v72, %v185
  %v187 = vpop.f32.mrb[0].mxu0
  %188 = vmatprep.mubr.f32.mxu0 0.0
  %189 = vmatmul.mubr.f32.gmra.mrb[0].mxu0 %v91
  %v190 = vpop.f32.mrb[0].mxu0
  %v191 = vadd.f32 %v72, %v190
  %v192 = vpop.f32.mrb[0].mxu0
  %193 = vmatprep.mubr.f32.mxu0 0.0
  %194 = vmatmul.mubr.f32.gmra.mrb[0].mxu0 %v94
  %v195 = vpop.f32.mrb[0].mxu0
  %v196 = vadd.f32 %v72, %v195
  %v197 = vpop.f32.mrb[0].mxu0
  %198 = vmatprep.mubr.f32.mxu0 0.0
  %199 = vmatmul.mubr.f32.gmra.mrb[0].mxu0 %v97
  %v200 = vpop.f32.mrb[0].mxu0
  %v201 = vadd.f32 %v72, %v200
  %v202 = vpop.f32.mrb[0].mxu0
  %203 = vdwg.mxu0
  %204 = vst [vmem:[#allocation2] sm:$0xff] %v166
  %205 = vst [vmem:[#allocation2 + $0x8] sm:$0xff] %v171
  %206 = vst [vmem:[#allocation2 + $0x10] sm:$0xff] %v176
  %207 = vst [vmem:[#allocation2 + $0x18] sm:$0xff] %v181
  %208 = vst [vmem:[#allocation2 + $0x20] sm:$0xff] %v186
  %209 = vst [vmem:[#allocation2 + $0x28] sm:$0xff] %v191
  %210 = vst [vmem:[#allocation2 + $0x30] sm:$0xff] %v196
  %211 = vst [vmem:[#allocation2 + $0x38] sm:$0xff] %v201
  %v212 = vld [vmem:[%s4] sm:$0xff]
  %v213 = vld [vmem:[%s4 + $0x8] sm:$0xff]
  %v214 = vld [vmem:[%s4 + $0x10] sm:$0xff]
  %v215 = vld [vmem:[%s4 + $0x18] sm:$0xff]
  %v216 = vld [vmem:[%s6] sm:$0x1]
  %v218 = vlaneseq
  %v219 = vshrl.u32 %v218, 7
  %v220 = vsub.s32 0, %v219
  %v221 = vrot.slane %v216, %v220
  %223 = vmatprep.subr.mxu0 0.0
  %224 = vmatpush1.msra.mxu0 %v212
  %225 = vmatprep.subr.mxu0 0.0
  %226 = vmatpush1.msra.mxu0 %v213
  %227 = vmatprep.subr.mxu0 0.0
  %228 = vmatpush1.msra.mxu0 %v214
  %229 = vmatprep.subr.mxu0 0.0
  %230 = vmatpush1.msra.mxu0 %v215
  %231 = vmatprep.subr.mxu0 0.0
  %232 = vmatpush1.msra.mxu0 0.0
  %233 = vmatprep.subr.mxu0 0.0
  %234 = vmatpush1.msra.mxu0 0.0
  %235 = vmatprep.subr.mxu0 0.0
  %236 = vmatpush1.msra.mxu0 0.0
  %237 = vmatprep.subr.mxu0 0.0
  %238 = vmatpush1.msra.mxu0 0.0
  %239 = vmatprep.subr.mxu0 0.0
  %240 = vmatpush1.msra.mxu0 0.0
  %241 = vmatprep.subr.mxu0 0.0
  %242 = vmatpush1.msra.mxu0 0.0
  %243 = vmatprep.subr.mxu0 0.0
  %244 = vmatpush1.msra.mxu0 0.0
  %245 = vmatprep.subr.mxu0 0.0
  %246 = vmatpush1.msra.mxu0 0.0
  %247 = vmatprep.subr.mxu0 0.0
  %248 = vmatpush1.msra.mxu0 0.0
  %249 = vmatprep.subr.mxu0 0.0
  %250 = vmatpush1.msra.mxu0 0.0
  %251 = vmatprep.subr.mxu0 0.0
  %252 = vmatpush1.msra.mxu0 0.0
  %253 = vmatprep.subr.mxu0 0.0
  %254 = vmatpush1.msra.mxu0 0.0
  %255 = vmatprep.subr.mxu0 0.0
  %256 = vmatpush1.msra.mxu0 0.0
  %257 = vmatprep.subr.mxu0 0.0
  %258 = vmatpush1.msra.mxu0 0.0
  %259 = vmatprep.subr.mxu0 0.0
  %260 = vmatpush1.msra.mxu0 0.0
  %261 = vmatprep.subr.mxu0 0.0
  %262 = vmatpush1.msra.mxu0 0.0
  %263 = vmatprep.subr.mxu0 0.0
  %264 = vmatpush1.msra.mxu0 0.0
  %265 = vmatprep.subr.mxu0 0.0
  %266 = vmatpush1.msra.mxu0 0.0
  %267 = vmatprep.subr.mxu0 0.0
  %268 = vmatpush1.msra.mxu0 0.0
  %269 = vmatprep.subr.mxu0 0.0
  %270 = vmatpush1.msra.mxu0 0.0
  %271 = vmatprep.subr.mxu0 0.0
  %272 = vmatpush1.msra.mxu0 0.0
  %273 = vmatprep.subr.mxu0 0.0
  %274 = vmatpush1.msra.mxu0 0.0
  %275 = vmatprep.subr.mxu0 0.0
  %276 = vmatpush1.msra.mxu0 0.0
  %277 = vmatprep.subr.mxu0 0.0
  %278 = vmatpush1.msra.mxu0 0.0
  %279 = vmatprep.subr.mxu0 0.0
  %280 = vmatpush1.msra.mxu0 0.0
  %281 = vmatprep.subr.mxu0 0.0
  %282 = vmatpush1.msra.mxu0 0.0
  %283 = vmatprep.subr.mxu0 0.0
  %284 = vmatpush1.msra.mxu0 0.0
  %285 = vmatprep.subr.mxu0 0.0
  %286 = vmatpush1.msra.mxu0 0.0
  %287 = vmatprep.mubr.f32.mxu0 0.0
  %288 = vmatmul.mubr.f32.gmra.mrb[0].mxu0 %v76
  %v289 = vpop.f32.mrb[0].mxu0
  %v290 = vadd.f32 %v221, %v289
  %v291 = vpop.f32.mrb[0].mxu0
  %292 = vmatprep.mubr.f32.mxu0 0.0
  %293 = vmatmul.mubr.f32.gmra.mrb[0].mxu0 %v79
  %v294 = vpop.f32.mrb[0].mxu0
  %v295 = vadd.f32 %v221, %v294
  %v296 = vpop.f32.mrb[0].mxu0
  %297 = vmatprep.mubr.f32.mxu0 0.0
  %298 = vmatmul.mubr.f32.gmra.mrb[0].mxu0 %v82
  %v299 = vpop.f32.mrb[0].mxu0
  %v300 = vadd.f32 %v221, %v299
  %v301 = vpop.f32.mrb[0].mxu0
  %302 = vmatprep.mubr.f32.mxu0 0.0
  %303 = vmatmul.mubr.f32.gmra.mrb[0].mxu0 %v85
  %v304 = vpop.f32.mrb[0].mxu0
  %v305 = vadd.f32 %v221, %v304
  %v306 = vpop.f32.mrb[0].mxu0
  %307 = vmatprep.mubr.f32.mxu0 0.0
  %308 = vmatmul.mubr.f32.gmra.mrb[0].mxu0 %v88
  %v309 = vpop.f32.mrb[0].mxu0
  %v310 = vadd.f32 %v221, %v309
  %v311 = vpop.f32.mrb[0].mxu0
  %312 = vmatprep.mubr.f32.mxu0 0.0
  %313 = vmatmul.mubr.f32.gmra.mrb[0].mxu0 %v91
  %v314 = vpop.f32.mrb[0].mxu0
  %v315 = vadd.f32 %v221, %v314
  %v316 = vpop.f32.mrb[0].mxu0
  %317 = vmatprep.mubr.f32.mxu0 0.0
  %318 = vmatmul.mubr.f32.gmra.mrb[0].mxu0 %v94
  %v319 = vpop.f32.mrb[0].mxu0
  %v320 = vadd.f32 %v221, %v319
  %v321 = vpop.f32.mrb[0].mxu0
  %322 = vmatprep.mubr.f32.mxu0 0.0
  %323 = vmatmul.mubr.f32.gmra.mrb[0].mxu0 %v97
  %v324 = vpop.f32.mrb[0].mxu0
  %v325 = vadd.f32 %v221, %v324
  %v326 = vpop.f32.mrb[0].mxu0
  %327 = vdwg.mxu0
  %328 = vst [vmem:[#allocation3] sm:$0xff] %v290
  %329 = vst [vmem:[#allocation3 + $0x8] sm:$0xff] %v295
  %330 = vst [vmem:[#allocation3 + $0x10] sm:$0xff] %v300
  %331 = vst [vmem:[#allocation3 + $0x18] sm:$0xff] %v305
  %332 = vst [vmem:[#allocation3 + $0x20] sm:$0xff] %v310
  %333 = vst [vmem:[#allocation3 + $0x28] sm:$0xff] %v315
  %334 = vst [vmem:[#allocation3 + $0x30] sm:$0xff] %v320
  %335 = vst [vmem:[#allocation3 + $0x38] sm:$0xff] %v325
  %v336 = vld [vmem:[%s2] sm:$0xff]
  %v337 = vld [vmem:[%s2 + $0x8] sm:$0xff]
  %v338 = vld [vmem:[%s2 + $0x10] sm:$0xff]
  %v339 = vld [vmem:[%s2 + $0x18] sm:$0xff]
  %v340 = vld [vmem:[#allocation2] sm:$0xff]
  %v342 = vsel %vm74, 0.0, 0
  %344 = vmatprep.subr.mxu0 0.0
  %345 = vmatpush1.msra.mxu0 %v336
  %346 = vmatprep.subr.mxu0 0.0
  %347 = vmatpush1.msra.mxu0 %v337
  %348 = vmatprep.subr.mxu0 0.0
  %349 = vmatpush1.msra.mxu0 %v338
  %350 = vmatprep.subr.mxu0 0.0
  %351 = vmatpush1.msra.mxu0 %v339
  %352 = vmatprep.subr.mxu0 0.0
  %353 = vmatpush1.msra.mxu0 0.0
  %354 = vmatprep.subr.mxu0 0.0
  %355 = vmatpush1.msra.mxu0 0.0
  %356 = vmatprep.subr.mxu0 0.0
  %357 = vmatpush1.msra.mxu0 0.0
  %358 = vmatprep.subr.mxu0 0.0
  %359 = vmatpush1.msra.mxu0 0.0
  %360 = vmatprep.subr.mxu0 0.0
  %361 = vmatpush1.msra.mxu0 0.0
  %362 = vmatprep.subr.mxu0 0.0
  %363 = vmatpush1.msra.mxu0 0.0
  %364 = vmatprep.subr.mxu0 0.0
  %365 = vmatpush1.msra.mxu0 0.0
  %366 = vmatprep.subr.mxu0 0.0
  %367 = vmatpush1.msra.mxu0 0.0
  %368 = vmatprep.subr.mxu0 0.0
  %369 = vmatpush1.msra.mxu0 0.0
  %370 = vmatprep.subr.mxu0 0.0
  %371 = vmatpush1.msra.mxu0 0.0
  %372 = vmatprep.subr.mxu0 0.0
  %373 = vmatpush1.msra.mxu0 0.0
  %374 = vmatprep.subr.mxu0 0.0
  %375 = vmatpush1.msra.mxu0 0.0
  %376 = vmatprep.subr.mxu0 0.0
  %377 = vmatpush1.msra.mxu0 0.0
  %378 = vmatprep.subr.mxu0 0.0
  %379 = vmatpush1.msra.mxu0 0.0
  %380 = vmatprep.subr.mxu0 0.0
  %381 = vmatpush1.msra.mxu0 0.0
  %382 = vmatprep.subr.mxu0 0.0
  %383 = vmatpush1.msra.mxu0 0.0
  %384 = vmatprep.subr.mxu0 0.0
  %385 = vmatpush1.msra.mxu0 0.0
  %386 = vmatprep.subr.mxu0 0.0
  %387 = vmatpush1.msra.mxu0 0.0
  %388 = vmatprep.subr.mxu0 0.0
  %389 = vmatpush1.msra.mxu0 0.0
  %390 = vmatprep.subr.mxu0 0.0
  %391 = vmatpush1.msra.mxu0 0.0
  %392 = vmatprep.subr.mxu0 0.0
  %393 = vmatpush1.msra.mxu0 0.0
  %394 = vmatprep.subr.mxu0 0.0
  %395 = vmatpush1.msra.mxu0 0.0
  %396 = vmatprep.subr.mxu0 0.0
  %397 = vmatpush1.msra.mxu0 0.0
  %398 = vmatprep.subr.mxu0 0.0
  %399 = vmatpush1.msra.mxu0 0.0
  %400 = vmatprep.subr.mxu0 0.0
  %401 = vmatpush1.msra.mxu0 0.0
  %402 = vmatprep.subr.mxu0 0.0
  %403 = vmatpush1.msra.mxu0 0.0
  %404 = vmatprep.subr.mxu0 0.0
  %405 = vmatpush1.msra.mxu0 0.0
  %406 = vmatprep.subr.mxu0 0.0
  %407 = vmatpush1.msra.mxu0 0.0
  %408 = vmatprep.mubr.f32.mxu0 0.0
  %409 = vmatmul.mubr.f32.gmra.mrb[0].mxu0 %v342
  %v410 = vpop.f32.mrb[0].mxu0
  %v411 = vadd.f32 0.0, %v410
  %v412 = vpop.f32.mrb[0].mxu0
  %413 = vdwg.mxu0
  %v414 = vadd.f32 %v340, %v411
  %v415 = vtanh.pop %v414
  %v416 = vxor.u32 %v414, 2147483648
  %v417 = vmul.f32 %v416, 1.442695
  %v418 = vpow.pop %v417
  %v419 = vadd.f32 %v418, 1.0
  %v420 = vrcp.pop %v419
  %v421 = vmul.f32 1.0, %v420
  %v422 = vsel %vm54, %v415, %v421
  %v423 = vmul.f32 %v422, 0.0
  %425 = vrot.lane.b32.xlu0 %v422, 64
  %v426 = vpop.permute.xlu0 %425
  %v428 = vmul.f32 %v422, %v426
  %430 = vrot.lane.b32.xlu0 %v428, 32
  %v431 = vpop.permute.xlu0 %430
  %v433 = vadd.f32 %v423, %v431
  %v434 = vtanh.pop %v433
  %436 = vrot.lane.b32.xlu0 %v434, 64
  %v437 = vpop.permute.xlu0 %436
  %v439 = vmul.f32 %v422, %v437
  %441 = vrot.lane.b32.xlu0 %v439, 32
  %v442 = vpop.permute.xlu0 %441
  %444 = vst.msk [vmem:[#allocation4] sm:$0xff] %vm74, %v442
  %s445 = scalar_lea.vmem [#allocation2], 8
  %v446 = vld [vmem:[%s445] sm:$0xff]
  %v447 = vsel %vm74, %v442, 0
  %449 = vmatprep.subr.mxu0 0.0
  %450 = vmatpush1.msra.mxu0 %v336
  %451 = vmatprep.subr.mxu0 0.0
  %452 = vmatpush1.msra.mxu0 %v337
  %453 = vmatprep.subr.mxu0 0.0
  %454 = vmatpush1.msra.mxu0 %v338
  %455 = vmatprep.subr.mxu0 0.0
  %456 = vmatpush1.msra.mxu0 %v339
  %457 = vmatprep.subr.mxu0 0.0
  %458 = vmatpush1.msra.mxu0 0.0
  %459 = vmatprep.subr.mxu0 0.0
  %460 = vmatpush1.msra.mxu0 0.0
  %461 = vmatprep.subr.mxu0 0.0
  %462 = vmatpush1.msra.mxu0 0.0
  %463 = vmatprep.subr.mxu0 0.0
  %464 = vmatpush1.msra.mxu0 0.0
  %465 = vmatprep.subr.mxu0 0.0
  %466 = vmatpush1.msra.mxu0 0.0
  %467 = vmatprep.subr.mxu0 0.0
  %468 = vmatpush1.msra.mxu0 0.0
  %469 = vmatprep.subr.mxu0 0.0
  %470 = vmatpush1.msra.mxu0 0.0
  %471 = vmatprep.subr.mxu0 0.0
  %472 = vmatpush1.msra.mxu0 0.0
  %473 = vmatprep.subr.mxu0 0.0
  %474 = vmatpush1.msra.mxu0 0.0
  %475 = vmatprep.subr.mxu0 0.0
  %476 = vmatpush1.msra.mxu0 0.0
  %477 = vmatprep.subr.mxu0 0.0
  %478 = vmatpush1.msra.mxu0 0.0
  %479 = vmatprep.subr.mxu0 0.0
  %480 = vmatpush1.msra.mxu0 0.0
  %481 = vmatprep.subr.mxu0 0.0
  %482 = vmatpush1.msra.mxu0 0.0
  %483 = vmatprep.subr.mxu0 0.0
  %484 = vmatpush1.msra.mxu0 0.0
  %485 = vmatprep.subr.mxu0 0.0
  %486 = vmatpush1.msra.mxu0 0.0
  %487 = vmatprep.subr.mxu0 0.0
  %488 = vmatpush1.msra.mxu0 0.0
  %489 = vmatprep.subr.mxu0 0.0
  %490 = vmatpush1.msra.mxu0 0.0
  %491 = vmatprep.subr.mxu0 0.0
  %492 = vmatpush1.msra.mxu0 0.0
  %493 = vmatprep.subr.mxu0 0.0
  %494 = vmatpush1.msra.mxu0 0.0
  %495 = vmatprep.subr.mxu0 0.0
  %496 = vmatpush1.msra.mxu0 0.0
  %497 = vmatprep.subr.mxu0 0.0
  %498 = vmatpush1.msra.mxu0 0.0
  %499 = vmatprep.subr.mxu0 0.0
  %500 = vmatpush1.msra.mxu0 0.0
  %501 = vmatprep.subr.mxu0 0.0
  %502 = vmatpush1.msra.mxu0 0.0
  %503 = vmatprep.subr.mxu0 0.0
  %504 = vmatpush1.msra.mxu0 0.0
  %505 = vmatprep.subr.mxu0 0.0
  %506 = vmatpush1.msra.mxu0 0.0
  %507 = vmatprep.subr.mxu0 0.0
  %508 = vmatpush1.msra.mxu0 0.0
  %509 = vmatprep.subr.mxu0 0.0
  %510 = vmatpush1.msra.mxu0 0.0
  %511 = vmatprep.subr.mxu0 0.0
  %512 = vmatpush1.msra.mxu0 0.0
  %513 = vmatprep.mubr.f32.mxu0 0.0
  %514 = vmatmul.mubr.f32.gmra.mrb[0].mxu0 %v447
  %v515 = vpop.f32.mrb[0].mxu0
  %v516 = vadd.f32 0.0, %v515
  %v517 = vpop.f32.mrb[0].mxu0
  %518 = vdwg.mxu0
  %v519 = vadd.f32 %v446, %v516
  %v520 = vtanh.pop %v519
  %v521 = vxor.u32 %v519, 2147483648
  %v522 = vmul.f32 %v521, 1.442695
  %v523 = vpow.pop %v522
  %v524 = vadd.f32 %v523, 1.0
  %v525 = vrcp.pop %v524
  %v526 = vmul.f32 1.0, %v525
  %v527 = vsel %vm54, %v520, %v526
  %v528 = vmul.f32 %v527, %v433
  %530 = vrot.lane.b32.xlu0 %v527, 64
  %v531 = vpop.permute.xlu0 %530
  %v533 = vmul.f32 %v527, %v531
  %535 = vrot.lane.b32.xlu0 %v533, 32
  %v536 = vpop.permute.xlu0 %535
  %v538 = vadd.f32 %v528, %v536
  %v539 = vtanh.pop %v538
  %541 = vrot.lane.b32.xlu0 %v539, 64
  %v542 = vpop.permute.xlu0 %541
  %v544 = vmul.f32 %v527, %v542
  %546 = vrot.lane.b32.xlu0 %v544, 32
  %v547 = vpop.permute.xlu0 %546
  %s549 = scalar_lea.vmem [#allocation4], 8
  %550 = vst.msk [vmem:[%s549] sm:$0xff] %vm74, %v547
  %s551 = scalar_lea.vmem [#allocation2], 16
  %v552 = vld [vmem:[%s551] sm:$0xff]
  %v553 = vsel %vm74, %v547, 0
  %555 = vmatprep.subr.mxu0 0.0
  %556 = vmatpush1.msra.mxu0 %v336
  %557 = vmatprep.subr.mxu0 0.0
  %558 = vmatpush1.msra.mxu0 %v337
  %559 = vmatprep.subr.mxu0 0.0
  %560 = vmatpush1.msra.mxu0 %v338
  %561 = vmatprep.subr.mxu0 0.0
  %562 = vmatpush1.msra.mxu0 %v339
  %563 = vmatprep.subr.mxu0 0.0
  %564 = vmatpush1.msra.mxu0 0.0
  %565 = vmatprep.subr.mxu0 0.0
  %566 = vmatpush1.msra.mxu0 0.0
  %567 = vmatprep.subr.mxu0 0.0
  %568 = vmatpush1.msra.mxu0 0.0
  %569 = vmatprep.subr.mxu0 0.0
  %570 = vmatpush1.msra.mxu0 0.0
  %571 = vmatprep.subr.mxu0 0.0
  %572 = vmatpush1.msra.mxu0 0.0
  %573 = vmatprep.subr.mxu0 0.0
  %574 = vmatpush1.msra.mxu0 0.0
  %575 = vmatprep.subr.mxu0 0.0
  %576 = vmatpush1.msra.mxu0 0.0
  %577 = vmatprep.subr.mxu0 0.0
  %578 = vmatpush1.msra.mxu0 0.0
  %579 = vmatprep.subr.mxu0 0.0
  %580 = vmatpush1.msra.mxu0 0.0
  %581 = vmatprep.subr.mxu0 0.0
  %582 = vmatpush1.msra.mxu0 0.0
  %583 = vmatprep.subr.mxu0 0.0
  %584 = vmatpush1.msra.mxu0 0.0
  %585 = vmatprep.subr.mxu0 0.0
  %586 = vmatpush1.msra.mxu0 0.0
  %587 = vmatprep.subr.mxu0 0.0
  %588 = vmatpush1.msra.mxu0 0.0
  %589 = vmatprep.subr.mxu0 0.0
  %590 = vmatpush1.msra.mxu0 0.0
  %591 = vmatprep.subr.mxu0 0.0
  %592 = vmatpush1.msra.mxu0 0.0
  %593 = vmatprep.subr.mxu0 0.0
  %594 = vmatpush1.msra.mxu0 0.0
  %595 = vmatprep.subr.mxu0 0.0
  %596 = vmatpush1.msra.mxu0 0.0
  %597 = vmatprep.subr.mxu0 0.0
  %598 = vmatpush1.msra.mxu0 0.0
  %599 = vmatprep.subr.mxu0 0.0
  %600 = vmatpush1.msra.mxu0 0.0
  %601 = vmatprep.subr.mxu0 0.0
  %602 = vmatpush1.msra.mxu0 0.0
  %603 = vmatprep.subr.mxu0 0.0
  %604 = vmatpush1.msra.mxu0 0.0
  %605 = vmatprep.subr.mxu0 0.0
  %606 = vmatpush1.msra.mxu0 0.0
  %607 = vmatprep.subr.mxu0 0.0
  %608 = vmatpush1.msra.mxu0 0.0
  %609 = vmatprep.subr.mxu0 0.0
  %610 = vmatpush1.msra.mxu0 0.0
  %611 = vmatprep.subr.mxu0 0.0
  %612 = vmatpush1.msra.mxu0 0.0
  %613 = vmatprep.subr.mxu0 0.0
  %614 = vmatpush1.msra.mxu0 0.0
  %615 = vmatprep.subr.mxu0 0.0
  %616 = vmatpush1.msra.mxu0 0.0
  %617 = vmatprep.subr.mxu0 0.0
  %618 = vmatpush1.msra.mxu0 0.0
  %619 = vmatprep.mubr.f32.mxu0 0.0
  %620 = vmatmul.mubr.f32.gmra.mrb[0].mxu0 %v553
  %v621 = vpop.f32.mrb[0].mxu0
  %v622 = vadd.f32 0.0, %v621
  %v623 = vpop.f32.mrb[0].mxu0
  %624 = vdwg.mxu0
  %v625 = vadd.f32 %v552, %v622
  %v626 = vtanh.pop %v625
  %v627 = vxor.u32 %v625, 2147483648
  %v628 = vmul.f32 %v627, 1.442695
  %v629 = vpow.pop %v628
  %v630 = vadd.f32 %v629, 1.0
  %v631 = vrcp.pop %v630
  %v632 = vmul.f32 1.0, %v631
  %v633 = vsel %vm54, %v626, %v632
  %v634 = vmul.f32 %v633, %v538
  %636 = vrot.lane.b32.xlu0 %v633, 64
  %v637 = vpop.permute.xlu0 %636
  %v639 = vmul.f32 %v633, %v637
  %641 = vrot.lane.b32.xlu0 %v639, 32
  %v642 = vpop.permute.xlu0 %641
  %v644 = vadd.f32 %v634, %v642
  %v645 = vtanh.pop %v644
  %647 = vrot.lane.b32.xlu0 %v645, 64
  %v648 = vpop.permute.xlu0 %647
  %v650 = vmul.f32 %v633, %v648
  %652 = vrot.lane.b32.xlu0 %v650, 32
  %v653 = vpop.permute.xlu0 %652
  %s655 = scalar_lea.vmem [#allocation4], 16
  %656 = vst.msk [vmem:[%s655] sm:$0xff] %vm74, %v653
  %s657 = scalar_lea.vmem [#allocation2], 24
  %v658 = vld [vmem:[%s657] sm:$0xff]
  %v659 = vsel %vm74, %v653, 0
  %661 = vmatprep.subr.mxu0 0.0
  %662 = vmatpush1.msra.mxu0 %v336
  %663 = vmatprep.subr.mxu0 0.0
  %664 = vmatpush1.msra.mxu0 %v337
  %665 = vmatprep.subr.mxu0 0.0
  %666 = vmatpush1.msra.mxu0 %v338
  %667 = vmatprep.subr.mxu0 0.0
  %668 = vmatpush1.msra.mxu0 %v339
  %669 = vmatprep.subr.mxu0 0.0
  %670 = vmatpush1.msra.mxu0 0.0
  %671 = vmatprep.subr.mxu0 0.0
  %672 = vmatpush1.msra.mxu0 0.0
  %673 = vmatprep.subr.mxu0 0.0
  %674 = vmatpush1.msra.mxu0 0.0
  %675 = vmatprep.subr.mxu0 0.0
  %676 = vmatpush1.msra.mxu0 0.0
  %677 = vmatprep.subr.mxu0 0.0
  %678 = vmatpush1.msra.mxu0 0.0
  %679 = vmatprep.subr.mxu0 0.0
  %680 = vmatpush1.msra.mxu0 0.0
  %681 = vmatprep.subr.mxu0 0.0
  %682 = vmatpush1.msra.mxu0 0.0
  %683 = vmatprep.subr.mxu0 0.0
  %684 = vmatpush1.msra.mxu0 0.0
  %685 = vmatprep.subr.mxu0 0.0
  %686 = vmatpush1.msra.mxu0 0.0
  %687 = vmatprep.subr.mxu0 0.0
  %688 = vmatpush1.msra.mxu0 0.0
  %689 = vmatprep.subr.mxu0 0.0
  %690 = vmatpush1.msra.mxu0 0.0
  %691 = vmatprep.subr.mxu0 0.0
  %692 = vmatpush1.msra.mxu0 0.0
  %693 = vmatprep.subr.mxu0 0.0
  %694 = vmatpush1.msra.mxu0 0.0
  %695 = vmatprep.subr.mxu0 0.0
  %696 = vmatpush1.msra.mxu0 0.0
  %697 = vmatprep.subr.mxu0 0.0
  %698 = vmatpush1.msra.mxu0 0.0
  %699 = vmatprep.subr.mxu0 0.0
  %700 = vmatpush1.msra.mxu0 0.0
  %701 = vmatprep.subr.mxu0 0.0
  %702 = vmatpush1.msra.mxu0 0.0
  %703 = vmatprep.subr.mxu0 0.0
  %704 = vmatpush1.msra.mxu0 0.0
  %705 = vmatprep.subr.mxu0 0.0
  %706 = vmatpush1.msra.mxu0 0.0
  %707 = vmatprep.subr.mxu0 0.0
  %708 = vmatpush1.msra.mxu0 0.0
  %709 = vmatprep.subr.mxu0 0.0
  %710 = vmatpush1.msra.mxu0 0.0
  %711 = vmatprep.subr.mxu0 0.0
  %712 = vmatpush1.msra.mxu0 0.0
  %713 = vmatprep.subr.mxu0 0.0
  %714 = vmatpush1.msra.mxu0 0.0
  %715 = vmatprep.subr.mxu0 0.0
  %716 = vmatpush1.msra.mxu0 0.0
  %717 = vmatprep.subr.mxu0 0.0
  %718 = vmatpush1.msra.mxu0 0.0
  %719 = vmatprep.subr.mxu0 0.0
  %720 = vmatpush1.msra.mxu0 0.0
  %721 = vmatprep.subr.mxu0 0.0
  %722 = vmatpush1.msra.mxu0 0.0
  %723 = vmatprep.subr.mxu0 0.0
  %724 = vmatpush1.msra.mxu0 0.0
  %725 = vmatprep.mubr.f32.mxu0 0.0
  %726 = vmatmul.mubr.f32.gmra.mrb[0].mxu0 %v659
  %v727 = vpop.f32.mrb[0].mxu0
  %v728 = vadd.f32 0.0, %v727
  %v729 = vpop.f32.mrb[0].mxu0
  %730 = vdwg.mxu0
  %v731 = vadd.f32 %v658, %v728
  %v732 = vtanh.pop %v731
  %v733 = vxor.u32 %v731, 2147483648
  %v734 = vmul.f32 %v733, 1.442695
  %v735 = vpow.pop %v734
  %v736 = vadd.f32 %v735, 1.0
  %v737 = vrcp.pop %v736
  %v738 = vmul.f32 1.0, %v737
  %v739 = vsel %vm54, %v732, %v738
  %v740 = vmul.f32 %v739, %v644
  %742 = vrot.lane.b32.xlu0 %v739, 64
  %v743 = vpop.permute.xlu0 %742
  %v745 = vmul.f32 %v739, %v743
  %747 = vrot.lane.b32.xlu0 %v745, 32
  %v748 = vpop.permute.xlu0 %747
  %v750 = vadd.f32 %v740, %v748
  %v751 = vtanh.pop %v750
  %753 = vrot.lane.b32.xlu0 %v751, 64
  %v754 = vpop.permute.xlu0 %753
  %v756 = vmul.f32 %v739, %v754
  %758 = vrot.lane.b32.xlu0 %v756, 32
  %v759 = vpop.permute.xlu0 %758
  %s761 = scalar_lea.vmem [#allocation4], 24
  %762 = vst.msk [vmem:[%s761] sm:$0xff] %vm74, %v759
  %s763 = scalar_lea.vmem [#allocation2], 32
  %v764 = vld [vmem:[%s763] sm:$0xff]
  %v765 = vsel %vm74, %v759, 0
  %767 = vmatprep.subr.mxu0 0.0
  %768 = vmatpush1.msra.mxu0 %v336
  %769 = vmatprep.subr.mxu0 0.0
  %770 = vmatpush1.msra.mxu0 %v337
  %771 = vmatprep.subr.mxu0 0.0
  %772 = vmatpush1.msra.mxu0 %v338
  %773 = vmatprep.subr.mxu0 0.0
  %774 = vmatpush1.msra.mxu0 %v339
  %775 = vmatprep.subr.mxu0 0.0
  %776 = vmatpush1.msra.mxu0 0.0
  %777 = vmatprep.subr.mxu0 0.0
  %778 = vmatpush1.msra.mxu0 0.0
  %779 = vmatprep.subr.mxu0 0.0
  %780 = vmatpush1.msra.mxu0 0.0
  %781 = vmatprep.subr.mxu0 0.0
  %782 = vmatpush1.msra.mxu0 0.0
  %783 = vmatprep.subr.mxu0 0.0
  %784 = vmatpush1.msra.mxu0 0.0
  %785 = vmatprep.subr.mxu0 0.0
  %786 = vmatpush1.msra.mxu0 0.0
  %787 = vmatprep.subr.mxu0 0.0
  %788 = vmatpush1.msra.mxu0 0.0
  %789 = vmatprep.subr.mxu0 0.0
  %790 = vmatpush1.msra.mxu0 0.0
  %791 = vmatprep.subr.mxu0 0.0
  %792 = vmatpush1.msra.mxu0 0.0
  %793 = vmatprep.subr.mxu0 0.0
  %794 = vmatpush1.msra.mxu0 0.0
  %795 = vmatprep.subr.mxu0 0.0
  %796 = vmatpush1.msra.mxu0 0.0
  %797 = vmatprep.subr.mxu0 0.0
  %798 = vmatpush1.msra.mxu0 0.0
  %799 = vmatprep.subr.mxu0 0.0
  %800 = vmatpush1.msra.mxu0 0.0
  %801 = vmatprep.subr.mxu0 0.0
  %802 = vmatpush1.msra.mxu0 0.0
  %803 = vmatprep.subr.mxu0 0.0
  %804 = vmatpush1.msra.mxu0 0.0
  %805 = vmatprep.subr.mxu0 0.0
  %806 = vmatpush1.msra.mxu0 0.0
  %807 = vmatprep.subr.mxu0 0.0
  %808 = vmatpush1.msra.mxu0 0.0
  %809 = vmatprep.subr.mxu0 0.0
  %810 = vmatpush1.msra.mxu0 0.0
  %811 = vmatprep.subr.mxu0 0.0
  %812 = vmatpush1.msra.mxu0 0.0
  %813 = vmatprep.subr.mxu0 0.0
  %814 = vmatpush1.msra.mxu0 0.0
  %815 = vmatprep.subr.mxu0 0.0
  %816 = vmatpush1.msra.mxu0 0.0
  %817 = vmatprep.subr.mxu0 0.0
  %818 = vmatpush1.msra.mxu0 0.0
  %819 = vmatprep.subr.mxu0 0.0
  %820 = vmatpush1.msra.mxu0 0.0
  %821 = vmatprep.subr.mxu0 0.0
  %822 = vmatpush1.msra.mxu0 0.0
  %823 = vmatprep.subr.mxu0 0.0
  %824 = vmatpush1.msra.mxu0 0.0
  %825 = vmatprep.subr.mxu0 0.0
  %826 = vmatpush1.msra.mxu0 0.0
  %827 = vmatprep.subr.mxu0 0.0
  %828 = vmatpush1.msra.mxu0 0.0
  %829 = vmatprep.subr.mxu0 0.0
  %830 = vmatpush1.msra.mxu0 0.0
  %831 = vmatprep.mubr.f32.mxu0 0.0
  %832 = vmatmul.mubr.f32.gmra.mrb[0].mxu0 %v765
  %v833 = vpop.f32.mrb[0].mxu0
  %v834 = vadd.f32 0.0, %v833
  %v835 = vpop.f32.mrb[0].mxu0
  %836 = vdwg.mxu0
  %v837 = vadd.f32 %v764, %v834
  %v838 = vtanh.pop %v837
  %v839 = vxor.u32 %v837, 2147483648
  %v840 = vmul.f32 %v839, 1.442695
  %v841 = vpow.pop %v840
  %v842 = vadd.f32 %v841, 1.0
  %v843 = vrcp.pop %v842
  %v844 = vmul.f32 1.0, %v843
  %v845 = vsel %vm54, %v838, %v844
  %v846 = vmul.f32 %v845, %v750
  %848 = vrot.lane.b32.xlu0 %v845, 64
  %v849 = vpop.permute.xlu0 %848
  %v851 = vmul.f32 %v845, %v849
  %853 = vrot.lane.b32.xlu0 %v851, 32
  %v854 = vpop.permute.xlu0 %853
  %v856 = vadd.f32 %v846, %v854
  %v857 = vtanh.pop %v856
  %859 = vrot.lane.b32.xlu0 %v857, 64
  %v860 = vpop.permute.xlu0 %859
  %v862 = vmul.f32 %v845, %v860
  %864 = vrot.lane.b32.xlu0 %v862, 32
  %v865 = vpop.permute.xlu0 %864
  %s867 = scalar_lea.vmem [#allocation4], 32
  %868 = vst.msk [vmem:[%s867] sm:$0xff] %vm74, %v865
  %s869 = scalar_lea.vmem [#allocation2], 40
  %v870 = vld [vmem:[%s869] sm:$0xff]
  %v871 = vsel %vm74, %v865, 0
  %873 = vmatprep.subr.mxu0 0.0
  %874 = vmatpush1.msra.mxu0 %v336
  %875 = vmatprep.subr.mxu0 0.0
  %876 = vmatpush1.msra.mxu0 %v337
  %877 = vmatprep.subr.mxu0 0.0
  %878 = vmatpush1.msra.mxu0 %v338
  %879 = vmatprep.subr.mxu0 0.0
  %880 = vmatpush1.msra.mxu0 %v339
  %881 = vmatprep.subr.mxu0 0.0
  %882 = vmatpush1.msra.mxu0 0.0
  %883 = vmatprep.subr.mxu0 0.0
  %884 = vmatpush1.msra.mxu0 0.0
  %885 = vmatprep.subr.mxu0 0.0
  %886 = vmatpush1.msra.mxu0 0.0
  %887 = vmatprep.subr.mxu0 0.0
  %888 = vmatpush1.msra.mxu0 0.0
  %889 = vmatprep.subr.mxu0 0.0
  %890 = vmatpush1.msra.mxu0 0.0
  %891 = vmatprep.subr.mxu0 0.0
  %892 = vmatpush1.msra.mxu0 0.0
  %893 = vmatprep.subr.mxu0 0.0
  %894 = vmatpush1.msra.mxu0 0.0
  %895 = vmatprep.subr.mxu0 0.0
  %896 = vmatpush1.msra.mxu0 0.0
  %897 = vmatprep.subr.mxu0 0.0
  %898 = vmatpush1.msra.mxu0 0.0
  %899 = vmatprep.subr.mxu0 0.0
  %900 = vmatpush1.msra.mxu0 0.0
  %901 = vmatprep.subr.mxu0 0.0
  %902 = vmatpush1.msra.mxu0 0.0
  %903 = vmatprep.subr.mxu0 0.0
  %904 = vmatpush1.msra.mxu0 0.0
  %905 = vmatprep.subr.mxu0 0.0
  %906 = vmatpush1.msra.mxu0 0.0
  %907 = vmatprep.subr.mxu0 0.0
  %908 = vmatpush1.msra.mxu0 0.0
  %909 = vmatprep.subr.mxu0 0.0
  %910 = vmatpush1.msra.mxu0 0.0
  %911 = vmatprep.subr.mxu0 0.0
  %912 = vmatpush1.msra.mxu0 0.0
  %913 = vmatprep.subr.mxu0 0.0
  %914 = vmatpush1.msra.mxu0 0.0
  %915 = vmatprep.subr.mxu0 0.0
  %916 = vmatpush1.msra.mxu0 0.0
  %917 = vmatprep.subr.mxu0 0.0
  %918 = vmatpush1.msra.mxu0 0.0
  %919 = vmatprep.subr.mxu0 0.0
  %920 = vmatpush1.msra.mxu0 0.0
  %921 = vmatprep.subr.mxu0 0.0
  %922 = vmatpush1.msra.mxu0 0.0
  %923 = vmatprep.subr.mxu0 0.0
  %924 = vmatpush1.msra.mxu0 0.0
  %925 = vmatprep.subr.mxu0 0.0
  %926 = vmatpush1.msra.mxu0 0.0
  %927 = vmatprep.subr.mxu0 0.0
  %928 = vmatpush1.msra.mxu0 0.0
  %929 = vmatprep.subr.mxu0 0.0
  %930 = vmatpush1.msra.mxu0 0.0
  %931 = vmatprep.subr.mxu0 0.0
  %932 = vmatpush1.msra.mxu0 0.0
  %933 = vmatprep.subr.mxu0 0.0
  %934 = vmatpush1.msra.mxu0 0.0
  %935 = vmatprep.subr.mxu0 0.0
  %936 = vmatpush1.msra.mxu0 0.0
  %937 = vmatprep.mubr.f32.mxu0 0.0
  %938 = vmatmul.mubr.f32.gmra.mrb[0].mxu0 %v871
  %v939 = vpop.f32.mrb[0].mxu0
  %v940 = vadd.f32 0.0, %v939
  %v941 = vpop.f32.mrb[0].mxu0
  %942 = vdwg.mxu0
  %v943 = vadd.f32 %v870, %v940
  %v944 = vtanh.pop %v943
  %v945 = vxor.u32 %v943, 2147483648
  %v946 = vmul.f32 %v945, 1.442695
  %v947 = vpow.pop %v946
  %v948 = vadd.f32 %v947, 1.0
  %v949 = vrcp.pop %v948
  %v950 = vmul.f32 1.0, %v949
  %v951 = vsel %vm54, %v944, %v950
  %v952 = vmul.f32 %v951, %v856
  %954 = vrot.lane.b32.xlu0 %v951, 64
  %v955 = vpop.permute.xlu0 %954
  %v957 = vmul.f32 %v951, %v955
  %959 = vrot.lane.b32.xlu0 %v957, 32
  %v960 = vpop.permute.xlu0 %959
  %v962 = vadd.f32 %v952, %v960
  %v963 = vtanh.pop %v962
  %965 = vrot.lane.b32.xlu0 %v963, 64
  %v966 = vpop.permute.xlu0 %965
  %v968 = vmul.f32 %v951, %v966
  %970 = vrot.lane.b32.xlu0 %v968, 32
  %v971 = vpop.permute.xlu0 %970
  %s973 = scalar_lea.vmem [#allocation4], 40
  %974 = vst.msk [vmem:[%s973] sm:$0xff] %vm74, %v971
  %s975 = scalar_lea.vmem [#allocation2], 48
  %v976 = vld [vmem:[%s975] sm:$0xff]
  %v977 = vsel %vm74, %v971, 0
  %979 = vmatprep.subr.mxu0 0.0
  %980 = vmatpush1.msra.mxu0 %v336
  %981 = vmatprep.subr.mxu0 0.0
  %982 = vmatpush1.msra.mxu0 %v337
  %983 = vmatprep.subr.mxu0 0.0
  %984 = vmatpush1.msra.mxu0 %v338
  %985 = vmatprep.subr.mxu0 0.0
  %986 = vmatpush1.msra.mxu0 %v339
  %987 = vmatprep.subr.mxu0 0.0
  %988 = vmatpush1.msra.mxu0 0.0
  %989 = vmatprep.subr.mxu0 0.0
  %990 = vmatpush1.msra.mxu0 0.0
  %991 = vmatprep.subr.mxu0 0.0
  %992 = vmatpush1.msra.mxu0 0.0
  %993 = vmatprep.subr.mxu0 0.0
  %994 = vmatpush1.msra.mxu0 0.0
  %995 = vmatprep.subr.mxu0 0.0
  %996 = vmatpush1.msra.mxu0 0.0
  %997 = vmatprep.subr.mxu0 0.0
  %998 = vmatpush1.msra.mxu0 0.0
  %999 = vmatprep.subr.mxu0 0.0
  %1000 = vmatpush1.msra.mxu0 0.0
  %1001 = vmatprep.subr.mxu0 0.0
  %1002 = vmatpush1.msra.mxu0 0.0
  %1003 = vmatprep.subr.mxu0 0.0
  %1004 = vmatpush1.msra.mxu0 0.0
  %1005 = vmatprep.subr.mxu0 0.0
  %1006 = vmatpush1.msra.mxu0 0.0
  %1007 = vmatprep.subr.mxu0 0.0
  %1008 = vmatpush1.msra.mxu0 0.0
  %1009 = vmatprep.subr.mxu0 0.0
  %1010 = vmatpush1.msra.mxu0 0.0
  %1011 = vmatprep.subr.mxu0 0.0
  %1012 = vmatpush1.msra.mxu0 0.0
  %1013 = vmatprep.subr.mxu0 0.0
  %1014 = vmatpush1.msra.mxu0 0.0
  %1015 = vmatprep.subr.mxu0 0.0
  %1016 = vmatpush1.msra.mxu0 0.0
  %1017 = vmatprep.subr.mxu0 0.0
  %1018 = vmatpush1.msra.mxu0 0.0
  %1019 = vmatprep.subr.mxu0 0.0
  %1020 = vmatpush1.msra.mxu0 0.0
  %1021 = vmatprep.subr.mxu0 0.0
  %1022 = vmatpush1.msra.mxu0 0.0
  %1023 = vmatprep.subr.mxu0 0.0
  %1024 = vmatpush1.msra.mxu0 0.0
  %1025 = vmatprep.subr.mxu0 0.0
  %1026 = vmatpush1.msra.mxu0 0.0
  %1027 = vmatprep.subr.mxu0 0.0
  %1028 = vmatpush1.msra.mxu0 0.0
  %1029 = vmatprep.subr.mxu0 0.0
  %1030 = vmatpush1.msra.mxu0 0.0
  %1031 = vmatprep.subr.mxu0 0.0
  %1032 = vmatpush1.msra.mxu0 0.0
  %1033 = vmatprep.subr.mxu0 0.0
  %1034 = vmatpush1.msra.mxu0 0.0
  %1035 = vmatprep.subr.mxu0 0.0
  %1036 = vmatpush1.msra.mxu0 0.0
  %1037 = vmatprep.subr.mxu0 0.0
  %1038 = vmatpush1.msra.mxu0 0.0
  %1039 = vmatprep.subr.mxu0 0.0
  %1040 = vmatpush1.msra.mxu0 0.0
  %1041 = vmatprep.subr.mxu0 0.0
  %1042 = vmatpush1.msra.mxu0 0.0
  %1043 = vmatprep.mubr.f32.mxu0 0.0
  %1044 = vmatmul.mubr.f32.gmra.mrb[0].mxu0 %v977
  %v1045 = vpop.f32.mrb[0].mxu0
  %v1046 = vadd.f32 0.0, %v1045
  %v1047 = vpop.f32.mrb[0].mxu0
  %1048 = vdwg.mxu0
  %v1049 = vadd.f32 %v976, %v1046
  %v1050 = vtanh.pop %v1049
  %v1051 = vxor.u32 %v1049, 2147483648
  %v1052 = vmul.f32 %v1051, 1.442695
  %v1053 = vpow.pop %v1052
  %v1054 = vadd.f32 %v1053, 1.0
  %v1055 = vrcp.pop %v1054
  %v1056 = vmul.f32 1.0, %v1055
  %v1057 = vsel %vm54, %v1050, %v1056
  %v1058 = vmul.f32 %v1057, %v962
  %1060 = vrot.lane.b32.xlu0 %v1057, 64
  %v1061 = vpop.permute.xlu0 %1060
  %v1063 = vmul.f32 %v1057, %v1061
  %1065 = vrot.lane.b32.xlu0 %v1063, 32
  %v1066 = vpop.permute.xlu0 %1065
  %v1068 = vadd.f32 %v1058, %v1066
  %v1069 = vtanh.pop %v1068
  %1071 = vrot.lane.b32.xlu0 %v1069, 64
  %v1072 = vpop.permute.xlu0 %1071
  %v1074 = vmul.f32 %v1057, %v1072
  %1076 = vrot.lane.b32.xlu0 %v1074, 32
  %v1077 = vpop.permute.xlu0 %1076
  %s1079 = scalar_lea.vmem [#allocation4], 48
  %1080 = vst.msk [vmem:[%s1079] sm:$0xff] %vm74, %v1077
  %s1081 = scalar_lea.vmem [#allocation2], 56
  %v1082 = vld [vmem:[%s1081] sm:$0xff]
  %v1083 = vsel %vm74, %v1077, 0
  %1085 = vmatprep.subr.mxu0 0.0
  %1086 = vmatpush1.msra.mxu0 %v336
  %1087 = vmatprep.subr.mxu0 0.0
  %1088 = vmatpush1.msra.mxu0 %v337
  %1089 = vmatprep.subr.mxu0 0.0
  %1090 = vmatpush1.msra.mxu0 %v338
  %1091 = vmatprep.subr.mxu0 0.0
  %1092 = vmatpush1.msra.mxu0 %v339
  %1093 = vmatprep.subr.mxu0 0.0
  %1094 = vmatpush1.msra.mxu0 0.0
  %1095 = vmatprep.subr.mxu0 0.0
  %1096 = vmatpush1.msra.mxu0 0.0
  %1097 = vmatprep.subr.mxu0 0.0
  %1098 = vmatpush1.msra.mxu0 0.0
  %1099 = vmatprep.subr.mxu0 0.0
  %1100 = vmatpush1.msra.mxu0 0.0
  %1101 = vmatprep.subr.mxu0 0.0
  %1102 = vmatpush1.msra.mxu0 0.0
  %1103 = vmatprep.subr.mxu0 0.0
  %1104 = vmatpush1.msra.mxu0 0.0
  %1105 = vmatprep.subr.mxu0 0.0
  %1106 = vmatpush1.msra.mxu0 0.0
  %1107 = vmatprep.subr.mxu0 0.0
  %1108 = vmatpush1.msra.mxu0 0.0
  %1109 = vmatprep.subr.mxu0 0.0
  %1110 = vmatpush1.msra.mxu0 0.0
  %1111 = vmatprep.subr.mxu0 0.0
  %1112 = vmatpush1.msra.mxu0 0.0
  %1113 = vmatprep.subr.mxu0 0.0
  %1114 = vmatpush1.msra.mxu0 0.0
  %1115 = vmatprep.subr.mxu0 0.0
  %1116 = vmatpush1.msra.mxu0 0.0
  %1117 = vmatprep.subr.mxu0 0.0
  %1118 = vmatpush1.msra.mxu0 0.0
  %1119 = vmatprep.subr.mxu0 0.0
  %1120 = vmatpush1.msra.mxu0 0.0
  %1121 = vmatprep.subr.mxu0 0.0
  %1122 = vmatpush1.msra.mxu0 0.0
  %1123 = vmatprep.subr.mxu0 0.0
  %1124 = vmatpush1.msra.mxu0 0.0
  %1125 = vmatprep.subr.mxu0 0.0
  %1126 = vmatpush1.msra.mxu0 0.0
  %1127 = vmatprep.subr.mxu0 0.0
  %1128 = vmatpush1.msra.mxu0 0.0
  %1129 = vmatprep.subr.mxu0 0.0
  %1130 = vmatpush1.msra.mxu0 0.0
  %1131 = vmatprep.subr.mxu0 0.0
  %1132 = vmatpush1.msra.mxu0 0.0
  %1133 = vmatprep.subr.mxu0 0.0
  %1134 = vmatpush1.msra.mxu0 0.0
  %1135 = vmatprep.subr.mxu0 0.0
  %1136 = vmatpush1.msra.mxu0 0.0
  %1137 = vmatprep.subr.mxu0 0.0
  %1138 = vmatpush1.msra.mxu0 0.0
  %1139 = vmatprep.subr.mxu0 0.0
  %1140 = vmatpush1.msra.mxu0 0.0
  %1141 = vmatprep.subr.mxu0 0.0
  %1142 = vmatpush1.msra.mxu0 0.0
  %1143 = vmatprep.subr.mxu0 0.0
  %1144 = vmatpush1.msra.mxu0 0.0
  %1145 = vmatprep.subr.mxu0 0.0
  %1146 = vmatpush1.msra.mxu0 0.0
  %1147 = vmatprep.subr.mxu0 0.0
  %1148 = vmatpush1.msra.mxu0 0.0
  %1149 = vmatprep.mubr.f32.mxu0 0.0
  %1150 = vmatmul.mubr.f32.gmra.mrb[0].mxu0 %v1083
  %v1151 = vpop.f32.mrb[0].mxu0
  %v1152 = vadd.f32 0.0, %v1151
  %v1153 = vpop.f32.mrb[0].mxu0
  %1154 = vdwg.mxu0
  %v1155 = vadd.f32 %v1082, %v1152
  %v1156 = vtanh.pop %v1155
  %v1157 = vxor.u32 %v1155, 2147483648
  %v1158 = vmul.f32 %v1157, 1.442695
  %v1159 = vpow.pop %v1158
  %v1160 = vadd.f32 %v1159, 1.0
  %v1161 = vrcp.pop %v1160
  %v1162 = vmul.f32 1.0, %v1161
  %v1163 = vsel %vm54, %v1156, %v1162
  %v1164 = vmul.f32 %v1163, %v1068
  %1166 = vrot.lane.b32.xlu0 %v1163, 64
  %v1167 = vpop.permute.xlu0 %1166
  %v1169 = vmul.f32 %v1163, %v1167
  %1171 = vrot.lane.b32.xlu0 %v1169, 32
  %v1172 = vpop.permute.xlu0 %1171
  %v1174 = vadd.f32 %v1164, %v1172
  %v1175 = vtanh.pop %v1174
  %1177 = vrot.lane.b32.xlu0 %v1175, 64
  %v1178 = vpop.permute.xlu0 %1177
  %v1180 = vmul.f32 %v1163, %v1178
  %1182 = vrot.lane.b32.xlu0 %v1180, 32
  %v1183 = vpop.permute.xlu0 %1182
  %s1185 = scalar_lea.vmem [#allocation4], 56
  %1186 = vst.msk [vmem:[%s1185] sm:$0xff] %vm74, %v1183
  %v1187 = vld [vmem:[%s5] sm:$0xff]
  %v1188 = vld [vmem:[%s5 + $0x8] sm:$0xff]
  %v1189 = vld [vmem:[%s5 + $0x10] sm:$0xff]
  %v1190 = vld [vmem:[%s5 + $0x18] sm:$0xff]
  %s1191 = scalar_lea.vmem [#allocation3], 56
  %v1192 = vld [vmem:[%s1191] sm:$0xff]
  %1193 = vmatprep.subr.mxu0 0.0
  %1194 = vmatpush1.msra.mxu0 %v1187
  %1195 = vmatprep.subr.mxu0 0.0
  %1196 = vmatpush1.msra.mxu0 %v1188
  %1197 = vmatprep.subr.mxu0 0.0
  %1198 = vmatpush1.msra.mxu0 %v1189
  %1199 = vmatprep.subr.mxu0 0.0
  %1200 = vmatpush1.msra.mxu0 %v1190
  %1201 = vmatprep.subr.mxu0 0.0
  %1202 = vmatpush1.msra.mxu0 0.0
  %1203 = vmatprep.subr.mxu0 0.0
  %1204 = vmatpush1.msra.mxu0 0.0
  %1205 = vmatprep.subr.mxu0 0.0
  %1206 = vmatpush1.msra.mxu0 0.0
  %1207 = vmatprep.subr.mxu0 0.0
  %1208 = vmatpush1.msra.mxu0 0.0
  %1209 = vmatprep.subr.mxu0 0.0
  %1210 = vmatpush1.msra.mxu0 0.0
  %1211 = vmatprep.subr.mxu0 0.0
  %1212 = vmatpush1.msra.mxu0 0.0
  %1213 = vmatprep.subr.mxu0 0.0
  %1214 = vmatpush1.msra.mxu0 0.0
  %1215 = vmatprep.subr.mxu0 0.0
  %1216 = vmatpush1.msra.mxu0 0.0
  %1217 = vmatprep.subr.mxu0 0.0
  %1218 = vmatpush1.msra.mxu0 0.0
  %1219 = vmatprep.subr.mxu0 0.0
  %1220 = vmatpush1.msra.mxu0 0.0
  %1221 = vmatprep.subr.mxu0 0.0
  %1222 = vmatpush1.msra.mxu0 0.0
  %1223 = vmatprep.subr.mxu0 0.0
  %1224 = vmatpush1.msra.mxu0 0.0
  %1225 = vmatprep.subr.mxu0 0.0
  %1226 = vmatpush1.msra.mxu0 0.0
  %1227 = vmatprep.subr.mxu0 0.0
  %1228 = vmatpush1.msra.mxu0 0.0
  %1229 = vmatprep.subr.mxu0 0.0
  %1230 = vmatpush1.msra.mxu0 0.0
  %1231 = vmatprep.subr.mxu0 0.0
  %1232 = vmatpush1.msra.mxu0 0.0
  %1233 = vmatprep.subr.mxu0 0.0
  %1234 = vmatpush1.msra.mxu0 0.0
  %1235 = vmatprep.subr.mxu0 0.0
  %1236 = vmatpush1.msra.mxu0 0.0
  %1237 = vmatprep.subr.mxu0 0.0
  %1238 = vmatpush1.msra.mxu0 0.0
  %1239 = vmatprep.subr.mxu0 0.0
  %1240 = vmatpush1.msra.mxu0 0.0
  %1241 = vmatprep.subr.mxu0 0.0
  %1242 = vmatpush1.msra.mxu0 0.0
  %1243 = vmatprep.subr.mxu0 0.0
  %1244 = vmatpush1.msra.mxu0 0.0
  %1245 = vmatprep.subr.mxu0 0.0
  %1246 = vmatpush1.msra.mxu0 0.0
  %1247 = vmatprep.subr.mxu0 0.0
  %1248 = vmatpush1.msra.mxu0 0.0
  %1249 = vmatprep.subr.mxu0 0.0
  %1250 = vmatpush1.msra.mxu0 0.0
  %1251 = vmatprep.subr.mxu0 0.0
  %1252 = vmatpush1.msra.mxu0 0.0
  %1253 = vmatprep.subr.mxu0 0.0
  %1254 = vmatpush1.msra.mxu0 0.0
  %1255 = vmatprep.subr.mxu0 0.0
  %1256 = vmatpush1.msra.mxu0 0.0
  %1257 = vmatprep.mubr.f32.mxu0 0.0
  %1258 = vmatmul.mubr.f32.gmra.mrb[0].mxu0 %v342
  %v1259 = vpop.f32.mrb[0].mxu0
  %v1260 = vadd.f32 0.0, %v1259
  %v1261 = vpop.f32.mrb[0].mxu0
  %1262 = vdwg.mxu0
  %v1263 = vadd.f32 %v1192, %v1260
  %v1264 = vtanh.pop %v1263
  %v1265 = vxor.u32 %v1263, 2147483648
  %v1266 = vmul.f32 %v1265, 1.442695
  %v1267 = vpow.pop %v1266
  %v1268 = vadd.f32 %v1267, 1.0
  %v1269 = vrcp.pop %v1268
  %v1270 = vmul.f32 1.0, %v1269
  %v1271 = vsel %vm54, %v1264, %v1270
  %v1272 = vmul.f32 %v1271, 0.0
  %1274 = vrot.lane.b32.xlu0 %v1271, 64
  %v1275 = vpop.permute.xlu0 %1274
  %v1277 = vmul.f32 %v1271, %v1275
  %1279 = vrot.lane.b32.xlu0 %v1277, 32
  %v1280 = vpop.permute.xlu0 %1279
  %v1282 = vadd.f32 %v1272, %v1280
  %v1283 = vtanh.pop %v1282
  %1285 = vrot.lane.b32.xlu0 %v1283, 64
  %v1286 = vpop.permute.xlu0 %1285
  %v1288 = vmul.f32 %v1271, %v1286
  %1290 = vrot.lane.b32.xlu0 %v1288, 32
  %v1291 = vpop.permute.xlu0 %1290
  %s1293 = scalar_lea.vmem [#allocation5], 56
  %1294 = vst.msk [vmem:[%s1293] sm:$0xff] %vm74, %v1291
  %s1295 = scalar_lea.vmem [#allocation3], 48
  %v1296 = vld [vmem:[%s1295] sm:$0xff]
  %v1297 = vsel %vm74, %v1291, 0
  %1299 = vmatprep.subr.mxu0 0.0
  %1300 = vmatpush1.msra.mxu0 %v1187
  %1301 = vmatprep.subr.mxu0 0.0
  %1302 = vmatpush1.msra.mxu0 %v1188
  %1303 = vmatprep.subr.mxu0 0.0
  %1304 = vmatpush1.msra.mxu0 %v1189
  %1305 = vmatprep.subr.mxu0 0.0
  %1306 = vmatpush1.msra.mxu0 %v1190
  %1307 = vmatprep.subr.mxu0 0.0
  %1308 = vmatpush1.msra.mxu0 0.0
  %1309 = vmatprep.subr.mxu0 0.0
  %1310 = vmatpush1.msra.mxu0 0.0
  %1311 = vmatprep.subr.mxu0 0.0
  %1312 = vmatpush1.msra.mxu0 0.0
  %1313 = vmatprep.subr.mxu0 0.0
  %1314 = vmatpush1.msra.mxu0 0.0
  %1315 = vmatprep.subr.mxu0 0.0
  %1316 = vmatpush1.msra.mxu0 0.0
  %1317 = vmatprep.subr.mxu0 0.0
  %1318 = vmatpush1.msra.mxu0 0.0
  %1319 = vmatprep.subr.mxu0 0.0
  %1320 = vmatpush1.msra.mxu0 0.0
  %1321 = vmatprep.subr.mxu0 0.0
  %1322 = vmatpush1.msra.mxu0 0.0
  %1323 = vmatprep.subr.mxu0 0.0
  %1324 = vmatpush1.msra.mxu0 0.0
  %1325 = vmatprep.subr.mxu0 0.0
  %1326 = vmatpush1.msra.mxu0 0.0
  %1327 = vmatprep.subr.mxu0 0.0
  %1328 = vmatpush1.msra.mxu0 0.0
  %1329 = vmatprep.subr.mxu0 0.0
  %1330 = vmatpush1.msra.mxu0 0.0
  %1331 = vmatprep.subr.mxu0 0.0
  %1332 = vmatpush1.msra.mxu0 0.0
  %1333 = vmatprep.subr.mxu0 0.0
  %1334 = vmatpush1.msra.mxu0 0.0
  %1335 = vmatprep.subr.mxu0 0.0
  %1336 = vmatpush1.msra.mxu0 0.0
  %1337 = vmatprep.subr.mxu0 0.0
  %1338 = vmatpush1.msra.mxu0 0.0
  %1339 = vmatprep.subr.mxu0 0.0
  %1340 = vmatpush1.msra.mxu0 0.0
  %1341 = vmatprep.subr.mxu0 0.0
  %1342 = vmatpush1.msra.mxu0 0.0
  %1343 = vmatprep.subr.mxu0 0.0
  %1344 = vmatpush1.msra.mxu0 0.0
  %1345 = vmatprep.subr.mxu0 0.0
  %1346 = vmatpush1.msra.mxu0 0.0
  %1347 = vmatprep.subr.mxu0 0.0
  %1348 = vmatpush1.msra.mxu0 0.0
  %1349 = vmatprep.subr.mxu0 0.0
  %1350 = vmatpush1.msra.mxu0 0.0
  %1351 = vmatprep.subr.mxu0 0.0
  %1352 = vmatpush1.msra.mxu0 0.0
  %1353 = vmatprep.subr.mxu0 0.0
  %1354 = vmatpush1.msra.mxu0 0.0
  %1355 = vmatprep.subr.mxu0 0.0
  %1356 = vmatpush1.msra.mxu0 0.0
  %1357 = vmatprep.subr.mxu0 0.0
  %1358 = vmatpush1.msra.mxu0 0.0
  %1359 = vmatprep.subr.mxu0 0.0
  %1360 = vmatpush1.msra.mxu0 0.0
  %1361 = vmatprep.subr.mxu0 0.0
  %1362 = vmatpush1.msra.mxu0 0.0
  %1363 = vmatprep.mubr.f32.mxu0 0.0
  %1364 = vmatmul.mubr.f32.gmra.mrb[0].mxu0 %v1297
  %v1365 = vpop.f32.mrb[0].mxu0
  %v1366 = vadd.f32 0.0, %v1365
  %v1367 = vpop.f32.mrb[0].mxu0
  %1368 = vdwg.mxu0
  %v1369 = vadd.f32 %v1296, %v1366
  %v1370 = vtanh.pop %v1369
  %v1371 = vxor.u32 %v1369, 2147483648
  %v1372 = vmul.f32 %v1371, 1.442695
  %v1373 = vpow.pop %v1372
  %v1374 = vadd.f32 %v1373, 1.0
  %v1375 = vrcp.pop %v1374
  %v1376 = vmul.f32 1.0, %v1375
  %v1377 = vsel %vm54, %v1370, %v1376
  %v1378 = vmul.f32 %v1377, %v1282
  %1380 = vrot.lane.b32.xlu0 %v1377, 64
  %v1381 = vpop.permute.xlu0 %1380
  %v1383 = vmul.f32 %v1377, %v1381
  %1385 = vrot.lane.b32.xlu0 %v1383, 32
  %v1386 = vpop.permute.xlu0 %1385
  %v1388 = vadd.f32 %v1378, %v1386
  %v1389 = vtanh.pop %v1388
  %1391 = vrot.lane.b32.xlu0 %v1389, 64
  %v1392 = vpop.permute.xlu0 %1391
  %v1394 = vmul.f32 %v1377, %v1392
  %1396 = vrot.lane.b32.xlu0 %v1394, 32
  %v1397 = vpop.permute.xlu0 %1396
  %s1399 = scalar_lea.vmem [#allocation5], 48
  %1400 = vst.msk [vmem:[%s1399] sm:$0xff] %vm74, %v1397
  %s1401 = scalar_lea.vmem [#allocation3], 40
  %v1402 = vld [vmem:[%s1401] sm:$0xff]
  %v1403 = vsel %vm74, %v1397, 0
  %1405 = vmatprep.subr.mxu0 0.0
  %1406 = vmatpush1.msra.mxu0 %v1187
  %1407 = vmatprep.subr.mxu0 0.0
  %1408 = vmatpush1.msra.mxu0 %v1188
  %1409 = vmatprep.subr.mxu0 0.0
  %1410 = vmatpush1.msra.mxu0 %v1189
  %1411 = vmatprep.subr.mxu0 0.0
  %1412 = vmatpush1.msra.mxu0 %v1190
  %1413 = vmatprep.subr.mxu0 0.0
  %1414 = vmatpush1.msra.mxu0 0.0
  %1415 = vmatprep.subr.mxu0 0.0
  %1416 = vmatpush1.msra.mxu0 0.0
  %1417 = vmatprep.subr.mxu0 0.0
  %1418 = vmatpush1.msra.mxu0 0.0
  %1419 = vmatprep.subr.mxu0 0.0
  %1420 = vmatpush1.msra.mxu0 0.0
  %1421 = vmatprep.subr.mxu0 0.0
  %1422 = vmatpush1.msra.mxu0 0.0
  %1423 = vmatprep.subr.mxu0 0.0
  %1424 = vmatpush1.msra.mxu0 0.0
  %1425 = vmatprep.subr.mxu0 0.0
  %1426 = vmatpush1.msra.mxu0 0.0
  %1427 = vmatprep.subr.mxu0 0.0
  %1428 = vmatpush1.msra.mxu0 0.0
  %1429 = vmatprep.subr.mxu0 0.0
  %1430 = vmatpush1.msra.mxu0 0.0
  %1431 = vmatprep.subr.mxu0 0.0
  %1432 = vmatpush1.msra.mxu0 0.0
  %1433 = vmatprep.subr.mxu0 0.0
  %1434 = vmatpush1.msra.mxu0 0.0
  %1435 = vmatprep.subr.mxu0 0.0
  %1436 = vmatpush1.msra.mxu0 0.0
  %1437 = vmatprep.subr.mxu0 0.0
  %1438 = vmatpush1.msra.mxu0 0.0
  %1439 = vmatprep.subr.mxu0 0.0
  %1440 = vmatpush1.msra.mxu0 0.0
  %1441 = vmatprep.subr.mxu0 0.0
  %1442 = vmatpush1.msra.mxu0 0.0
  %1443 = vmatprep.subr.mxu0 0.0
  %1444 = vmatpush1.msra.mxu0 0.0
  %1445 = vmatprep.subr.mxu0 0.0
  %1446 = vmatpush1.msra.mxu0 0.0
  %1447 = vmatprep.subr.mxu0 0.0
  %1448 = vmatpush1.msra.mxu0 0.0
  %1449 = vmatprep.subr.mxu0 0.0
  %1450 = vmatpush1.msra.mxu0 0.0
  %1451 = vmatprep.subr.mxu0 0.0
  %1452 = vmatpush1.msra.mxu0 0.0
  %1453 = vmatprep.subr.mxu0 0.0
  %1454 = vmatpush1.msra.mxu0 0.0
  %1455 = vmatprep.subr.mxu0 0.0
  %1456 = vmatpush1.msra.mxu0 0.0
  %1457 = vmatprep.subr.mxu0 0.0
  %1458 = vmatpush1.msra.mxu0 0.0
  %1459 = vmatprep.subr.mxu0 0.0
  %1460 = vmatpush1.msra.mxu0 0.0
  %1461 = vmatprep.subr.mxu0 0.0
  %1462 = vmatpush1.msra.mxu0 0.0
  %1463 = vmatprep.subr.mxu0 0.0
  %1464 = vmatpush1.msra.mxu0 0.0
  %1465 = vmatprep.subr.mxu0 0.0
  %1466 = vmatpush1.msra.mxu0 0.0
  %1467 = vmatprep.subr.mxu0 0.0
  %1468 = vmatpush1.msra.mxu0 0.0
  %1469 = vmatprep.mubr.f32.mxu0 0.0
  %1470 = vmatmul.mubr.f32.gmra.mrb[0].mxu0 %v1403
  %v1471 = vpop.f32.mrb[0].mxu0
  %v1472 = vadd.f32 0.0, %v1471
  %v1473 = vpop.f32.mrb[0].mxu0
  %1474 = vdwg.mxu0
  %v1475 = vadd.f32 %v1402, %v1472
  %v1476 = vtanh.pop %v1475
  %v1477 = vxor.u32 %v1475, 2147483648
  %v1478 = vmul.f32 %v1477, 1.442695
  %v1479 = vpow.pop %v1478
  %v1480 = vadd.f32 %v1479, 1.0
  %v1481 = vrcp.pop %v1480
  %v1482 = vmul.f32 1.0, %v1481
  %v1483 = vsel %vm54, %v1476, %v1482
  %v1484 = vmul.f32 %v1483, %v1388
  %1486 = vrot.lane.b32.xlu0 %v1483, 64
  %v1487 = vpop.permute.xlu0 %1486
  %v1489 = vmul.f32 %v1483, %v1487
  %1491 = vrot.lane.b32.xlu0 %v1489, 32
  %v1492 = vpop.permute.xlu0 %1491
  %v1494 = vadd.f32 %v1484, %v1492
  %v1495 = vtanh.pop %v1494
  %1497 = vrot.lane.b32.xlu0 %v1495, 64
  %v1498 = vpop.permute.xlu0 %1497
  %v1500 = vmul.f32 %v1483, %v1498
  %1502 = vrot.lane.b32.xlu0 %v1500, 32
  %v1503 = vpop.permute.xlu0 %1502
  %s1505 = scalar_lea.vmem [#allocation5], 40
  %1506 = vst.msk [vmem:[%s1505] sm:$0xff] %vm74, %v1503
  %s1507 = scalar_lea.vmem [#allocation3], 32
  %v1508 = vld [vmem:[%s1507] sm:$0xff]
  %v1509 = vsel %vm74, %v1503, 0
  %1511 = vmatprep.subr.mxu0 0.0
  %1512 = vmatpush1.msra.mxu0 %v1187
  %1513 = vmatprep.subr.mxu0 0.0
  %1514 = vmatpush1.msra.mxu0 %v1188
  %1515 = vmatprep.subr.mxu0 0.0
  %1516 = vmatpush1.msra.mxu0 %v1189
  %1517 = vmatprep.subr.mxu0 0.0
  %1518 = vmatpush1.msra.mxu0 %v1190
  %1519 = vmatprep.subr.mxu0 0.0
  %1520 = vmatpush1.msra.mxu0 0.0
  %1521 = vmatprep.subr.mxu0 0.0
  %1522 = vmatpush1.msra.mxu0 0.0
  %1523 = vmatprep.subr.mxu0 0.0
  %1524 = vmatpush1.msra.mxu0 0.0
  %1525 = vmatprep.subr.mxu0 0.0
  %1526 = vmatpush1.msra.mxu0 0.0
  %1527 = vmatprep.subr.mxu0 0.0
  %1528 = vmatpush1.msra.mxu0 0.0
  %1529 = vmatprep.subr.mxu0 0.0
  %1530 = vmatpush1.msra.mxu0 0.0
  %1531 = vmatprep.subr.mxu0 0.0
  %1532 = vmatpush1.msra.mxu0 0.0
  %1533 = vmatprep.subr.mxu0 0.0
  %1534 = vmatpush1.msra.mxu0 0.0
  %1535 = vmatprep.subr.mxu0 0.0
  %1536 = vmatpush1.msra.mxu0 0.0
  %1537 = vmatprep.subr.mxu0 0.0
  %1538 = vmatpush1.msra.mxu0 0.0
  %1539 = vmatprep.subr.mxu0 0.0
  %1540 = vmatpush1.msra.mxu0 0.0
  %1541 = vmatprep.subr.mxu0 0.0
  %1542 = vmatpush1.msra.mxu0 0.0
  %1543 = vmatprep.subr.mxu0 0.0
  %1544 = vmatpush1.msra.mxu0 0.0
  %1545 = vmatprep.subr.mxu0 0.0
  %1546 = vmatpush1.msra.mxu0 0.0
  %1547 = vmatprep.subr.mxu0 0.0
  %1548 = vmatpush1.msra.mxu0 0.0
  %1549 = vmatprep.subr.mxu0 0.0
  %1550 = vmatpush1.msra.mxu0 0.0
  %1551 = vmatprep.subr.mxu0 0.0
  %1552 = vmatpush1.msra.mxu0 0.0
  %1553 = vmatprep.subr.mxu0 0.0
  %1554 = vmatpush1.msra.mxu0 0.0
  %1555 = vmatprep.subr.mxu0 0.0
  %1556 = vmatpush1.msra.mxu0 0.0
  %1557 = vmatprep.subr.mxu0 0.0
  %1558 = vmatpush1.msra.mxu0 0.0
  %1559 = vmatprep.subr.mxu0 0.0
  %1560 = vmatpush1.msra.mxu0 0.0
  %1561 = vmatprep.subr.mxu0 0.0
  %1562 = vmatpush1.msra.mxu0 0.0
  %1563 = vmatprep.subr.mxu0 0.0
  %1564 = vmatpush1.msra.mxu0 0.0
  %1565 = vmatprep.subr.mxu0 0.0
  %1566 = vmatpush1.msra.mxu0 0.0
  %1567 = vmatprep.subr.mxu0 0.0
  %1568 = vmatpush1.msra.mxu0 0.0
  %1569 = vmatprep.subr.mxu0 0.0
  %1570 = vmatpush1.msra.mxu0 0.0
  %1571 = vmatprep.subr.mxu0 0.0
  %1572 = vmatpush1.msra.mxu0 0.0
  %1573 = vmatprep.subr.mxu0 0.0
  %1574 = vmatpush1.msra.mxu0 0.0
  %1575 = vmatprep.mubr.f32.mxu0 0.0
  %1576 = vmatmul.mubr.f32.gmra.mrb[0].mxu0 %v1509
  %v1577 = vpop.f32.mrb[0].mxu0
  %v1578 = vadd.f32 0.0, %v1577
  %v1579 = vpop.f32.mrb[0].mxu0
  %1580 = vdwg.mxu0
  %v1581 = vadd.f32 %v1508, %v1578
  %v1582 = vtanh.pop %v1581
  %v1583 = vxor.u32 %v1581, 2147483648
  %v1584 = vmul.f32 %v1583, 1.442695
  %v1585 = vpow.pop %v1584
  %v1586 = vadd.f32 %v1585, 1.0
  %v1587 = vrcp.pop %v1586
  %v1588 = vmul.f32 1.0, %v1587
  %v1589 = vsel %vm54, %v1582, %v1588
  %v1590 = vmul.f32 %v1589, %v1494
  %1592 = vrot.lane.b32.xlu0 %v1589, 64
  %v1593 = vpop.permute.xlu0 %1592
  %v1595 = vmul.f32 %v1589, %v1593
  %1597 = vrot.lane.b32.xlu0 %v1595, 32
  %v1598 = vpop.permute.xlu0 %1597
  %v1600 = vadd.f32 %v1590, %v1598
  %v1601 = vtanh.pop %v1600
  %1603 = vrot.lane.b32.xlu0 %v1601, 64
  %v1604 = vpop.permute.xlu0 %1603
  %v1606 = vmul.f32 %v1589, %v1604
  %1608 = vrot.lane.b32.xlu0 %v1606, 32
  %v1609 = vpop.permute.xlu0 %1608
  %s1611 = scalar_lea.vmem [#allocation5], 32
  %1612 = vst.msk [vmem:[%s1611] sm:$0xff] %vm74, %v1609
  %s1613 = scalar_lea.vmem [#allocation3], 24
  %v1614 = vld [vmem:[%s1613] sm:$0xff]
  %v1615 = vsel %vm74, %v1609, 0
  %1617 = vmatprep.subr.mxu0 0.0
  %1618 = vmatpush1.msra.mxu0 %v1187
  %1619 = vmatprep.subr.mxu0 0.0
  %1620 = vmatpush1.msra.mxu0 %v1188
  %1621 = vmatprep.subr.mxu0 0.0
  %1622 = vmatpush1.msra.mxu0 %v1189
  %1623 = vmatprep.subr.mxu0 0.0
  %1624 = vmatpush1.msra.mxu0 %v1190
  %1625 = vmatprep.subr.mxu0 0.0
  %1626 = vmatpush1.msra.mxu0 0.0
  %1627 = vmatprep.subr.mxu0 0.0
  %1628 = vmatpush1.msra.mxu0 0.0
  %1629 = vmatprep.subr.mxu0 0.0
  %1630 = vmatpush1.msra.mxu0 0.0
  %1631 = vmatprep.subr.mxu0 0.0
  %1632 = vmatpush1.msra.mxu0 0.0
  %1633 = vmatprep.subr.mxu0 0.0
  %1634 = vmatpush1.msra.mxu0 0.0
  %1635 = vmatprep.subr.mxu0 0.0
  %1636 = vmatpush1.msra.mxu0 0.0
  %1637 = vmatprep.subr.mxu0 0.0
  %1638 = vmatpush1.msra.mxu0 0.0
  %1639 = vmatprep.subr.mxu0 0.0
  %1640 = vmatpush1.msra.mxu0 0.0
  %1641 = vmatprep.subr.mxu0 0.0
  %1642 = vmatpush1.msra.mxu0 0.0
  %1643 = vmatprep.subr.mxu0 0.0
  %1644 = vmatpush1.msra.mxu0 0.0
  %1645 = vmatprep.subr.mxu0 0.0
  %1646 = vmatpush1.msra.mxu0 0.0
  %1647 = vmatprep.subr.mxu0 0.0
  %1648 = vmatpush1.msra.mxu0 0.0
  %1649 = vmatprep.subr.mxu0 0.0
  %1650 = vmatpush1.msra.mxu0 0.0
  %1651 = vmatprep.subr.mxu0 0.0
  %1652 = vmatpush1.msra.mxu0 0.0
  %1653 = vmatprep.subr.mxu0 0.0
  %1654 = vmatpush1.msra.mxu0 0.0
  %1655 = vmatprep.subr.mxu0 0.0
  %1656 = vmatpush1.msra.mxu0 0.0
  %1657 = vmatprep.subr.mxu0 0.0
  %1658 = vmatpush1.msra.mxu0 0.0
  %1659 = vmatprep.subr.mxu0 0.0
  %1660 = vmatpush1.msra.mxu0 0.0
  %1661 = vmatprep.subr.mxu0 0.0
  %1662 = vmatpush1.msra.mxu0 0.0
  %1663 = vmatprep.subr.mxu0 0.0
  %1664 = vmatpush1.msra.mxu0 0.0
  %1665 = vmatprep.subr.mxu0 0.0
  %1666 = vmatpush1.msra.mxu0 0.0
  %1667 = vmatprep.subr.mxu0 0.0
  %1668 = vmatpush1.msra.mxu0 0.0
  %1669 = vmatprep.subr.mxu0 0.0
  %1670 = vmatpush1.msra.mxu0 0.0
  %1671 = vmatprep.subr.mxu0 0.0
  %1672 = vmatpush1.msra.mxu0 0.0
  %1673 = vmatprep.subr.mxu0 0.0
  %1674 = vmatpush1.msra.mxu0 0.0
  %1675 = vmatprep.subr.mxu0 0.0
  %1676 = vmatpush1.msra.mxu0 0.0
  %1677 = vmatprep.subr.mxu0 0.0
  %1678 = vmatpush1.msra.mxu0 0.0
  %1679 = vmatprep.subr.mxu0 0.0
  %1680 = vmatpush1.msra.mxu0 0.0
  %1681 = vmatprep.mubr.f32.mxu0 0.0
  %1682 = vmatmul.mubr.f32.gmra.mrb[0].mxu0 %v1615
  %v1683 = vpop.f32.mrb[0].mxu0
  %v1684 = vadd.f32 0.0, %v1683
  %v1685 = vpop.f32.mrb[0].mxu0
  %1686 = vdwg.mxu0
  %v1687 = vadd.f32 %v1614, %v1684
  %v1688 = vtanh.pop %v1687
  %v1689 = vxor.u32 %v1687, 2147483648
  %v1690 = vmul.f32 %v1689, 1.442695
  %v1691 = vpow.pop %v1690
  %v1692 = vadd.f32 %v1691, 1.0
  %v1693 = vrcp.pop %v1692
  %v1694 = vmul.f32 1.0, %v1693
  %v1695 = vsel %vm54, %v1688, %v1694
  %v1696 = vmul.f32 %v1695, %v1600
  %1698 = vrot.lane.b32.xlu0 %v1695, 64
  %v1699 = vpop.permute.xlu0 %1698
  %v1701 = vmul.f32 %v1695, %v1699
  %1703 = vrot.lane.b32.xlu0 %v1701, 32
  %v1704 = vpop.permute.xlu0 %1703
  %v1706 = vadd.f32 %v1696, %v1704
  %v1707 = vtanh.pop %v1706
  %1709 = vrot.lane.b32.xlu0 %v1707, 64
  %v1710 = vpop.permute.xlu0 %1709
  %v1712 = vmul.f32 %v1695, %v1710
  %1714 = vrot.lane.b32.xlu0 %v1712, 32
  %v1715 = vpop.permute.xlu0 %1714
  %s1717 = scalar_lea.vmem [#allocation5], 24
  %1718 = vst.msk [vmem:[%s1717] sm:$0xff] %vm74, %v1715
  %s1719 = scalar_lea.vmem [#allocation3], 16
  %v1720 = vld [vmem:[%s1719] sm:$0xff]
  %v1721 = vsel %vm74, %v1715, 0
  %1723 = vmatprep.subr.mxu0 0.0
  %1724 = vmatpush1.msra.mxu0 %v1187
  %1725 = vmatprep.subr.mxu0 0.0
  %1726 = vmatpush1.msra.mxu0 %v1188
  %1727 = vmatprep.subr.mxu0 0.0
  %1728 = vmatpush1.msra.mxu0 %v1189
  %1729 = vmatprep.subr.mxu0 0.0
  %1730 = vmatpush1.msra.mxu0 %v1190
  %1731 = vmatprep.subr.mxu0 0.0
  %1732 = vmatpush1.msra.mxu0 0.0
  %1733 = vmatprep.subr.mxu0 0.0
  %1734 = vmatpush1.msra.mxu0 0.0
  %1735 = vmatprep.subr.mxu0 0.0
  %1736 = vmatpush1.msra.mxu0 0.0
  %1737 = vmatprep.subr.mxu0 0.0
  %1738 = vmatpush1.msra.mxu0 0.0
  %1739 = vmatprep.subr.mxu0 0.0
  %1740 = vmatpush1.msra.mxu0 0.0
  %1741 = vmatprep.subr.mxu0 0.0
  %1742 = vmatpush1.msra.mxu0 0.0
  %1743 = vmatprep.subr.mxu0 0.0
  %1744 = vmatpush1.msra.mxu0 0.0
  %1745 = vmatprep.subr.mxu0 0.0
  %1746 = vmatpush1.msra.mxu0 0.0
  %1747 = vmatprep.subr.mxu0 0.0
  %1748 = vmatpush1.msra.mxu0 0.0
  %1749 = vmatprep.subr.mxu0 0.0
  %1750 = vmatpush1.msra.mxu0 0.0
  %1751 = vmatprep.subr.mxu0 0.0
  %1752 = vmatpush1.msra.mxu0 0.0
  %1753 = vmatprep.subr.mxu0 0.0
  %1754 = vmatpush1.msra.mxu0 0.0
  %1755 = vmatprep.subr.mxu0 0.0
  %1756 = vmatpush1.msra.mxu0 0.0
  %1757 = vmatprep.subr.mxu0 0.0
  %1758 = vmatpush1.msra.mxu0 0.0
  %1759 = vmatprep.subr.mxu0 0.0
  %1760 = vmatpush1.msra.mxu0 0.0
  %1761 = vmatprep.subr.mxu0 0.0
  %1762 = vmatpush1.msra.mxu0 0.0
  %1763 = vmatprep.subr.mxu0 0.0
  %1764 = vmatpush1.msra.mxu0 0.0
  %1765 = vmatprep.subr.mxu0 0.0
  %1766 = vmatpush1.msra.mxu0 0.0
  %1767 = vmatprep.subr.mxu0 0.0
  %1768 = vmatpush1.msra.mxu0 0.0
  %1769 = vmatprep.subr.mxu0 0.0
  %1770 = vmatpush1.msra.mxu0 0.0
  %1771 = vmatprep.subr.mxu0 0.0
  %1772 = vmatpush1.msra.mxu0 0.0
  %1773 = vmatprep.subr.mxu0 0.0
  %1774 = vmatpush1.msra.mxu0 0.0
  %1775 = vmatprep.subr.mxu0 0.0
  %1776 = vmatpush1.msra.mxu0 0.0
  %1777 = vmatprep.subr.mxu0 0.0
  %1778 = vmatpush1.msra.mxu0 0.0
  %1779 = vmatprep.subr.mxu0 0.0
  %1780 = vmatpush1.msra.mxu0 0.0
  %1781 = vmatprep.subr.mxu0 0.0
  %1782 = vmatpush1.msra.mxu0 0.0
  %1783 = vmatprep.subr.mxu0 0.0
  %1784 = vmatpush1.msra.mxu0 0.0
  %1785 = vmatprep.subr.mxu0 0.0
  %1786 = vmatpush1.msra.mxu0 0.0
  %1787 = vmatprep.mubr.f32.mxu0 0.0
  %1788 = vmatmul.mubr.f32.gmra.mrb[0].mxu0 %v1721
  %v1789 = vpop.f32.mrb[0].mxu0
  %v1790 = vadd.f32 0.0, %v1789
  %v1791 = vpop.f32.mrb[0].mxu0
  %1792 = vdwg.mxu0
  %v1793 = vadd.f32 %v1720, %v1790
  %v1794 = vtanh.pop %v1793
  %v1795 = vxor.u32 %v1793, 2147483648
  %v1796 = vmul.f32 %v1795, 1.442695
  %v1797 = vpow.pop %v1796
  %v1798 = vadd.f32 %v1797, 1.0
  %v1799 = vrcp.pop %v1798
  %v1800 = vmul.f32 1.0, %v1799
  %v1801 = vsel %vm54, %v1794, %v1800
  %v1802 = vmul.f32 %v1801, %v1706
  %1804 = vrot.lane.b32.xlu0 %v1801, 64
  %v1805 = vpop.permute.xlu0 %1804
  %v1807 = vmul.f32 %v1801, %v1805
  %1809 = vrot.lane.b32.xlu0 %v1807, 32
  %v1810 = vpop.permute.xlu0 %1809
  %v1812 = vadd.f32 %v1802, %v1810
  %v1813 = vtanh.pop %v1812
  %1815 = vrot.lane.b32.xlu0 %v1813, 64
  %v1816 = vpop.permute.xlu0 %1815
  %v1818 = vmul.f32 %v1801, %v1816
  %1820 = vrot.lane.b32.xlu0 %v1818, 32
  %v1821 = vpop.permute.xlu0 %1820
  %s1823 = scalar_lea.vmem [#allocation5], 16
  %1824 = vst.msk [vmem:[%s1823] sm:$0xff] %vm74, %v1821
  %s1825 = scalar_lea.vmem [#allocation3], 8
  %v1826 = vld [vmem:[%s1825] sm:$0xff]
  %v1827 = vsel %vm74, %v1821, 0
  %1829 = vmatprep.subr.mxu0 0.0
  %1830 = vmatpush1.msra.mxu0 %v1187
  %1831 = vmatprep.subr.mxu0 0.0
  %1832 = vmatpush1.msra.mxu0 %v1188
  %1833 = vmatprep.subr.mxu0 0.0
  %1834 = vmatpush1.msra.mxu0 %v1189
  %1835 = vmatprep.subr.mxu0 0.0
  %1836 = vmatpush1.msra.mxu0 %v1190
  %1837 = vmatprep.subr.mxu0 0.0
  %1838 = vmatpush1.msra.mxu0 0.0
  %1839 = vmatprep.subr.mxu0 0.0
  %1840 = vmatpush1.msra.mxu0 0.0
  %1841 = vmatprep.subr.mxu0 0.0
  %1842 = vmatpush1.msra.mxu0 0.0
  %1843 = vmatprep.subr.mxu0 0.0
  %1844 = vmatpush1.msra.mxu0 0.0
  %1845 = vmatprep.subr.mxu0 0.0
  %1846 = vmatpush1.msra.mxu0 0.0
  %1847 = vmatprep.subr.mxu0 0.0
  %1848 = vmatpush1.msra.mxu0 0.0
  %1849 = vmatprep.subr.mxu0 0.0
  %1850 = vmatpush1.msra.mxu0 0.0
  %1851 = vmatprep.subr.mxu0 0.0
  %1852 = vmatpush1.msra.mxu0 0.0
  %1853 = vmatprep.subr.mxu0 0.0
  %1854 = vmatpush1.msra.mxu0 0.0
  %1855 = vmatprep.subr.mxu0 0.0
  %1856 = vmatpush1.msra.mxu0 0.0
  %1857 = vmatprep.subr.mxu0 0.0
  %1858 = vmatpush1.msra.mxu0 0.0
  %1859 = vmatprep.subr.mxu0 0.0
  %1860 = vmatpush1.msra.mxu0 0.0
  %1861 = vmatprep.subr.mxu0 0.0
  %1862 = vmatpush1.msra.mxu0 0.0
  %1863 = vmatprep.subr.mxu0 0.0
  %1864 = vmatpush1.msra.mxu0 0.0
  %1865 = vmatprep.subr.mxu0 0.0
  %1866 = vmatpush1.msra.mxu0 0.0
  %1867 = vmatprep.subr.mxu0 0.0
  %1868 = vmatpush1.msra.mxu0 0.0
  %1869 = vmatprep.subr.mxu0 0.0
  %1870 = vmatpush1.msra.mxu0 0.0
  %1871 = vmatprep.subr.mxu0 0.0
  %1872 = vmatpush1.msra.mxu0 0.0
  %1873 = vmatprep.subr.mxu0 0.0
  %1874 = vmatpush1.msra.mxu0 0.0
  %1875 = vmatprep.subr.mxu0 0.0
  %1876 = vmatpush1.msra.mxu0 0.0
  %1877 = vmatprep.subr.mxu0 0.0
  %1878 = vmatpush1.msra.mxu0 0.0
  %1879 = vmatprep.subr.mxu0 0.0
  %1880 = vmatpush1.msra.mxu0 0.0
  %1881 = vmatprep.subr.mxu0 0.0
  %1882 = vmatpush1.msra.mxu0 0.0
  %1883 = vmatprep.subr.mxu0 0.0
  %1884 = vmatpush1.msra.mxu0 0.0
  %1885 = vmatprep.subr.mxu0 0.0
  %1886 = vmatpush1.msra.mxu0 0.0
  %1887 = vmatprep.subr.mxu0 0.0
  %1888 = vmatpush1.msra.mxu0 0.0
  %1889 = vmatprep.subr.mxu0 0.0
  %1890 = vmatpush1.msra.mxu0 0.0
  %1891 = vmatprep.subr.mxu0 0.0
  %1892 = vmatpush1.msra.mxu0 0.0
  %1893 = vmatprep.mubr.f32.mxu0 0.0
  %1894 = vmatmul.mubr.f32.gmra.mrb[0].mxu0 %v1827
  %v1895 = vpop.f32.mrb[0].mxu0
  %v1896 = vadd.f32 0.0, %v1895
  %v1897 = vpop.f32.mrb[0].mxu0
  %1898 = vdwg.mxu0
  %v1899 = vadd.f32 %v1826, %v1896
  %v1900 = vtanh.pop %v1899
  %v1901 = vxor.u32 %v1899, 2147483648
  %v1902 = vmul.f32 %v1901, 1.442695
  %v1903 = vpow.pop %v1902
  %v1904 = vadd.f32 %v1903, 1.0
  %v1905 = vrcp.pop %v1904
  %v1906 = vmul.f32 1.0, %v1905
  %v1907 = vsel %vm54, %v1900, %v1906
  %v1908 = vmul.f32 %v1907, %v1812
  %1910 = vrot.lane.b32.xlu0 %v1907, 64
  %v1911 = vpop.permute.xlu0 %1910
  %v1913 = vmul.f32 %v1907, %v1911
  %1915 = vrot.lane.b32.xlu0 %v1913, 32
  %v1916 = vpop.permute.xlu0 %1915
  %v1918 = vadd.f32 %v1908, %v1916
  %v1919 = vtanh.pop %v1918
  %1921 = vrot.lane.b32.xlu0 %v1919, 64
  %v1922 = vpop.permute.xlu0 %1921
  %v1924 = vmul.f32 %v1907, %v1922
  %1926 = vrot.lane.b32.xlu0 %v1924, 32
  %v1927 = vpop.permute.xlu0 %1926
  %s1929 = scalar_lea.vmem [#allocation5], 8
  %1930 = vst.msk [vmem:[%s1929] sm:$0xff] %vm74, %v1927
  %v1931 = vld [vmem:[#allocation3] sm:$0xff]
  %v1932 = vsel %vm74, %v1927, 0
  %1934 = vmatprep.subr.mxu0 0.0
  %1935 = vmatpush1.msra.mxu0 %v1187
  %1936 = vmatprep.subr.mxu0 0.0
  %1937 = vmatpush1.msra.mxu0 %v1188
  %1938 = vmatprep.subr.mxu0 0.0
  %1939 = vmatpush1.msra.mxu0 %v1189
  %1940 = vmatprep.subr.mxu0 0.0
  %1941 = vmatpush1.msra.mxu0 %v1190
  %1942 = vmatprep.subr.mxu0 0.0
  %1943 = vmatpush1.msra.mxu0 0.0
  %1944 = vmatprep.subr.mxu0 0.0
  %1945 = vmatpush1.msra.mxu0 0.0
  %1946 = vmatprep.subr.mxu0 0.0
  %1947 = vmatpush1.msra.mxu0 0.0
  %1948 = vmatprep.subr.mxu0 0.0
  %1949 = vmatpush1.msra.mxu0 0.0
  %1950 = vmatprep.subr.mxu0 0.0
  %1951 = vmatpush1.msra.mxu0 0.0
  %1952 = vmatprep.subr.mxu0 0.0
  %1953 = vmatpush1.msra.mxu0 0.0
  %1954 = vmatprep.subr.mxu0 0.0
  %1955 = vmatpush1.msra.mxu0 0.0
  %1956 = vmatprep.subr.mxu0 0.0
  %1957 = vmatpush1.msra.mxu0 0.0
  %1958 = vmatprep.subr.mxu0 0.0
  %1959 = vmatpush1.msra.mxu0 0.0
  %1960 = vmatprep.subr.mxu0 0.0
  %1961 = vmatpush1.msra.mxu0 0.0
  %1962 = vmatprep.subr.mxu0 0.0
  %1963 = vmatpush1.msra.mxu0 0.0
  %1964 = vmatprep.subr.mxu0 0.0
  %1965 = vmatpush1.msra.mxu0 0.0
  %1966 = vmatprep.subr.mxu0 0.0
  %1967 = vmatpush1.msra.mxu0 0.0
  %1968 = vmatprep.subr.mxu0 0.0
  %1969 = vmatpush1.msra.mxu0 0.0
  %1970 = vmatprep.subr.mxu0 0.0
  %1971 = vmatpush1.msra.mxu0 0.0
  %1972 = vmatprep.subr.mxu0 0.0
  %1973 = vmatpush1.msra.mxu0 0.0
  %1974 = vmatprep.subr.mxu0 0.0
  %1975 = vmatpush1.msra.mxu0 0.0
  %1976 = vmatprep.subr.mxu0 0.0
  %1977 = vmatpush1.msra.mxu0 0.0
  %1978 = vmatprep.subr.mxu0 0.0
  %1979 = vmatpush1.msra.mxu0 0.0
  %1980 = vmatprep.subr.mxu0 0.0
  %1981 = vmatpush1.msra.mxu0 0.0
  %1982 = vmatprep.subr.mxu0 0.0
  %1983 = vmatpush1.msra.mxu0 0.0
  %1984 = vmatprep.subr.mxu0 0.0
  %1985 = vmatpush1.msra.mxu0 0.0
  %1986 = vmatprep.subr.mxu0 0.0
  %1987 = vmatpush1.msra.mxu0 0.0
  %1988 = vmatprep.subr.mxu0 0.0
  %1989 = vmatpush1.msra.mxu0 0.0
  %1990 = vmatprep.subr.mxu0 0.0
  %1991 = vmatpush1.msra.mxu0 0.0
  %1992 = vmatprep.subr.mxu0 0.0
  %1993 = vmatpush1.msra.mxu0 0.0
  %1994 = vmatprep.subr.mxu0 0.0
  %1995 = vmatpush1.msra.mxu0 0.0
  %1996 = vmatprep.subr.mxu0 0.0
  %1997 = vmatpush1.msra.mxu0 0.0
  %1998 = vmatprep.mubr.f32.mxu0 0.0
  %1999 = vmatmul.mubr.f32.gmra.mrb[0].mxu0 %v1932
  %v2000 = vpop.f32.mrb[0].mxu0
  %v2001 = vadd.f32 0.0, %v2000
  %v2002 = vpop.f32.mrb[0].mxu0
  %2003 = vdwg.mxu0
  %v2004 = vadd.f32 %v1931, %v2001
  %v2005 = vtanh.pop %v2004
  %v2006 = vxor.u32 %v2004, 2147483648
  %v2007 = vmul.f32 %v2006, 1.442695
  %v2008 = vpow.pop %v2007
  %v2009 = vadd.f32 %v2008, 1.0
  %v2010 = vrcp.pop %v2009
  %v2011 = vmul.f32 1.0, %v2010
  %v2012 = vsel %vm54, %v2005, %v2011
  %v2013 = vmul.f32 %v2012, %v1918
  %2015 = vrot.lane.b32.xlu0 %v2012, 64
  %v2016 = vpop.permute.xlu0 %2015
  %v2018 = vmul.f32 %v2012, %v2016
  %2020 = vrot.lane.b32.xlu0 %v2018, 32
  %v2021 = vpop.permute.xlu0 %2020
  %v2023 = vadd.f32 %v2013, %v2021
  %v2024 = vtanh.pop %v2023
  %2026 = vrot.lane.b32.xlu0 %v2024, 64
  %v2027 = vpop.permute.xlu0 %2026
  %v2029 = vmul.f32 %v2012, %v2027
  %2031 = vrot.lane.b32.xlu0 %v2029, 32
  %v2032 = vpop.permute.xlu0 %2031
  %2034 = vst.msk [vmem:[#allocation5] sm:$0xff] %vm74, %v2032
  %v2035 = vld [vmem:[#allocation4] sm:$0xff]
  %v2036 = vld [vmem:[#allocation4 + $0x8] sm:$0xff]
  %v2037 = vld [vmem:[#allocation4 + $0x10] sm:$0xff]
  %v2038 = vld [vmem:[#allocation4 + $0x18] sm:$0xff]
  %v2039 = vld [vmem:[#allocation4 + $0x20] sm:$0xff]
  %v2040 = vld [vmem:[#allocation4 + $0x28] sm:$0xff]
  %v2041 = vld [vmem:[#allocation4 + $0x30] sm:$0xff]
  %v2042 = vld [vmem:[#allocation4 + $0x38] sm:$0xff]
  %v2043 = vld [vmem:[#allocation5] sm:$0xff]
  %v2044 = vld [vmem:[#allocation5 + $0x8] sm:$0xff]
  %v2045 = vld [vmem:[#allocation5 + $0x10] sm:$0xff]
  %v2046 = vld [vmem:[#allocation5 + $0x18] sm:$0xff]
  %v2047 = vld [vmem:[#allocation5 + $0x20] sm:$0xff]
  %v2048 = vld [vmem:[#allocation5 + $0x28] sm:$0xff]
  %v2049 = vld [vmem:[#allocation5 + $0x30] sm:$0xff]
  %v2050 = vld [vmem:[#allocation5 + $0x38] sm:$0xff]
  %2059 = vrot.lane.b32.xlu0 %v2043, 32
  %v2060 = vpop.permute.xlu0 %2059
  %2061 = vrot.lane.b32.xlu0 %v2044, 32
  %v2062 = vpop.permute.xlu0 %2061
  %2063 = vrot.lane.b32.xlu0 %v2045, 32
  %v2064 = vpop.permute.xlu0 %2063
  %2065 = vrot.lane.b32.xlu0 %v2046, 32
  %v2066 = vpop.permute.xlu0 %2065
  %2067 = vrot.lane.b32.xlu0 %v2047, 32
  %v2068 = vpop.permute.xlu0 %2067
  %2069 = vrot.lane.b32.xlu0 %v2048, 32
  %v2070 = vpop.permute.xlu0 %2069
  %2071 = vrot.lane.b32.xlu0 %v2049, 32
  %v2072 = vpop.permute.xlu0 %2071
  %2073 = vrot.lane.b32.xlu0 %v2050, 32
  %v2074 = vpop.permute.xlu0 %2073
  %v2083 = vsel %vm74, %v2035, %v2060
  %v2084 = vsel %vm74, %v2036, %v2062
  %v2085 = vsel %vm74, %v2037, %v2064
  %v2086 = vsel %vm74, %v2038, %v2066
  %v2087 = vsel %vm74, %v2039, %v2068
  %v2088 = vsel %vm74, %v2040, %v2070
  %v2089 = vsel %vm74, %v2041, %v2072
  %v2090 = vsel %vm74, %v2042, %v2074
  %v2091 = vld [vmem:[%s7] sm:$0xff]
  %v2092 = vld [vmem:[%s7 + $0x8] sm:$0xff]
  %v2093 = vld [vmem:[%s7 + $0x10] sm:$0xff]
  %v2094 = vld [vmem:[%s7 + $0x18] sm:$0xff]
  %v2095 = vld [vmem:[%s7 + $0x20] sm:$0xff]
  %v2096 = vld [vmem:[%s7 + $0x28] sm:$0xff]
  %v2097 = vld [vmem:[%s7 + $0x30] sm:$0xff]
  %v2098 = vld [vmem:[%s7 + $0x38] sm:$0xff]
  %v2099 = vld [vmem:[%s9] sm:$0x1]
  %v2101 = vlaneseq
  %v2102 = vshrl.u32 %v2101, 7
  %v2103 = vsub.s32 0, %v2102
  %v2104 = vrot.slane %v2099, %v2103
  %vm2106 = vcmask 523264
  %v2108 = vsel %vm2106, %v2083, 0
  %v2111 = vsel %vm2106, %v2084, 0
  %v2114 = vsel %vm2106, %v2085, 0
  %v2117 = vsel %vm2106, %v2086, 0
  %v2120 = vsel %vm2106, %v2087, 0
  %v2123 = vsel %vm2106, %v2088, 0
  %v2126 = vsel %vm2106, %v2089, 0
  %v2129 = vsel %vm2106, %v2090, 0
  %2131 = vmatprep.subr.mxu0 0.0
  %2132 = vmatpush1.msra.mxu0 %v2091
  %2133 = vmatprep.subr.mxu0 0.0
  %2134 = vmatpush1.msra.mxu0 %v2092
  %2135 = vmatprep.subr.mxu0 0.0
  %2136 = vmatpush1.msra.mxu0 %v2093
  %2137 = vmatprep.subr.mxu0 0.0
  %2138 = vmatpush1.msra.mxu0 %v2094
  %2139 = vmatprep.subr.mxu0 0.0
  %2140 = vmatpush1.msra.mxu0 %v2095
  %2141 = vmatprep.subr.mxu0 0.0
  %2142 = vmatpush1.msra.mxu0 %v2096
  %2143 = vmatprep.subr.mxu0 0.0
  %2144 = vmatpush1.msra.mxu0 %v2097
  %2145 = vmatprep.subr.mxu0 0.0
  %2146 = vmatpush1.msra.mxu0 %v2098
  %2147 = vmatprep.subr.mxu0 0.0
  %2148 = vmatpush1.msra.mxu0 0.0
  %2149 = vmatprep.subr.mxu0 0.0
  %2150 = vmatpush1.msra.mxu0 0.0
  %2151 = vmatprep.subr.mxu0 0.0
  %2152 = vmatpush1.msra.mxu0 0.0
  %2153 = vmatprep.subr.mxu0 0.0
  %2154 = vmatpush1.msra.mxu0 0.0
  %2155 = vmatprep.subr.mxu0 0.0
  %2156 = vmatpush1.msra.mxu0 0.0
  %2157 = vmatprep.subr.mxu0 0.0
  %2158 = vmatpush1.msra.mxu0 0.0
  %2159 = vmatprep.subr.mxu0 0.0
  %2160 = vmatpush1.msra.mxu0 0.0
  %2161 = vmatprep.subr.mxu0 0.0
  %2162 = vmatpush1.msra.mxu0 0.0
  %2163 = vmatprep.subr.mxu0 0.0
  %2164 = vmatpush1.msra.mxu0 0.0
  %2165 = vmatprep.subr.mxu0 0.0
  %2166 = vmatpush1.msra.mxu0 0.0
  %2167 = vmatprep.subr.mxu0 0.0
  %2168 = vmatpush1.msra.mxu0 0.0
  %2169 = vmatprep.subr.mxu0 0.0
  %2170 = vmatpush1.msra.mxu0 0.0
  %2171 = vmatprep.subr.mxu0 0.0
  %2172 = vmatpush1.msra.mxu0 0.0
  %2173 = vmatprep.subr.mxu0 0.0
  %2174 = vmatpush1.msra.mxu0 0.0
  %2175 = vmatprep.subr.mxu0 0.0
  %2176 = vmatpush1.msra.mxu0 0.0
  %2177 = vmatprep.subr.mxu0 0.0
  %2178 = vmatpush1.msra.mxu0 0.0
  %2179 = vmatprep.subr.mxu0 0.0
  %2180 = vmatpush1.msra.mxu0 0.0
  %2181 = vmatprep.subr.mxu0 0.0
  %2182 = vmatpush1.msra.mxu0 0.0
  %2183 = vmatprep.subr.mxu0 0.0
  %2184 = vmatpush1.msra.mxu0 0.0
  %2185 = vmatprep.subr.mxu0 0.0
  %2186 = vmatpush1.msra.mxu0 0.0
  %2187 = vmatprep.subr.mxu0 0.0
  %2188 = vmatpush1.msra.mxu0 0.0
  %2189 = vmatprep.subr.mxu0 0.0
  %2190 = vmatpush1.msra.mxu0 0.0
  %2191 = vmatprep.subr.mxu0 0.0
  %2192 = vmatpush1.msra.mxu0 0.0
  %2193 = vmatprep.subr.mxu0 0.0
  %2194 = vmatpush1.msra.mxu0 0.0
  %2195 = vmatprep.mubr.f32.mxu0 0.0
  %2196 = vmatmul.mubr.f32.gmra.mrb[0].mxu0 %v2108
  %v2197 = vpop.f32.mrb[0].mxu0
  %v2198 = vadd.f32 %v2104, %v2197
  %v2199 = vpop.f32.mrb[0].mxu0
  %2200 = vmatprep.mubr.f32.mxu0 0.0
  %2201 = vmatmul.mubr.f32.gmra.mrb[0].mxu0 %v2111
  %v2202 = vpop.f32.mrb[0].mxu0
  %v2203 = vadd.f32 %v2104, %v2202
  %v2204 = vpop.f32.mrb[0].mxu0
  %2205 = vmatprep.mubr.f32.mxu0 0.0
  %2206 = vmatmul.mubr.f32.gmra.mrb[0].mxu0 %v2114
  %v2207 = vpop.f32.mrb[0].mxu0
  %v2208 = vadd.f32 %v2104, %v2207
  %v2209 = vpop.f32.mrb[0].mxu0
  %2210 = vmatprep.mubr.f32.mxu0 0.0
  %2211 = vmatmul.mubr.f32.gmra.mrb[0].mxu0 %v2117
  %v2212 = vpop.f32.mrb[0].mxu0
  %v2213 = vadd.f32 %v2104, %v2212
  %v2214 = vpop.f32.mrb[0].mxu0
  %2215 = vmatprep.mubr.f32.mxu0 0.0
  %2216 = vmatmul.mubr.f32.gmra.mrb[0].mxu0 %v2120
  %v2217 = vpop.f32.mrb[0].mxu0
  %v2218 = vadd.f32 %v2104, %v2217
  %v2219 = vpop.f32.mrb[0].mxu0
  %2220 = vmatprep.mubr.f32.mxu0 0.0
  %2221 = vmatmul.mubr.f32.gmra.mrb[0].mxu0 %v2123
  %v2222 = vpop.f32.mrb[0].mxu0
  %v2223 = vadd.f32 %v2104, %v2222
  %v2224 = vpop.f32.mrb[0].mxu0
  %2225 = vmatprep.mubr.f32.mxu0 0.0
  %2226 = vmatmul.mubr.f32.gmra.mrb[0].mxu0 %v2126
  %v2227 = vpop.f32.mrb[0].mxu0
  %v2228 = vadd.f32 %v2104, %v2227
  %v2229 = vpop.f32.mrb[0].mxu0
  %2230 = vmatprep.mubr.f32.mxu0 0.0
  %2231 = vmatmul.mubr.f32.gmra.mrb[0].mxu0 %v2129
  %v2232 = vpop.f32.mrb[0].mxu0
  %v2233 = vadd.f32 %v2104, %v2232
  %v2234 = vpop.f32.mrb[0].mxu0
  %2235 = vdwg.mxu0
  %2236 = vst [vmem:[#allocation2] sm:$0xff] %v2198
  %2237 = vst [vmem:[#allocation2 + $0x8] sm:$0xff] %v2203
  %2238 = vst [vmem:[#allocation2 + $0x10] sm:$0xff] %v2208
  %2239 = vst [vmem:[#allocation2 + $0x18] sm:$0xff] %v2213
  %2240 = vst [vmem:[#allocation2 + $0x20] sm:$0xff] %v2218
  %2241 = vst [vmem:[#allocation2 + $0x28] sm:$0xff] %v2223
  %2242 = vst [vmem:[#allocation2 + $0x30] sm:$0xff] %v2228
  %2243 = vst [vmem:[#allocation2 + $0x38] sm:$0xff] %v2233
  %v2244 = vld [vmem:[%s10] sm:$0xff]
  %v2245 = vld [vmem:[%s10 + $0x8] sm:$0xff]
  %v2246 = vld [vmem:[%s10 + $0x10] sm:$0xff]
  %v2247 = vld [vmem:[%s10 + $0x18] sm:$0xff]
  %v2248 = vld [vmem:[%s10 + $0x20] sm:$0xff]
  %v2249 = vld [vmem:[%s10 + $0x28] sm:$0xff]
  %v2250 = vld [vmem:[%s10 + $0x30] sm:$0xff]
  %v2251 = vld [vmem:[%s10 + $0x38] sm:$0xff]
  %v2252 = vld [vmem:[%s12] sm:$0x1]
  %v2254 = vlaneseq
  %v2255 = vshrl.u32 %v2254, 7
  %v2256 = vsub.s32 0, %v2255
  %v2257 = vrot.slane %v2252, %v2256
  %2259 = vmatprep.subr.mxu0 0.0
  %2260 = vmatpush1.msra.mxu0 %v2244
  %2261 = vmatprep.subr.mxu0 0.0
  %2262 = vmatpush1.msra.mxu0 %v2245
  %2263 = vmatprep.subr.mxu0 0.0
  %2264 = vmatpush1.msra.mxu0 %v2246
  %2265 = vmatprep.subr.mxu0 0.0
  %2266 = vmatpush1.msra.mxu0 %v2247
  %2267 = vmatprep.subr.mxu0 0.0
  %2268 = vmatpush1.msra.mxu0 %v2248
  %2269 = vmatprep.subr.mxu0 0.0
  %2270 = vmatpush1.msra.mxu0 %v2249
  %2271 = vmatprep.subr.mxu0 0.0
  %2272 = vmatpush1.msra.mxu0 %v2250
  %2273 = vmatprep.subr.mxu0 0.0
  %2274 = vmatpush1.msra.mxu0 %v2251
  %2275 = vmatprep.subr.mxu0 0.0
  %2276 = vmatpush1.msra.mxu0 0.0
  %2277 = vmatprep.subr.mxu0 0.0
  %2278 = vmatpush1.msra.mxu0 0.0
  %2279 = vmatprep.subr.mxu0 0.0
  %2280 = vmatpush1.msra.mxu0 0.0
  %2281 = vmatprep.subr.mxu0 0.0
  %2282 = vmatpush1.msra.mxu0 0.0
  %2283 = vmatprep.subr.mxu0 0.0
  %2284 = vmatpush1.msra.mxu0 0.0
  %2285 = vmatprep.subr.mxu0 0.0
  %2286 = vmatpush1.msra.mxu0 0.0
  %2287 = vmatprep.subr.mxu0 0.0
  %2288 = vmatpush1.msra.mxu0 0.0
  %2289 = vmatprep.subr.mxu0 0.0
  %2290 = vmatpush1.msra.mxu0 0.0
  %2291 = vmatprep.subr.mxu0 0.0
  %2292 = vmatpush1.msra.mxu0 0.0
  %2293 = vmatprep.subr.mxu0 0.0
  %2294 = vmatpush1.msra.mxu0 0.0
  %2295 = vmatprep.subr.mxu0 0.0
  %2296 = vmatpush1.msra.mxu0 0.0
  %2297 = vmatprep.subr.mxu0 0.0
  %2298 = vmatpush1.msra.mxu0 0.0
  %2299 = vmatprep.subr.mxu0 0.0
  %2300 = vmatpush1.msra.mxu0 0.0
  %2301 = vmatprep.subr.mxu0 0.0
  %2302 = vmatpush1.msra.mxu0 0.0
  %2303 = vmatprep.subr.mxu0 0.0
  %2304 = vmatpush1.msra.mxu0 0.0
  %2305 = vmatprep.subr.mxu0 0.0
  %2306 = vmatpush1.msra.mxu0 0.0
  %2307 = vmatprep.subr.mxu0 0.0
  %2308 = vmatpush1.msra.mxu0 0.0
  %2309 = vmatprep.subr.mxu0 0.0
  %2310 = vmatpush1.msra.mxu0 0.0
  %2311 = vmatprep.subr.mxu0 0.0
  %2312 = vmatpush1.msra.mxu0 0.0
  %2313 = vmatprep.subr.mxu0 0.0
  %2314 = vmatpush1.msra.mxu0 0.0
  %2315 = vmatprep.subr.mxu0 0.0
  %2316 = vmatpush1.msra.mxu0 0.0
  %2317 = vmatprep.subr.mxu0 0.0
  %2318 = vmatpush1.msra.mxu0 0.0
  %2319 = vmatprep.subr.mxu0 0.0
  %2320 = vmatpush1.msra.mxu0 0.0
  %2321 = vmatprep.subr.mxu0 0.0
  %2322 = vmatpush1.msra.mxu0 0.0
  %2323 = vmatprep.mubr.f32.mxu0 0.0
  %2324 = vmatmul.mubr.f32.gmra.mrb[0].mxu0 %v2108
  %v2325 = vpop.f32.mrb[0].mxu0
  %v2326 = vadd.f32 %v2257, %v2325
  %v2327 = vpop.f32.mrb[0].mxu0
  %2328 = vmatprep.mubr.f32.mxu0 0.0
  %2329 = vmatmul.mubr.f32.gmra.mrb[0].mxu0 %v2111
  %v2330 = vpop.f32.mrb[0].mxu0
  %v2331 = vadd.f32 %v2257, %v2330
  %v2332 = vpop.f32.mrb[0].mxu0
  %2333 = vmatprep.mubr.f32.mxu0 0.0
  %2334 = vmatmul.mubr.f32.gmra.mrb[0].mxu0 %v2114
  %v2335 = vpop.f32.mrb[0].mxu0
  %v2336 = vadd.f32 %v2257, %v2335
  %v2337 = vpop.f32.mrb[0].mxu0
  %2338 = vmatprep.mubr.f32.mxu0 0.0
  %2339 = vmatmul.mubr.f32.gmra.mrb[0].mxu0 %v2117
  %v2340 = vpop.f32.mrb[0].mxu0
  %v2341 = vadd.f32 %v2257, %v2340
  %v2342 = vpop.f32.mrb[0].mxu0
  %2343 = vmatprep.mubr.f32.mxu0 0.0
  %2344 = vmatmul.mubr.f32.gmra.mrb[0].mxu0 %v2120
  %v2345 = vpop.f32.mrb[0].mxu0
  %v2346 = vadd.f32 %v2257, %v2345
  %v2347 = vpop.f32.mrb[0].mxu0
  %2348 = vmatprep.mubr.f32.mxu0 0.0
  %2349 = vmatmul.mubr.f32.gmra.mrb[0].mxu0 %v2123
  %v2350 = vpop.f32.mrb[0].mxu0
  %v2351 = vadd.f32 %v2257, %v2350
  %v2352 = vpop.f32.mrb[0].mxu0
  %2353 = vmatprep.mubr.f32.mxu0 0.0
  %2354 = vmatmul.mubr.f32.gmra.mrb[0].mxu0 %v2126
  %v2355 = vpop.f32.mrb[0].mxu0
  %v2356 = vadd.f32 %v2257, %v2355
  %v2357 = vpop.f32.mrb[0].mxu0
  %2358 = vmatprep.mubr.f32.mxu0 0.0
  %2359 = vmatmul.mubr.f32.gmra.mrb[0].mxu0 %v2129
  %v2360 = vpop.f32.mrb[0].mxu0
  %v2361 = vadd.f32 %v2257, %v2360
  %v2362 = vpop.f32.mrb[0].mxu0
  %2363 = vdwg.mxu0
  %2364 = vst [vmem:[#allocation3] sm:$0xff] %v2326
  %2365 = vst [vmem:[#allocation3 + $0x8] sm:$0xff] %v2331
  %2366 = vst [vmem:[#allocation3 + $0x10] sm:$0xff] %v2336
  %2367 = vst [vmem:[#allocation3 + $0x18] sm:$0xff] %v2341
  %2368 = vst [vmem:[#allocation3 + $0x20] sm:$0xff] %v2346
  %2369 = vst [vmem:[#allocation3 + $0x28] sm:$0xff] %v2351
  %2370 = vst [vmem:[#allocation3 + $0x30] sm:$0xff] %v2356
  %2371 = vst [vmem:[#allocation3 + $0x38] sm:$0xff] %v2361
  %v2372 = vld [vmem:[%s8] sm:$0xff]
  %v2373 = vld [vmem:[%s8 + $0x8] sm:$0xff]
  %v2374 = vld [vmem:[%s8 + $0x10] sm:$0xff]
  %v2375 = vld [vmem:[%s8 + $0x18] sm:$0xff]
  %v2376 = vld [vmem:[#allocation2] sm:$0xff]
  %2377 = vmatprep.subr.mxu0 0.0
  %2378 = vmatpush1.msra.mxu0 %v2372
  %2379 = vmatprep.subr.mxu0 0.0
  %2380 = vmatpush1.msra.mxu0 %v2373
  %2381 = vmatprep.subr.mxu0 0.0
  %2382 = vmatpush1.msra.mxu0 %v2374
  %2383 = vmatprep.subr.mxu0 0.0
  %2384 = vmatpush1.msra.mxu0 %v2375
  %2385 = vmatprep.subr.mxu0 0.0
  %2386 = vmatpush1.msra.mxu0 0.0
  %2387 = vmatprep.subr.mxu0 0.0
  %2388 = vmatpush1.msra.mxu0 0.0
  %2389 = vmatprep.subr.mxu0 0.0
  %2390 = vmatpush1.msra.mxu0 0.0
  %2391 = vmatprep.subr.mxu0 0.0
  %2392 = vmatpush1.msra.mxu0 0.0
  %2393 = vmatprep.subr.mxu0 0.0
  %2394 = vmatpush1.msra.mxu0 0.0
  %2395 = vmatprep.subr.mxu0 0.0
  %2396 = vmatpush1.msra.mxu0 0.0
  %2397 = vmatprep.subr.mxu0 0.0
  %2398 = vmatpush1.msra.mxu0 0.0
  %2399 = vmatprep.subr.mxu0 0.0
  %2400 = vmatpush1.msra.mxu0 0.0
  %2401 = vmatprep.subr.mxu0 0.0
  %2402 = vmatpush1.msra.mxu0 0.0
  %2403 = vmatprep.subr.mxu0 0.0
  %2404 = vmatpush1.msra.mxu0 0.0
  %2405 = vmatprep.subr.mxu0 0.0
  %2406 = vmatpush1.msra.mxu0 0.0
  %2407 = vmatprep.subr.mxu0 0.0
  %2408 = vmatpush1.msra.mxu0 0.0
  %2409 = vmatprep.subr.mxu0 0.0
  %2410 = vmatpush1.msra.mxu0 0.0
  %2411 = vmatprep.subr.mxu0 0.0
  %2412 = vmatpush1.msra.mxu0 0.0
  %2413 = vmatprep.subr.mxu0 0.0
  %2414 = vmatpush1.msra.mxu0 0.0
  %2415 = vmatprep.subr.mxu0 0.0
  %2416 = vmatpush1.msra.mxu0 0.0
  %2417 = vmatprep.subr.mxu0 0.0
  %2418 = vmatpush1.msra.mxu0 0.0
  %2419 = vmatprep.subr.mxu0 0.0
  %2420 = vmatpush1.msra.mxu0 0.0
  %2421 = vmatprep.subr.mxu0 0.0
  %2422 = vmatpush1.msra.mxu0 0.0
  %2423 = vmatprep.subr.mxu0 0.0
  %2424 = vmatpush1.msra.mxu0 0.0
  %2425 = vmatprep.subr.mxu0 0.0
  %2426 = vmatpush1.msra.mxu0 0.0
  %2427 = vmatprep.subr.mxu0 0.0
  %2428 = vmatpush1.msra.mxu0 0.0
  %2429 = vmatprep.subr.mxu0 0.0
  %2430 = vmatpush1.msra.mxu0 0.0
  %2431 = vmatprep.subr.mxu0 0.0
  %2432 = vmatpush1.msra.mxu0 0.0
  %2433 = vmatprep.subr.mxu0 0.0
  %2434 = vmatpush1.msra.mxu0 0.0
  %2435 = vmatprep.subr.mxu0 0.0
  %2436 = vmatpush1.msra.mxu0 0.0
  %2437 = vmatprep.subr.mxu0 0.0
  %2438 = vmatpush1.msra.mxu0 0.0
  %2439 = vmatprep.subr.mxu0 0.0
  %2440 = vmatpush1.msra.mxu0 0.0
  %2441 = vmatprep.mubr.f32.mxu0 0.0
  %2442 = vmatmul.mubr.f32.gmra.mrb[0].mxu0 %v342
  %v2443 = vpop.f32.mrb[0].mxu0
  %v2444 = vadd.f32 0.0, %v2443
  %v2445 = vpop.f32.mrb[0].mxu0
  %2446 = vdwg.mxu0
  %v2447 = vadd.f32 %v2376, %v2444
  %v2448 = vtanh.pop %v2447
  %v2449 = vxor.u32 %v2447, 2147483648
  %v2450 = vmul.f32 %v2449, 1.442695
  %v2451 = vpow.pop %v2450
  %v2452 = vadd.f32 %v2451, 1.0
  %v2453 = vrcp.pop %v2452
  %v2454 = vmul.f32 1.0, %v2453
  %v2455 = vsel %vm54, %v2448, %v2454
  %v2456 = vmul.f32 %v2455, 0.0
  %2458 = vrot.lane.b32.xlu0 %v2455, 64
  %v2459 = vpop.permute.xlu0 %2458
  %v2461 = vmul.f32 %v2455, %v2459
  %2463 = vrot.lane.b32.xlu0 %v2461, 32
  %v2464 = vpop.permute.xlu0 %2463
  %v2466 = vadd.f32 %v2456, %v2464
  %v2467 = vtanh.pop %v2466
  %2469 = vrot.lane.b32.xlu0 %v2467, 64
  %v2470 = vpop.permute.xlu0 %2469
  %v2472 = vmul.f32 %v2455, %v2470
  %2474 = vrot.lane.b32.xlu0 %v2472, 32
  %v2475 = vpop.permute.xlu0 %2474
  %2477 = vst.msk [vmem:[#allocation4] sm:$0xff] %vm74, %v2475
  %v2478 = vld [vmem:[%s445] sm:$0xff]
  %v2479 = vsel %vm74, %v2475, 0
  %2481 = vmatprep.subr.mxu0 0.0
  %2482 = vmatpush1.msra.mxu0 %v2372
  %2483 = vmatprep.subr.mxu0 0.0
  %2484 = vmatpush1.msra.mxu0 %v2373
  %2485 = vmatprep.subr.mxu0 0.0
  %2486 = vmatpush1.msra.mxu0 %v2374
  %2487 = vmatprep.subr.mxu0 0.0
  %2488 = vmatpush1.msra.mxu0 %v2375
  %2489 = vmatprep.subr.mxu0 0.0
  %2490 = vmatpush1.msra.mxu0 0.0
  %2491 = vmatprep.subr.mxu0 0.0
  %2492 = vmatpush1.msra.mxu0 0.0
  %2493 = vmatprep.subr.mxu0 0.0
  %2494 = vmatpush1.msra.mxu0 0.0
  %2495 = vmatprep.subr.mxu0 0.0
  %2496 = vmatpush1.msra.mxu0 0.0
  %2497 = vmatprep.subr.mxu0 0.0
  %2498 = vmatpush1.msra.mxu0 0.0
  %2499 = vmatprep.subr.mxu0 0.0
  %2500 = vmatpush1.msra.mxu0 0.0
  %2501 = vmatprep.subr.mxu0 0.0
  %2502 = vmatpush1.msra.mxu0 0.0
  %2503 = vmatprep.subr.mxu0 0.0
  %2504 = vmatpush1.msra.mxu0 0.0
  %2505 = vmatprep.subr.mxu0 0.0
  %2506 = vmatpush1.msra.mxu0 0.0
  %2507 = vmatprep.subr.mxu0 0.0
  %2508 = vmatpush1.msra.mxu0 0.0
  %2509 = vmatprep.subr.mxu0 0.0
  %2510 = vmatpush1.msra.mxu0 0.0
  %2511 = vmatprep.subr.mxu0 0.0
  %2512 = vmatpush1.msra.mxu0 0.0
  %2513 = vmatprep.subr.mxu0 0.0
  %2514 = vmatpush1.msra.mxu0 0.0
  %2515 = vmatprep.subr.mxu0 0.0
  %2516 = vmatpush1.msra.mxu0 0.0
  %2517 = vmatprep.subr.mxu0 0.0
  %2518 = vmatpush1.msra.mxu0 0.0
  %2519 = vmatprep.subr.mxu0 0.0
  %2520 = vmatpush1.msra.mxu0 0.0
  %2521 = vmatprep.subr.mxu0 0.0
  %2522 = vmatpush1.msra.mxu0 0.0
  %2523 = vmatprep.subr.mxu0 0.0
  %2524 = vmatpush1.msra.mxu0 0.0
  %2525 = vmatprep.subr.mxu0 0.0
  %2526 = vmatpush1.msra.mxu0 0.0
  %2527 = vmatprep.subr.mxu0 0.0
  %2528 = vmatpush1.msra.mxu0 0.0
  %2529 = vmatprep.subr.mxu0 0.0
  %2530 = vmatpush1.msra.mxu0 0.0
  %2531 = vmatprep.subr.mxu0 0.0
  %2532 = vmatpush1.msra.mxu0 0.0
  %2533 = vmatprep.subr.mxu0 0.0
  %2534 = vmatpush1.msra.mxu0 0.0
  %2535 = vmatprep.subr.mxu0 0.0
  %2536 = vmatpush1.msra.mxu0 0.0
  %2537 = vmatprep.subr.mxu0 0.0
  %2538 = vmatpush1.msra.mxu0 0.0
  %2539 = vmatprep.subr.mxu0 0.0
  %2540 = vmatpush1.msra.mxu0 0.0
  %2541 = vmatprep.subr.mxu0 0.0
  %2542 = vmatpush1.msra.mxu0 0.0
  %2543 = vmatprep.subr.mxu0 0.0
  %2544 = vmatpush1.msra.mxu0 0.0
  %2545 = vmatprep.mubr.f32.mxu0 0.0
  %2546 = vmatmul.mubr.f32.gmra.mrb[0].mxu0 %v2479
  %v2547 = vpop.f32.mrb[0].mxu0
  %v2548 = vadd.f32 0.0, %v2547
  %v2549 = vpop.f32.mrb[0].mxu0
  %2550 = vdwg.mxu0
  %v2551 = vadd.f32 %v2478, %v2548
  %v2552 = vtanh.pop %v2551
  %v2553 = vxor.u32 %v2551, 2147483648
  %v2554 = vmul.f32 %v2553, 1.442695
  %v2555 = vpow.pop %v2554
  %v2556 = vadd.f32 %v2555, 1.0
  %v2557 = vrcp.pop %v2556
  %v2558 = vmul.f32 1.0, %v2557
  %v2559 = vsel %vm54, %v2552, %v2558
  %v2560 = vmul.f32 %v2559, %v2466
  %2562 = vrot.lane.b32.xlu0 %v2559, 64
  %v2563 = vpop.permute.xlu0 %2562
  %v2565 = vmul.f32 %v2559, %v2563
  %2567 = vrot.lane.b32.xlu0 %v2565, 32
  %v2568 = vpop.permute.xlu0 %2567
  %v2570 = vadd.f32 %v2560, %v2568
  %v2571 = vtanh.pop %v2570
  %2573 = vrot.lane.b32.xlu0 %v2571, 64
  %v2574 = vpop.permute.xlu0 %2573
  %v2576 = vmul.f32 %v2559, %v2574
  %2578 = vrot.lane.b32.xlu0 %v2576, 32
  %v2579 = vpop.permute.xlu0 %2578
  %2581 = vst.msk [vmem:[%s549] sm:$0xff] %vm74, %v2579
  %v2582 = vld [vmem:[%s551] sm:$0xff]
  %v2583 = vsel %vm74, %v2579, 0
  %2585 = vmatprep.subr.mxu0 0.0
  %2586 = vmatpush1.msra.mxu0 %v2372
  %2587 = vmatprep.subr.mxu0 0.0
  %2588 = vmatpush1.msra.mxu0 %v2373
  %2589 = vmatprep.subr.mxu0 0.0
  %2590 = vmatpush1.msra.mxu0 %v2374
  %2591 = vmatprep.subr.mxu0 0.0
  %2592 = vmatpush1.msra.mxu0 %v2375
  %2593 = vmatprep.subr.mxu0 0.0
  %2594 = vmatpush1.msra.mxu0 0.0
  %2595 = vmatprep.subr.mxu0 0.0
  %2596 = vmatpush1.msra.mxu0 0.0
  %2597 = vmatprep.subr.mxu0 0.0
  %2598 = vmatpush1.msra.mxu0 0.0
  %2599 = vmatprep.subr.mxu0 0.0
  %2600 = vmatpush1.msra.mxu0 0.0
  %2601 = vmatprep.subr.mxu0 0.0
  %2602 = vmatpush1.msra.mxu0 0.0
  %2603 = vmatprep.subr.mxu0 0.0
  %2604 = vmatpush1.msra.mxu0 0.0
  %2605 = vmatprep.subr.mxu0 0.0
  %2606 = vmatpush1.msra.mxu0 0.0
  %2607 = vmatprep.subr.mxu0 0.0
  %2608 = vmatpush1.msra.mxu0 0.0
  %2609 = vmatprep.subr.mxu0 0.0
  %2610 = vmatpush1.msra.mxu0 0.0
  %2611 = vmatprep.subr.mxu0 0.0
  %2612 = vmatpush1.msra.mxu0 0.0
  %2613 = vmatprep.subr.mxu0 0.0
  %2614 = vmatpush1.msra.mxu0 0.0
  %2615 = vmatprep.subr.mxu0 0.0
  %2616 = vmatpush1.msra.mxu0 0.0
  %2617 = vmatprep.subr.mxu0 0.0
  %2618 = vmatpush1.msra.mxu0 0.0
  %2619 = vmatprep.subr.mxu0 0.0
  %2620 = vmatpush1.msra.mxu0 0.0
  %2621 = vmatprep.subr.mxu0 0.0
  %2622 = vmatpush1.msra.mxu0 0.0
  %2623 = vmatprep.subr.mxu0 0.0
  %2624 = vmatpush1.msra.mxu0 0.0
  %2625 = vmatprep.subr.mxu0 0.0
  %2626 = vmatpush1.msra.mxu0 0.0
  %2627 = vmatprep.subr.mxu0 0.0
  %2628 = vmatpush1.msra.mxu0 0.0
  %2629 = vmatprep.subr.mxu0 0.0
  %2630 = vmatpush1.msra.mxu0 0.0
  %2631 = vmatprep.subr.mxu0 0.0
  %2632 = vmatpush1.msra.mxu0 0.0
  %2633 = vmatprep.subr.mxu0 0.0
  %2634 = vmatpush1.msra.mxu0 0.0
  %2635 = vmatprep.subr.mxu0 0.0
  %2636 = vmatpush1.msra.mxu0 0.0
  %2637 = vmatprep.subr.mxu0 0.0
  %2638 = vmatpush1.msra.mxu0 0.0
  %2639 = vmatprep.subr.mxu0 0.0
  %2640 = vmatpush1.msra.mxu0 0.0
  %2641 = vmatprep.subr.mxu0 0.0
  %2642 = vmatpush1.msra.mxu0 0.0
  %2643 = vmatprep.subr.mxu0 0.0
  %2644 = vmatpush1.msra.mxu0 0.0
  %2645 = vmatprep.subr.mxu0 0.0
  %2646 = vmatpush1.msra.mxu0 0.0
  %2647 = vmatprep.subr.mxu0 0.0
  %2648 = vmatpush1.msra.mxu0 0.0
  %2649 = vmatprep.mubr.f32.mxu0 0.0
  %2650 = vmatmul.mubr.f32.gmra.mrb[0].mxu0 %v2583
  %v2651 = vpop.f32.mrb[0].mxu0
  %v2652 = vadd.f32 0.0, %v2651
  %v2653 = vpop.f32.mrb[0].mxu0
  %2654 = vdwg.mxu0
  %v2655 = vadd.f32 %v2582, %v2652
  %v2656 = vtanh.pop %v2655
  %v2657 = vxor.u32 %v2655, 2147483648
  %v2658 = vmul.f32 %v2657, 1.442695
  %v2659 = vpow.pop %v2658
  %v2660 = vadd.f32 %v2659, 1.0
  %v2661 = vrcp.pop %v2660
  %v2662 = vmul.f32 1.0, %v2661
  %v2663 = vsel %vm54, %v2656, %v2662
  %v2664 = vmul.f32 %v2663, %v2570
  %2666 = vrot.lane.b32.xlu0 %v2663, 64
  %v2667 = vpop.permute.xlu0 %2666
  %v2669 = vmul.f32 %v2663, %v2667
  %2671 = vrot.lane.b32.xlu0 %v2669, 32
  %v2672 = vpop.permute.xlu0 %2671
  %v2674 = vadd.f32 %v2664, %v2672
  %v2675 = vtanh.pop %v2674
  %2677 = vrot.lane.b32.xlu0 %v2675, 64
  %v2678 = vpop.permute.xlu0 %2677
  %v2680 = vmul.f32 %v2663, %v2678
  %2682 = vrot.lane.b32.xlu0 %v2680, 32
  %v2683 = vpop.permute.xlu0 %2682
  %2685 = vst.msk [vmem:[%s655] sm:$0xff] %vm74, %v2683
  %v2686 = vld [vmem:[%s657] sm:$0xff]
  %v2687 = vsel %vm74, %v2683, 0
  %2689 = vmatprep.subr.mxu0 0.0
  %2690 = vmatpush1.msra.mxu0 %v2372
  %2691 = vmatprep.subr.mxu0 0.0
  %2692 = vmatpush1.msra.mxu0 %v2373
  %2693 = vmatprep.subr.mxu0 0.0
  %2694 = vmatpush1.msra.mxu0 %v2374
  %2695 = vmatprep.subr.mxu0 0.0
  %2696 = vmatpush1.msra.mxu0 %v2375
  %2697 = vmatprep.subr.mxu0 0.0
  %2698 = vmatpush1.msra.mxu0 0.0
  %2699 = vmatprep.subr.mxu0 0.0
  %2700 = vmatpush1.msra.mxu0 0.0
  %2701 = vmatprep.subr.mxu0 0.0
  %2702 = vmatpush1.msra.mxu0 0.0
  %2703 = vmatprep.subr.mxu0 0.0
  %2704 = vmatpush1.msra.mxu0 0.0
  %2705 = vmatprep.subr.mxu0 0.0
  %2706 = vmatpush1.msra.mxu0 0.0
  %2707 = vmatprep.subr.mxu0 0.0
  %2708 = vmatpush1.msra.mxu0 0.0
  %2709 = vmatprep.subr.mxu0 0.0
  %2710 = vmatpush1.msra.mxu0 0.0
  %2711 = vmatprep.subr.mxu0 0.0
  %2712 = vmatpush1.msra.mxu0 0.0
  %2713 = vmatprep.subr.mxu0 0.0
  %2714 = vmatpush1.msra.mxu0 0.0
  %2715 = vmatprep.subr.mxu0 0.0
  %2716 = vmatpush1.msra.mxu0 0.0
  %2717 = vmatprep.subr.mxu0 0.0
  %2718 = vmatpush1.msra.mxu0 0.0
  %2719 = vmatprep.subr.mxu0 0.0
  %2720 = vmatpush1.msra.mxu0 0.0
  %2721 = vmatprep.subr.mxu0 0.0
  %2722 = vmatpush1.msra.mxu0 0.0
  %2723 = vmatprep.subr.mxu0 0.0
  %2724 = vmatpush1.msra.mxu0 0.0
  %2725 = vmatprep.subr.mxu0 0.0
  %2726 = vmatpush1.msra.mxu0 0.0
  %2727 = vmatprep.subr.mxu0 0.0
  %2728 = vmatpush1.msra.mxu0 0.0
  %2729 = vmatprep.subr.mxu0 0.0
  %2730 = vmatpush1.msra.mxu0 0.0
  %2731 = vmatprep.subr.mxu0 0.0
  %2732 = vmatpush1.msra.mxu0 0.0
  %2733 = vmatprep.subr.mxu0 0.0
  %2734 = vmatpush1.msra.mxu0 0.0
  %2735 = vmatprep.subr.mxu0 0.0
  %2736 = vmatpush1.msra.mxu0 0.0
  %2737 = vmatprep.subr.mxu0 0.0
  %2738 = vmatpush1.msra.mxu0 0.0
  %2739 = vmatprep.subr.mxu0 0.0
  %2740 = vmatpush1.msra.mxu0 0.0
  %2741 = vmatprep.subr.mxu0 0.0
  %2742 = vmatpush1.msra.mxu0 0.0
  %2743 = vmatprep.subr.mxu0 0.0
  %2744 = vmatpush1.msra.mxu0 0.0
  %2745 = vmatprep.subr.mxu0 0.0
  %2746 = vmatpush1.msra.mxu0 0.0
  %2747 = vmatprep.subr.mxu0 0.0
  %2748 = vmatpush1.msra.mxu0 0.0
  %2749 = vmatprep.subr.mxu0 0.0
  %2750 = vmatpush1.msra.mxu0 0.0
  %2751 = vmatprep.subr.mxu0 0.0
  %2752 = vmatpush1.msra.mxu0 0.0
  %2753 = vmatprep.mubr.f32.mxu0 0.0
  %2754 = vmatmul.mubr.f32.gmra.mrb[0].mxu0 %v2687
  %v2755 = vpop.f32.mrb[0].mxu0
  %v2756 = vadd.f32 0.0, %v2755
  %v2757 = vpop.f32.mrb[0].mxu0
  %2758 = vdwg.mxu0
  %v2759 = vadd.f32 %v2686, %v2756
  %v2760 = vtanh.pop %v2759
  %v2761 = vxor.u32 %v2759, 2147483648
  %v2762 = vmul.f32 %v2761, 1.442695
  %v2763 = vpow.pop %v2762
  %v2764 = vadd.f32 %v2763, 1.0
  %v2765 = vrcp.pop %v2764
  %v2766 = vmul.f32 1.0, %v2765
  %v2767 = vsel %vm54, %v2760, %v2766
  %v2768 = vmul.f32 %v2767, %v2674
  %2770 = vrot.lane.b32.xlu0 %v2767, 64
  %v2771 = vpop.permute.xlu0 %2770
  %v2773 = vmul.f32 %v2767, %v2771
  %2775 = vrot.lane.b32.xlu0 %v2773, 32
  %v2776 = vpop.permute.xlu0 %2775
  %v2778 = vadd.f32 %v2768, %v2776
  %v2779 = vtanh.pop %v2778
  %2781 = vrot.lane.b32.xlu0 %v2779, 64
  %v2782 = vpop.permute.xlu0 %2781
  %v2784 = vmul.f32 %v2767, %v2782
  %2786 = vrot.lane.b32.xlu0 %v2784, 32
  %v2787 = vpop.permute.xlu0 %2786
  %2789 = vst.msk [vmem:[%s761] sm:$0xff] %vm74, %v2787
  %v2790 = vld [vmem:[%s763] sm:$0xff]
  %v2791 = vsel %vm74, %v2787, 0
  %2793 = vmatprep.subr.mxu0 0.0
  %2794 = vmatpush1.msra.mxu0 %v2372
  %2795 = vmatprep.subr.mxu0 0.0
  %2796 = vmatpush1.msra.mxu0 %v2373
  %2797 = vmatprep.subr.mxu0 0.0
  %2798 = vmatpush1.msra.mxu0 %v2374
  %2799 = vmatprep.subr.mxu0 0.0
  %2800 = vmatpush1.msra.mxu0 %v2375
  %2801 = vmatprep.subr.mxu0 0.0
  %2802 = vmatpush1.msra.mxu0 0.0
  %2803 = vmatprep.subr.mxu0 0.0
  %2804 = vmatpush1.msra.mxu0 0.0
  %2805 = vmatprep.subr.mxu0 0.0
  %2806 = vmatpush1.msra.mxu0 0.0
  %2807 = vmatprep.subr.mxu0 0.0
  %2808 = vmatpush1.msra.mxu0 0.0
  %2809 = vmatprep.subr.mxu0 0.0
  %2810 = vmatpush1.msra.mxu0 0.0
  %2811 = vmatprep.subr.mxu0 0.0
  %2812 = vmatpush1.msra.mxu0 0.0
  %2813 = vmatprep.subr.mxu0 0.0
  %2814 = vmatpush1.msra.mxu0 0.0
  %2815 = vmatprep.subr.mxu0 0.0
  %2816 = vmatpush1.msra.mxu0 0.0
  %2817 = vmatprep.subr.mxu0 0.0
  %2818 = vmatpush1.msra.mxu0 0.0
  %2819 = vmatprep.subr.mxu0 0.0
  %2820 = vmatpush1.msra.mxu0 0.0
  %2821 = vmatprep.subr.mxu0 0.0
  %2822 = vmatpush1.msra.mxu0 0.0
  %2823 = vmatprep.subr.mxu0 0.0
  %2824 = vmatpush1.msra.mxu0 0.0
  %2825 = vmatprep.subr.mxu0 0.0
  %2826 = vmatpush1.msra.mxu0 0.0
  %2827 = vmatprep.subr.mxu0 0.0
  %2828 = vmatpush1.msra.mxu0 0.0
  %2829 = vmatprep.subr.mxu0 0.0
  %2830 = vmatpush1.msra.mxu0 0.0
  %2831 = vmatprep.subr.mxu0 0.0
  %2832 = vmatpush1.msra.mxu0 0.0
  %2833 = vmatprep.subr.mxu0 0.0
  %2834 = vmatpush1.msra.mxu0 0.0
  %2835 = vmatprep.subr.mxu0 0.0
  %2836 = vmatpush1.msra.mxu0 0.0
  %2837 = vmatprep.subr.mxu0 0.0
  %2838 = vmatpush1.msra.mxu0 0.0
  %2839 = vmatprep.subr.mxu0 0.0
  %2840 = vmatpush1.msra.mxu0 0.0
  %2841 = vmatprep.subr.mxu0 0.0
  %2842 = vmatpush1.msra.mxu0 0.0
  %2843 = vmatprep.subr.mxu0 0.0
  %2844 = vmatpush1.msra.mxu0 0.0
  %2845 = vmatprep.subr.mxu0 0.0
  %2846 = vmatpush1.msra.mxu0 0.0
  %2847 = vmatprep.subr.mxu0 0.0
  %2848 = vmatpush1.msra.mxu0 0.0
  %2849 = vmatprep.subr.mxu0 0.0
  %2850 = vmatpush1.msra.mxu0 0.0
  %2851 = vmatprep.subr.mxu0 0.0
  %2852 = vmatpush1.msra.mxu0 0.0
  %2853 = vmatprep.subr.mxu0 0.0
  %2854 = vmatpush1.msra.mxu0 0.0
  %2855 = vmatprep.subr.mxu0 0.0
  %2856 = vmatpush1.msra.mxu0 0.0
  %2857 = vmatprep.mubr.f32.mxu0 0.0
  %2858 = vmatmul.mubr.f32.gmra.mrb[0].mxu0 %v2791
  %v2859 = vpop.f32.mrb[0].mxu0
  %v2860 = vadd.f32 0.0, %v2859
  %v2861 = vpop.f32.mrb[0].mxu0
  %2862 = vdwg.mxu0
  %v2863 = vadd.f32 %v2790, %v2860
  %v2864 = vtanh.pop %v2863
  %v2865 = vxor.u32 %v2863, 2147483648
  %v2866 = vmul.f32 %v2865, 1.442695
  %v2867 = vpow.pop %v2866
  %v2868 = vadd.f32 %v2867, 1.0
  %v2869 = vrcp.pop %v2868
  %v2870 = vmul.f32 1.0, %v2869
  %v2871 = vsel %vm54, %v2864, %v2870
  %v2872 = vmul.f32 %v2871, %v2778
  %2874 = vrot.lane.b32.xlu0 %v2871, 64
  %v2875 = vpop.permute.xlu0 %2874
  %v2877 = vmul.f32 %v2871, %v2875
  %2879 = vrot.lane.b32.xlu0 %v2877, 32
  %v2880 = vpop.permute.xlu0 %2879
  %v2882 = vadd.f32 %v2872, %v2880
  %v2883 = vtanh.pop %v2882
  %2885 = vrot.lane.b32.xlu0 %v2883, 64
  %v2886 = vpop.permute.xlu0 %2885
  %v2888 = vmul.f32 %v2871, %v2886
  %2890 = vrot.lane.b32.xlu0 %v2888, 32
  %v2891 = vpop.permute.xlu0 %2890
  %2893 = vst.msk [vmem:[%s867] sm:$0xff] %vm74, %v2891
  %v2894 = vld [vmem:[%s869] sm:$0xff]
  %v2895 = vsel %vm74, %v2891, 0
  %2897 = vmatprep.subr.mxu0 0.0
  %2898 = vmatpush1.msra.mxu0 %v2372
  %2899 = vmatprep.subr.mxu0 0.0
  %2900 = vmatpush1.msra.mxu0 %v2373
  %2901 = vmatprep.subr.mxu0 0.0
  %2902 = vmatpush1.msra.mxu0 %v2374
  %2903 = vmatprep.subr.mxu0 0.0
  %2904 = vmatpush1.msra.mxu0 %v2375
  %2905 = vmatprep.subr.mxu0 0.0
  %2906 = vmatpush1.msra.mxu0 0.0
  %2907 = vmatprep.subr.mxu0 0.0
  %2908 = vmatpush1.msra.mxu0 0.0
  %2909 = vmatprep.subr.mxu0 0.0
  %2910 = vmatpush1.msra.mxu0 0.0
  %2911 = vmatprep.subr.mxu0 0.0
  %2912 = vmatpush1.msra.mxu0 0.0
  %2913 = vmatprep.subr.mxu0 0.0
  %2914 = vmatpush1.msra.mxu0 0.0
  %2915 = vmatprep.subr.mxu0 0.0
  %2916 = vmatpush1.msra.mxu0 0.0
  %2917 = vmatprep.subr.mxu0 0.0
  %2918 = vmatpush1.msra.mxu0 0.0
  %2919 = vmatprep.subr.mxu0 0.0
  %2920 = vmatpush1.msra.mxu0 0.0
  %2921 = vmatprep.subr.mxu0 0.0
  %2922 = vmatpush1.msra.mxu0 0.0
  %2923 = vmatprep.subr.mxu0 0.0
  %2924 = vmatpush1.msra.mxu0 0.0
  %2925 = vmatprep.subr.mxu0 0.0
  %2926 = vmatpush1.msra.mxu0 0.0
  %2927 = vmatprep.subr.mxu0 0.0
  %2928 = vmatpush1.msra.mxu0 0.0
  %2929 = vmatprep.subr.mxu0 0.0
  %2930 = vmatpush1.msra.mxu0 0.0
  %2931 = vmatprep.subr.mxu0 0.0
  %2932 = vmatpush1.msra.mxu0 0.0
  %2933 = vmatprep.subr.mxu0 0.0
  %2934 = vmatpush1.msra.mxu0 0.0
  %2935 = vmatprep.subr.mxu0 0.0
  %2936 = vmatpush1.msra.mxu0 0.0
  %2937 = vmatprep.subr.mxu0 0.0
  %2938 = vmatpush1.msra.mxu0 0.0
  %2939 = vmatprep.subr.mxu0 0.0
  %2940 = vmatpush1.msra.mxu0 0.0
  %2941 = vmatprep.subr.mxu0 0.0
  %2942 = vmatpush1.msra.mxu0 0.0
  %2943 = vmatprep.subr.mxu0 0.0
  %2944 = vmatpush1.msra.mxu0 0.0
  %2945 = vmatprep.subr.mxu0 0.0
  %2946 = vmatpush1.msra.mxu0 0.0
  %2947 = vmatprep.subr.mxu0 0.0
  %2948 = vmatpush1.msra.mxu0 0.0
  %2949 = vmatprep.subr.mxu0 0.0
  %2950 = vmatpush1.msra.mxu0 0.0
  %2951 = vmatprep.subr.mxu0 0.0
  %2952 = vmatpush1.msra.mxu0 0.0
  %2953 = vmatprep.subr.mxu0 0.0
  %2954 = vmatpush1.msra.mxu0 0.0
  %2955 = vmatprep.subr.mxu0 0.0
  %2956 = vmatpush1.msra.mxu0 0.0
  %2957 = vmatprep.subr.mxu0 0.0
  %2958 = vmatpush1.msra.mxu0 0.0
  %2959 = vmatprep.subr.mxu0 0.0
  %2960 = vmatpush1.msra.mxu0 0.0
  %2961 = vmatprep.mubr.f32.mxu0 0.0
  %2962 = vmatmul.mubr.f32.gmra.mrb[0].mxu0 %v2895
  %v2963 = vpop.f32.mrb[0].mxu0
  %v2964 = vadd.f32 0.0, %v2963
  %v2965 = vpop.f32.mrb[0].mxu0
  %2966 = vdwg.mxu0
  %v2967 = vadd.f32 %v2894, %v2964
  %v2968 = vtanh.pop %v2967
  %v2969 = vxor.u32 %v2967, 2147483648
  %v2970 = vmul.f32 %v2969, 1.442695
  %v2971 = vpow.pop %v2970
  %v2972 = vadd.f32 %v2971, 1.0
  %v2973 = vrcp.pop %v2972
  %v2974 = vmul.f32 1.0, %v2973
  %v2975 = vsel %vm54, %v2968, %v2974
  %v2976 = vmul.f32 %v2975, %v2882
  %2978 = vrot.lane.b32.xlu0 %v2975, 64
  %v2979 = vpop.permute.xlu0 %2978
  %v2981 = vmul.f32 %v2975, %v2979
  %2983 = vrot.lane.b32.xlu0 %v2981, 32
  %v2984 = vpop.permute.xlu0 %2983
  %v2986 = vadd.f32 %v2976, %v2984
  %v2987 = vtanh.pop %v2986
  %2989 = vrot.lane.b32.xlu0 %v2987, 64
  %v2990 = vpop.permute.xlu0 %2989
  %v2992 = vmul.f32 %v2975, %v2990
  %2994 = vrot.lane.b32.xlu0 %v2992, 32
  %v2995 = vpop.permute.xlu0 %2994
  %2997 = vst.msk [vmem:[%s973] sm:$0xff] %vm74, %v2995
  %v2998 = vld [vmem:[%s975] sm:$0xff]
  %v2999 = vsel %vm74, %v2995, 0
  %3001 = vmatprep.subr.mxu0 0.0
  %3002 = vmatpush1.msra.mxu0 %v2372
  %3003 = vmatprep.subr.mxu0 0.0
  %3004 = vmatpush1.msra.mxu0 %v2373
  %3005 = vmatprep.subr.mxu0 0.0
  %3006 = vmatpush1.msra.mxu0 %v2374
  %3007 = vmatprep.subr.mxu0 0.0
  %3008 = vmatpush1.msra.mxu0 %v2375
  %3009 = vmatprep.subr.mxu0 0.0
  %3010 = vmatpush1.msra.mxu0 0.0
  %3011 = vmatprep.subr.mxu0 0.0
  %3012 = vmatpush1.msra.mxu0 0.0
  %3013 = vmatprep.subr.mxu0 0.0
  %3014 = vmatpush1.msra.mxu0 0.0
  %3015 = vmatprep.subr.mxu0 0.0
  %3016 = vmatpush1.msra.mxu0 0.0
  %3017 = vmatprep.subr.mxu0 0.0
  %3018 = vmatpush1.msra.mxu0 0.0
  %3019 = vmatprep.subr.mxu0 0.0
  %3020 = vmatpush1.msra.mxu0 0.0
  %3021 = vmatprep.subr.mxu0 0.0
  %3022 = vmatpush1.msra.mxu0 0.0
  %3023 = vmatprep.subr.mxu0 0.0
  %3024 = vmatpush1.msra.mxu0 0.0
  %3025 = vmatprep.subr.mxu0 0.0
  %3026 = vmatpush1.msra.mxu0 0.0
  %3027 = vmatprep.subr.mxu0 0.0
  %3028 = vmatpush1.msra.mxu0 0.0
  %3029 = vmatprep.subr.mxu0 0.0
  %3030 = vmatpush1.msra.mxu0 0.0
  %3031 = vmatprep.subr.mxu0 0.0
  %3032 = vmatpush1.msra.mxu0 0.0
  %3033 = vmatprep.subr.mxu0 0.0
  %3034 = vmatpush1.msra.mxu0 0.0
  %3035 = vmatprep.subr.mxu0 0.0
  %3036 = vmatpush1.msra.mxu0 0.0
  %3037 = vmatprep.subr.mxu0 0.0
  %3038 = vmatpush1.msra.mxu0 0.0
  %3039 = vmatprep.subr.mxu0 0.0
  %3040 = vmatpush1.msra.mxu0 0.0
  %3041 = vmatprep.subr.mxu0 0.0
  %3042 = vmatpush1.msra.mxu0 0.0
  %3043 = vmatprep.subr.mxu0 0.0
  %3044 = vmatpush1.msra.mxu0 0.0
  %3045 = vmatprep.subr.mxu0 0.0
  %3046 = vmatpush1.msra.mxu0 0.0
  %3047 = vmatprep.subr.mxu0 0.0
  %3048 = vmatpush1.msra.mxu0 0.0
  %3049 = vmatprep.subr.mxu0 0.0
  %3050 = vmatpush1.msra.mxu0 0.0
  %3051 = vmatprep.subr.mxu0 0.0
  %3052 = vmatpush1.msra.mxu0 0.0
  %3053 = vmatprep.subr.mxu0 0.0
  %3054 = vmatpush1.msra.mxu0 0.0
  %3055 = vmatprep.subr.mxu0 0.0
  %3056 = vmatpush1.msra.mxu0 0.0
  %3057 = vmatprep.subr.mxu0 0.0
  %3058 = vmatpush1.msra.mxu0 0.0
  %3059 = vmatprep.subr.mxu0 0.0
  %3060 = vmatpush1.msra.mxu0 0.0
  %3061 = vmatprep.subr.mxu0 0.0
  %3062 = vmatpush1.msra.mxu0 0.0
  %3063 = vmatprep.subr.mxu0 0.0
  %3064 = vmatpush1.msra.mxu0 0.0
  %3065 = vmatprep.mubr.f32.mxu0 0.0
  %3066 = vmatmul.mubr.f32.gmra.mrb[0].mxu0 %v2999
  %v3067 = vpop.f32.mrb[0].mxu0
  %v3068 = vadd.f32 0.0, %v3067
  %v3069 = vpop.f32.mrb[0].mxu0
  %3070 = vdwg.mxu0
  %v3071 = vadd.f32 %v2998, %v3068
  %v3072 = vtanh.pop %v3071
  %v3073 = vxor.u32 %v3071, 2147483648
  %v3074 = vmul.f32 %v3073, 1.442695
  %v3075 = vpow.pop %v3074
  %v3076 = vadd.f32 %v3075, 1.0
  %v3077 = vrcp.pop %v3076
  %v3078 = vmul.f32 1.0, %v3077
  %v3079 = vsel %vm54, %v3072, %v3078
  %v3080 = vmul.f32 %v3079, %v2986
  %3082 = vrot.lane.b32.xlu0 %v3079, 64
  %v3083 = vpop.permute.xlu0 %3082
  %v3085 = vmul.f32 %v3079, %v3083
  %3087 = vrot.lane.b32.xlu0 %v3085, 32
  %v3088 = vpop.permute.xlu0 %3087
  %v3090 = vadd.f32 %v3080, %v3088
  %v3091 = vtanh.pop %v3090
  %3093 = vrot.lane.b32.xlu0 %v3091, 64
  %v3094 = vpop.permute.xlu0 %3093
  %v3096 = vmul.f32 %v3079, %v3094
  %3098 = vrot.lane.b32.xlu0 %v3096, 32
  %v3099 = vpop.permute.xlu0 %3098
  %3101 = vst.msk [vmem:[%s1079] sm:$0xff] %vm74, %v3099
  %v3102 = vld [vmem:[%s1081] sm:$0xff]
  %v3103 = vsel %vm74, %v3099, 0
  %3105 = vmatprep.subr.mxu0 0.0
  %3106 = vmatpush1.msra.mxu0 %v2372
  %3107 = vmatprep.subr.mxu0 0.0
  %3108 = vmatpush1.msra.mxu0 %v2373
  %3109 = vmatprep.subr.mxu0 0.0
  %3110 = vmatpush1.msra.mxu0 %v2374
  %3111 = vmatprep.subr.mxu0 0.0
  %3112 = vmatpush1.msra.mxu0 %v2375
  %3113 = vmatprep.subr.mxu0 0.0
  %3114 = vmatpush1.msra.mxu0 0.0
  %3115 = vmatprep.subr.mxu0 0.0
  %3116 = vmatpush1.msra.mxu0 0.0
  %3117 = vmatprep.subr.mxu0 0.0
  %3118 = vmatpush1.msra.mxu0 0.0
  %3119 = vmatprep.subr.mxu0 0.0
  %3120 = vmatpush1.msra.mxu0 0.0
  %3121 = vmatprep.subr.mxu0 0.0
  %3122 = vmatpush1.msra.mxu0 0.0
  %3123 = vmatprep.subr.mxu0 0.0
  %3124 = vmatpush1.msra.mxu0 0.0
  %3125 = vmatprep.subr.mxu0 0.0
  %3126 = vmatpush1.msra.mxu0 0.0
  %3127 = vmatprep.subr.mxu0 0.0
  %3128 = vmatpush1.msra.mxu0 0.0
  %3129 = vmatprep.subr.mxu0 0.0
  %3130 = vmatpush1.msra.mxu0 0.0
  %3131 = vmatprep.subr.mxu0 0.0
  %3132 = vmatpush1.msra.mxu0 0.0
  %3133 = vmatprep.subr.mxu0 0.0
  %3134 = vmatpush1.msra.mxu0 0.0
  %3135 = vmatprep.subr.mxu0 0.0
  %3136 = vmatpush1.msra.mxu0 0.0
  %3137 = vmatprep.subr.mxu0 0.0
  %3138 = vmatpush1.msra.mxu0 0.0
  %3139 = vmatprep.subr.mxu0 0.0
  %3140 = vmatpush1.msra.mxu0 0.0
  %3141 = vmatprep.subr.mxu0 0.0
  %3142 = vmatpush1.msra.mxu0 0.0
  %3143 = vmatprep.subr.mxu0 0.0
  %3144 = vmatpush1.msra.mxu0 0.0
  %3145 = vmatprep.subr.mxu0 0.0
  %3146 = vmatpush1.msra.mxu0 0.0
  %3147 = vmatprep.subr.mxu0 0.0
  %3148 = vmatpush1.msra.mxu0 0.0
  %3149 = vmatprep.subr.mxu0 0.0
  %3150 = vmatpush1.msra.mxu0 0.0
  %3151 = vmatprep.subr.mxu0 0.0
  %3152 = vmatpush1.msra.mxu0 0.0
  %3153 = vmatprep.subr.mxu0 0.0
  %3154 = vmatpush1.msra.mxu0 0.0
  %3155 = vmatprep.subr.mxu0 0.0
  %3156 = vmatpush1.msra.mxu0 0.0
  %3157 = vmatprep.subr.mxu0 0.0
  %3158 = vmatpush1.msra.mxu0 0.0
  %3159 = vmatprep.subr.mxu0 0.0
  %3160 = vmatpush1.msra.mxu0 0.0
  %3161 = vmatprep.subr.mxu0 0.0
  %3162 = vmatpush1.msra.mxu0 0.0
  %3163 = vmatprep.subr.mxu0 0.0
  %3164 = vmatpush1.msra.mxu0 0.0
  %3165 = vmatprep.subr.mxu0 0.0
  %3166 = vmatpush1.msra.mxu0 0.0
  %3167 = vmatprep.subr.mxu0 0.0
  %3168 = vmatpush1.msra.mxu0 0.0
  %3169 = vmatprep.mubr.f32.mxu0 0.0
  %3170 = vmatmul.mubr.f32.gmra.mrb[0].mxu0 %v3103
  %v3171 = vpop.f32.mrb[0].mxu0
  %v3172 = vadd.f32 0.0, %v3171
  %v3173 = vpop.f32.mrb[0].mxu0
  %3174 = vdwg.mxu0
  %v3175 = vadd.f32 %v3102, %v3172
  %v3176 = vtanh.pop %v3175
  %v3177 = vxor.u32 %v3175, 2147483648
  %v3178 = vmul.f32 %v3177, 1.442695
  %v3179 = vpow.pop %v3178
  %v3180 = vadd.f32 %v3179, 1.0
  %v3181 = vrcp.pop %v3180
  %v3182 = vmul.f32 1.0, %v3181
  %v3183 = vsel %vm54, %v3176, %v3182
  %v3184 = vmul.f32 %v3183, %v3090
  %3186 = vrot.lane.b32.xlu0 %v3183, 64
  %v3187 = vpop.permute.xlu0 %3186
  %v3189 = vmul.f32 %v3183, %v3187
  %3191 = vrot.lane.b32.xlu0 %v3189, 32
  %v3192 = vpop.permute.xlu0 %3191
  %v3194 = vadd.f32 %v3184, %v3192
  %v3195 = vtanh.pop %v3194
  %3197 = vrot.lane.b32.xlu0 %v3195, 64
  %v3198 = vpop.permute.xlu0 %3197
  %v3200 = vmul.f32 %v3183, %v3198
  %3202 = vrot.lane.b32.xlu0 %v3200, 32
  %v3203 = vpop.permute.xlu0 %3202
  %3205 = vst.msk [vmem:[%s1185] sm:$0xff] %vm74, %v3203
  %v3206 = vld [vmem:[%s11] sm:$0xff]
  %v3207 = vld [vmem:[%s11 + $0x8] sm:$0xff]
  %v3208 = vld [vmem:[%s11 + $0x10] sm:$0xff]
  %v3209 = vld [vmem:[%s11 + $0x18] sm:$0xff]
  %v3210 = vld [vmem:[%s1191] sm:$0xff]
  %3211 = vmatprep.subr.mxu0 0.0
  %3212 = vmatpush1.msra.mxu0 %v3206
  %3213 = vmatprep.subr.mxu0 0.0
  %3214 = vmatpush1.msra.mxu0 %v3207
  %3215 = vmatprep.subr.mxu0 0.0
  %3216 = vmatpush1.msra.mxu0 %v3208
  %3217 = vmatprep.subr.mxu0 0.0
  %3218 = vmatpush1.msra.mxu0 %v3209
  %3219 = vmatprep.subr.mxu0 0.0
  %3220 = vmatpush1.msra.mxu0 0.0
  %3221 = vmatprep.subr.mxu0 0.0
  %3222 = vmatpush1.msra.mxu0 0.0
  %3223 = vmatprep.subr.mxu0 0.0
  %3224 = vmatpush1.msra.mxu0 0.0
  %3225 = vmatprep.subr.mxu0 0.0
  %3226 = vmatpush1.msra.mxu0 0.0
  %3227 = vmatprep.subr.mxu0 0.0
  %3228 = vmatpush1.msra.mxu0 0.0
  %3229 = vmatprep.subr.mxu0 0.0
  %3230 = vmatpush1.msra.mxu0 0.0
  %3231 = vmatprep.subr.mxu0 0.0
  %3232 = vmatpush1.msra.mxu0 0.0
  %3233 = vmatprep.subr.mxu0 0.0
  %3234 = vmatpush1.msra.mxu0 0.0
  %3235 = vmatprep.subr.mxu0 0.0
  %3236 = vmatpush1.msra.mxu0 0.0
  %3237 = vmatprep.subr.mxu0 0.0
  %3238 = vmatpush1.msra.mxu0 0.0
  %3239 = vmatprep.subr.mxu0 0.0
  %3240 = vmatpush1.msra.mxu0 0.0
  %3241 = vmatprep.subr.mxu0 0.0
  %3242 = vmatpush1.msra.mxu0 0.0
  %3243 = vmatprep.subr.mxu0 0.0
  %3244 = vmatpush1.msra.mxu0 0.0
  %3245 = vmatprep.subr.mxu0 0.0
  %3246 = vmatpush1.msra.mxu0 0.0
  %3247 = vmatprep.subr.mxu0 0.0
  %3248 = vmatpush1.msra.mxu0 0.0
  %3249 = vmatprep.subr.mxu0 0.0
  %3250 = vmatpush1.msra.mxu0 0.0
  %3251 = vmatprep.subr.mxu0 0.0
  %3252 = vmatpush1.msra.mxu0 0.0
  %3253 = vmatprep.subr.mxu0 0.0
  %3254 = vmatpush1.msra.mxu0 0.0
  %3255 = vmatprep.subr.mxu0 0.0
  %3256 = vmatpush1.msra.mxu0 0.0
  %3257 = vmatprep.subr.mxu0 0.0
  %3258 = vmatpush1.msra.mxu0 0.0
  %3259 = vmatprep.subr.mxu0 0.0
  %3260 = vmatpush1.msra.mxu0 0.0
  %3261 = vmatprep.subr.mxu0 0.0
  %3262 = vmatpush1.msra.mxu0 0.0
  %3263 = vmatprep.subr.mxu0 0.0
  %3264 = vmatpush1.msra.mxu0 0.0
  %3265 = vmatprep.subr.mxu0 0.0
  %3266 = vmatpush1.msra.mxu0 0.0
  %3267 = vmatprep.subr.mxu0 0.0
  %3268 = vmatpush1.msra.mxu0 0.0
  %3269 = vmatprep.subr.mxu0 0.0
  %3270 = vmatpush1.msra.mxu0 0.0
  %3271 = vmatprep.subr.mxu0 0.0
  %3272 = vmatpush1.msra.mxu0 0.0
  %3273 = vmatprep.subr.mxu0 0.0
  %3274 = vmatpush1.msra.mxu0 0.0
  %3275 = vmatprep.mubr.f32.mxu0 0.0
  %3276 = vmatmul.mubr.f32.gmra.mrb[0].mxu0 %v342
  %v3277 = vpop.f32.mrb[0].mxu0
  %v3278 = vadd.f32 0.0, %v3277
  %v3279 = vpop.f32.mrb[0].mxu0
  %3280 = vdwg.mxu0
  %v3281 = vadd.f32 %v3210, %v3278
  %v3282 = vtanh.pop %v3281
  %v3283 = vxor.u32 %v3281, 2147483648
  %v3284 = vmul.f32 %v3283, 1.442695
  %v3285 = vpow.pop %v3284
  %v3286 = vadd.f32 %v3285, 1.0
  %v3287 = vrcp.pop %v3286
  %v3288 = vmul.f32 1.0, %v3287
  %v3289 = vsel %vm54, %v3282, %v3288
  %v3290 = vmul.f32 %v3289, 0.0
  %3292 = vrot.lane.b32.xlu0 %v3289, 64
  %v3293 = vpop.permute.xlu0 %3292
  %v3295 = vmul.f32 %v3289, %v3293
  %3297 = vrot.lane.b32.xlu0 %v3295, 32
  %v3298 = vpop.permute.xlu0 %3297
  %v3300 = vadd.f32 %v3290, %v3298
  %v3301 = vtanh.pop %v3300
  %3303 = vrot.lane.b32.xlu0 %v3301, 64
  %v3304 = vpop.permute.xlu0 %3303
  %v3306 = vmul.f32 %v3289, %v3304
  %3308 = vrot.lane.b32.xlu0 %v3306, 32
  %v3309 = vpop.permute.xlu0 %3308
  %3311 = vst.msk [vmem:[%s1293] sm:$0xff] %vm74, %v3309
  %v3312 = vld [vmem:[%s1295] sm:$0xff]
  %v3313 = vsel %vm74, %v3309, 0
  %3315 = vmatprep.subr.mxu0 0.0
  %3316 = vmatpush1.msra.mxu0 %v3206
  %3317 = vmatprep.subr.mxu0 0.0
  %3318 = vmatpush1.msra.mxu0 %v3207
  %3319 = vmatprep.subr.mxu0 0.0
  %3320 = vmatpush1.msra.mxu0 %v3208
  %3321 = vmatprep.subr.mxu0 0.0
  %3322 = vmatpush1.msra.mxu0 %v3209
  %3323 = vmatprep.subr.mxu0 0.0
  %3324 = vmatpush1.msra.mxu0 0.0
  %3325 = vmatprep.subr.mxu0 0.0
  %3326 = vmatpush1.msra.mxu0 0.0
  %3327 = vmatprep.subr.mxu0 0.0
  %3328 = vmatpush1.msra.mxu0 0.0
  %3329 = vmatprep.subr.mxu0 0.0
  %3330 = vmatpush1.msra.mxu0 0.0
  %3331 = vmatprep.subr.mxu0 0.0
  %3332 = vmatpush1.msra.mxu0 0.0
  %3333 = vmatprep.subr.mxu0 0.0
  %3334 = vmatpush1.msra.mxu0 0.0
  %3335 = vmatprep.subr.mxu0 0.0
  %3336 = vmatpush1.msra.mxu0 0.0
  %3337 = vmatprep.subr.mxu0 0.0
  %3338 = vmatpush1.msra.mxu0 0.0
  %3339 = vmatprep.subr.mxu0 0.0
  %3340 = vmatpush1.msra.mxu0 0.0
  %3341 = vmatprep.subr.mxu0 0.0
  %3342 = vmatpush1.msra.mxu0 0.0
  %3343 = vmatprep.subr.mxu0 0.0
  %3344 = vmatpush1.msra.mxu0 0.0
  %3345 = vmatprep.subr.mxu0 0.0
  %3346 = vmatpush1.msra.mxu0 0.0
  %3347 = vmatprep.subr.mxu0 0.0
  %3348 = vmatpush1.msra.mxu0 0.0
  %3349 = vmatprep.subr.mxu0 0.0
  %3350 = vmatpush1.msra.mxu0 0.0
  %3351 = vmatprep.subr.mxu0 0.0
  %3352 = vmatpush1.msra.mxu0 0.0
  %3353 = vmatprep.subr.mxu0 0.0
  %3354 = vmatpush1.msra.mxu0 0.0
  %3355 = vmatprep.subr.mxu0 0.0
  %3356 = vmatpush1.msra.mxu0 0.0
  %3357 = vmatprep.subr.mxu0 0.0
  %3358 = vmatpush1.msra.mxu0 0.0
  %3359 = vmatprep.subr.mxu0 0.0
  %3360 = vmatpush1.msra.mxu0 0.0
  %3361 = vmatprep.subr.mxu0 0.0
  %3362 = vmatpush1.msra.mxu0 0.0
  %3363 = vmatprep.subr.mxu0 0.0
  %3364 = vmatpush1.msra.mxu0 0.0
  %3365 = vmatprep.subr.mxu0 0.0
  %3366 = vmatpush1.msra.mxu0 0.0
  %3367 = vmatprep.subr.mxu0 0.0
  %3368 = vmatpush1.msra.mxu0 0.0
  %3369 = vmatprep.subr.mxu0 0.0
  %3370 = vmatpush1.msra.mxu0 0.0
  %3371 = vmatprep.subr.mxu0 0.0
  %3372 = vmatpush1.msra.mxu0 0.0
  %3373 = vmatprep.subr.mxu0 0.0
  %3374 = vmatpush1.msra.mxu0 0.0
  %3375 = vmatprep.subr.mxu0 0.0
  %3376 = vmatpush1.msra.mxu0 0.0
  %3377 = vmatprep.subr.mxu0 0.0
  %3378 = vmatpush1.msra.mxu0 0.0
  %3379 = vmatprep.mubr.f32.mxu0 0.0
  %3380 = vmatmul.mubr.f32.gmra.mrb[0].mxu0 %v3313
  %v3381 = vpop.f32.mrb[0].mxu0
  %v3382 = vadd.f32 0.0, %v3381
  %v3383 = vpop.f32.mrb[0].mxu0
  %3384 = vdwg.mxu0
  %v3385 = vadd.f32 %v3312, %v3382
  %v3386 = vtanh.pop %v3385
  %v3387 = vxor.u32 %v3385, 2147483648
  %v3388 = vmul.f32 %v3387, 1.442695
  %v3389 = vpow.pop %v3388
  %v3390 = vadd.f32 %v3389, 1.0
  %v3391 = vrcp.pop %v3390
  %v3392 = vmul.f32 1.0, %v3391
  %v3393 = vsel %vm54, %v3386, %v3392
  %v3394 = vmul.f32 %v3393, %v3300
  %3396 = vrot.lane.b32.xlu0 %v3393, 64
  %v3397 = vpop.permute.xlu0 %3396
  %v3399 = vmul.f32 %v3393, %v3397
  %3401 = vrot.lane.b32.xlu0 %v3399, 32
  %v3402 = vpop.permute.xlu0 %3401
  %v3404 = vadd.f32 %v3394, %v3402
  %v3405 = vtanh.pop %v3404
  %3407 = vrot.lane.b32.xlu0 %v3405, 64
  %v3408 = vpop.permute.xlu0 %3407
  %v3410 = vmul.f32 %v3393, %v3408
  %3412 = vrot.lane.b32.xlu0 %v3410, 32
  %v3413 = vpop.permute.xlu0 %3412
  %3415 = vst.msk [vmem:[%s1399] sm:$0xff] %vm74, %v3413
  %v3416 = vld [vmem:[%s1401] sm:$0xff]
  %v3417 = vsel %vm74, %v3413, 0
  %3419 = vmatprep.subr.mxu0 0.0
  %3420 = vmatpush1.msra.mxu0 %v3206
  %3421 = vmatprep.subr.mxu0 0.0
  %3422 = vmatpush1.msra.mxu0 %v3207
  %3423 = vmatprep.subr.mxu0 0.0
  %3424 = vmatpush1.msra.mxu0 %v3208
  %3425 = vmatprep.subr.mxu0 0.0
  %3426 = vmatpush1.msra.mxu0 %v3209
  %3427 = vmatprep.subr.mxu0 0.0
  %3428 = vmatpush1.msra.mxu0 0.0
  %3429 = vmatprep.subr.mxu0 0.0
  %3430 = vmatpush1.msra.mxu0 0.0
  %3431 = vmatprep.subr.mxu0 0.0
  %3432 = vmatpush1.msra.mxu0 0.0
  %3433 = vmatprep.subr.mxu0 0.0
  %3434 = vmatpush1.msra.mxu0 0.0
  %3435 = vmatprep.subr.mxu0 0.0
  %3436 = vmatpush1.msra.mxu0 0.0
  %3437 = vmatprep.subr.mxu0 0.0
  %3438 = vmatpush1.msra.mxu0 0.0
  %3439 = vmatprep.subr.mxu0 0.0
  %3440 = vmatpush1.msra.mxu0 0.0
  %3441 = vmatprep.subr.mxu0 0.0
  %3442 = vmatpush1.msra.mxu0 0.0
  %3443 = vmatprep.subr.mxu0 0.0
  %3444 = vmatpush1.msra.mxu0 0.0
  %3445 = vmatprep.subr.mxu0 0.0
  %3446 = vmatpush1.msra.mxu0 0.0
  %3447 = vmatprep.subr.mxu0 0.0
  %3448 = vmatpush1.msra.mxu0 0.0
  %3449 = vmatprep.subr.mxu0 0.0
  %3450 = vmatpush1.msra.mxu0 0.0
  %3451 = vmatprep.subr.mxu0 0.0
  %3452 = vmatpush1.msra.mxu0 0.0
  %3453 = vmatprep.subr.mxu0 0.0
  %3454 = vmatpush1.msra.mxu0 0.0
  %3455 = vmatprep.subr.mxu0 0.0
  %3456 = vmatpush1.msra.mxu0 0.0
  %3457 = vmatprep.subr.mxu0 0.0
  %3458 = vmatpush1.msra.mxu0 0.0
  %3459 = vmatprep.subr.mxu0 0.0
  %3460 = vmatpush1.msra.mxu0 0.0
  %3461 = vmatprep.subr.mxu0 0.0
  %3462 = vmatpush1.msra.mxu0 0.0
  %3463 = vmatprep.subr.mxu0 0.0
  %3464 = vmatpush1.msra.mxu0 0.0
  %3465 = vmatprep.subr.mxu0 0.0
  %3466 = vmatpush1.msra.mxu0 0.0
  %3467 = vmatprep.subr.mxu0 0.0
  %3468 = vmatpush1.msra.mxu0 0.0
  %3469 = vmatprep.subr.mxu0 0.0
  %3470 = vmatpush1.msra.mxu0 0.0
  %3471 = vmatprep.subr.mxu0 0.0
  %3472 = vmatpush1.msra.mxu0 0.0
  %3473 = vmatprep.subr.mxu0 0.0
  %3474 = vmatpush1.msra.mxu0 0.0
  %3475 = vmatprep.subr.mxu0 0.0
  %3476 = vmatpush1.msra.mxu0 0.0
  %3477 = vmatprep.subr.mxu0 0.0
  %3478 = vmatpush1.msra.mxu0 0.0
  %3479 = vmatprep.subr.mxu0 0.0
  %3480 = vmatpush1.msra.mxu0 0.0
  %3481 = vmatprep.subr.mxu0 0.0
  %3482 = vmatpush1.msra.mxu0 0.0
  %3483 = vmatprep.mubr.f32.mxu0 0.0
  %3484 = vmatmul.mubr.f32.gmra.mrb[0].mxu0 %v3417
  %v3485 = vpop.f32.mrb[0].mxu0
  %v3486 = vadd.f32 0.0, %v3485
  %v3487 = vpop.f32.mrb[0].mxu0
  %3488 = vdwg.mxu0
  %v3489 = vadd.f32 %v3416, %v3486
  %v3490 = vtanh.pop %v3489
  %v3491 = vxor.u32 %v3489, 2147483648
  %v3492 = vmul.f32 %v3491, 1.442695
  %v3493 = vpow.pop %v3492
  %v3494 = vadd.f32 %v3493, 1.0
  %v3495 = vrcp.pop %v3494
  %v3496 = vmul.f32 1.0, %v3495
  %v3497 = vsel %vm54, %v3490, %v3496
  %v3498 = vmul.f32 %v3497, %v3404
  %3500 = vrot.lane.b32.xlu0 %v3497, 64
  %v3501 = vpop.permute.xlu0 %3500
  %v3503 = vmul.f32 %v3497, %v3501
  %3505 = vrot.lane.b32.xlu0 %v3503, 32
  %v3506 = vpop.permute.xlu0 %3505
  %v3508 = vadd.f32 %v3498, %v3506
  %v3509 = vtanh.pop %v3508
  %3511 = vrot.lane.b32.xlu0 %v3509, 64
  %v3512 = vpop.permute.xlu0 %3511
  %v3514 = vmul.f32 %v3497, %v3512
  %3516 = vrot.lane.b32.xlu0 %v3514, 32
  %v3517 = vpop.permute.xlu0 %3516
  %3519 = vst.msk [vmem:[%s1505] sm:$0xff] %vm74, %v3517
  %v3520 = vld [vmem:[%s1507] sm:$0xff]
  %v3521 = vsel %vm74, %v3517, 0
  %3523 = vmatprep.subr.mxu0 0.0
  %3524 = vmatpush1.msra.mxu0 %v3206
  %3525 = vmatprep.subr.mxu0 0.0
  %3526 = vmatpush1.msra.mxu0 %v3207
  %3527 = vmatprep.subr.mxu0 0.0
  %3528 = vmatpush1.msra.mxu0 %v3208
  %3529 = vmatprep.subr.mxu0 0.0
  %3530 = vmatpush1.msra.mxu0 %v3209
  %3531 = vmatprep.subr.mxu0 0.0
  %3532 = vmatpush1.msra.mxu0 0.0
  %3533 = vmatprep.subr.mxu0 0.0
  %3534 = vmatpush1.msra.mxu0 0.0
  %3535 = vmatprep.subr.mxu0 0.0
  %3536 = vmatpush1.msra.mxu0 0.0
  %3537 = vmatprep.subr.mxu0 0.0
  %3538 = vmatpush1.msra.mxu0 0.0
  %3539 = vmatprep.subr.mxu0 0.0
  %3540 = vmatpush1.msra.mxu0 0.0
  %3541 = vmatprep.subr.mxu0 0.0
  %3542 = vmatpush1.msra.mxu0 0.0
  %3543 = vmatprep.subr.mxu0 0.0
  %3544 = vmatpush1.msra.mxu0 0.0
  %3545 = vmatprep.subr.mxu0 0.0
  %3546 = vmatpush1.msra.mxu0 0.0
  %3547 = vmatprep.subr.mxu0 0.0
  %3548 = vmatpush1.msra.mxu0 0.0
  %3549 = vmatprep.subr.mxu0 0.0
  %3550 = vmatpush1.msra.mxu0 0.0
  %3551 = vmatprep.subr.mxu0 0.0
  %3552 = vmatpush1.msra.mxu0 0.0
  %3553 = vmatprep.subr.mxu0 0.0
  %3554 = vmatpush1.msra.mxu0 0.0
  %3555 = vmatprep.subr.mxu0 0.0
  %3556 = vmatpush1.msra.mxu0 0.0
  %3557 = vmatprep.subr.mxu0 0.0
  %3558 = vmatpush1.msra.mxu0 0.0
  %3559 = vmatprep.subr.mxu0 0.0
  %3560 = vmatpush1.msra.mxu0 0.0
  %3561 = vmatprep.subr.mxu0 0.0
  %3562 = vmatpush1.msra.mxu0 0.0
  %3563 = vmatprep.subr.mxu0 0.0
  %3564 = vmatpush1.msra.mxu0 0.0
  %3565 = vmatprep.subr.mxu0 0.0
  %3566 = vmatpush1.msra.mxu0 0.0
  %3567 = vmatprep.subr.mxu0 0.0
  %3568 = vmatpush1.msra.mxu0 0.0
  %3569 = vmatprep.subr.mxu0 0.0
  %3570 = vmatpush1.msra.mxu0 0.0
  %3571 = vmatprep.subr.mxu0 0.0
  %3572 = vmatpush1.msra.mxu0 0.0
  %3573 = vmatprep.subr.mxu0 0.0
  %3574 = vmatpush1.msra.mxu0 0.0
  %3575 = vmatprep.subr.mxu0 0.0
  %3576 = vmatpush1.msra.mxu0 0.0
  %3577 = vmatprep.subr.mxu0 0.0
  %3578 = vmatpush1.msra.mxu0 0.0
  %3579 = vmatprep.subr.mxu0 0.0
  %3580 = vmatpush1.msra.mxu0 0.0
  %3581 = vmatprep.subr.mxu0 0.0
  %3582 = vmatpush1.msra.mxu0 0.0
  %3583 = vmatprep.subr.mxu0 0.0
  %3584 = vmatpush1.msra.mxu0 0.0
  %3585 = vmatprep.subr.mxu0 0.0
  %3586 = vmatpush1.msra.mxu0 0.0
  %3587 = vmatprep.mubr.f32.mxu0 0.0
  %3588 = vmatmul.mubr.f32.gmra.mrb[0].mxu0 %v3521
  %v3589 = vpop.f32.mrb[0].mxu0
  %v3590 = vadd.f32 0.0, %v3589
  %v3591 = vpop.f32.mrb[0].mxu0
  %3592 = vdwg.mxu0
  %v3593 = vadd.f32 %v3520, %v3590
  %v3594 = vtanh.pop %v3593
  %v3595 = vxor.u32 %v3593, 2147483648
  %v3596 = vmul.f32 %v3595, 1.442695
  %v3597 = vpow.pop %v3596
  %v3598 = vadd.f32 %v3597, 1.0
  %v3599 = vrcp.pop %v3598
  %v3600 = vmul.f32 1.0, %v3599
  %v3601 = vsel %vm54, %v3594, %v3600
  %v3602 = vmul.f32 %v3601, %v3508
  %3604 = vrot.lane.b32.xlu0 %v3601, 64
  %v3605 = vpop.permute.xlu0 %3604
  %v3607 = vmul.f32 %v3601, %v3605
  %3609 = vrot.lane.b32.xlu0 %v3607, 32
  %v3610 = vpop.permute.xlu0 %3609
  %v3612 = vadd.f32 %v3602, %v3610
  %v3613 = vtanh.pop %v3612
  %3615 = vrot.lane.b32.xlu0 %v3613, 64
  %v3616 = vpop.permute.xlu0 %3615
  %v3618 = vmul.f32 %v3601, %v3616
  %3620 = vrot.lane.b32.xlu0 %v3618, 32
  %v3621 = vpop.permute.xlu0 %3620
  %3623 = vst.msk [vmem:[%s1611] sm:$0xff] %vm74, %v3621
  %v3624 = vld [vmem:[%s1613] sm:$0xff]
  %v3625 = vsel %vm74, %v3621, 0
  %3627 = vmatprep.subr.mxu0 0.0
  %3628 = vmatpush1.msra.mxu0 %v3206
  %3629 = vmatprep.subr.mxu0 0.0
  %3630 = vmatpush1.msra.mxu0 %v3207
  %3631 = vmatprep.subr.mxu0 0.0
  %3632 = vmatpush1.msra.mxu0 %v3208
  %3633 = vmatprep.subr.mxu0 0.0
  %3634 = vmatpush1.msra.mxu0 %v3209
  %3635 = vmatprep.subr.mxu0 0.0
  %3636 = vmatpush1.msra.mxu0 0.0
  %3637 = vmatprep.subr.mxu0 0.0
  %3638 = vmatpush1.msra.mxu0 0.0
  %3639 = vmatprep.subr.mxu0 0.0
  %3640 = vmatpush1.msra.mxu0 0.0
  %3641 = vmatprep.subr.mxu0 0.0
  %3642 = vmatpush1.msra.mxu0 0.0
  %3643 = vmatprep.subr.mxu0 0.0
  %3644 = vmatpush1.msra.mxu0 0.0
  %3645 = vmatprep.subr.mxu0 0.0
  %3646 = vmatpush1.msra.mxu0 0.0
  %3647 = vmatprep.subr.mxu0 0.0
  %3648 = vmatpush1.msra.mxu0 0.0
  %3649 = vmatprep.subr.mxu0 0.0
  %3650 = vmatpush1.msra.mxu0 0.0
  %3651 = vmatprep.subr.mxu0 0.0
  %3652 = vmatpush1.msra.mxu0 0.0
  %3653 = vmatprep.subr.mxu0 0.0
  %3654 = vmatpush1.msra.mxu0 0.0
  %3655 = vmatprep.subr.mxu0 0.0
  %3656 = vmatpush1.msra.mxu0 0.0
  %3657 = vmatprep.subr.mxu0 0.0
  %3658 = vmatpush1.msra.mxu0 0.0
  %3659 = vmatprep.subr.mxu0 0.0
  %3660 = vmatpush1.msra.mxu0 0.0
  %3661 = vmatprep.subr.mxu0 0.0
  %3662 = vmatpush1.msra.mxu0 0.0
  %3663 = vmatprep.subr.mxu0 0.0
  %3664 = vmatpush1.msra.mxu0 0.0
  %3665 = vmatprep.subr.mxu0 0.0
  %3666 = vmatpush1.msra.mxu0 0.0
  %3667 = vmatprep.subr.mxu0 0.0
  %3668 = vmatpush1.msra.mxu0 0.0
  %3669 = vmatprep.subr.mxu0 0.0
  %3670 = vmatpush1.msra.mxu0 0.0
  %3671 = vmatprep.subr.mxu0 0.0
  %3672 = vmatpush1.msra.mxu0 0.0
  %3673 = vmatprep.subr.mxu0 0.0
  %3674 = vmatpush1.msra.mxu0 0.0
  %3675 = vmatprep.subr.mxu0 0.0
  %3676 = vmatpush1.msra.mxu0 0.0
  %3677 = vmatprep.subr.mxu0 0.0
  %3678 = vmatpush1.msra.mxu0 0.0
  %3679 = vmatprep.subr.mxu0 0.0
  %3680 = vmatpush1.msra.mxu0 0.0
  %3681 = vmatprep.subr.mxu0 0.0
  %3682 = vmatpush1.msra.mxu0 0.0
  %3683 = vmatprep.subr.mxu0 0.0
  %3684 = vmatpush1.msra.mxu0 0.0
  %3685 = vmatprep.subr.mxu0 0.0
  %3686 = vmatpush1.msra.mxu0 0.0
  %3687 = vmatprep.subr.mxu0 0.0
  %3688 = vmatpush1.msra.mxu0 0.0
  %3689 = vmatprep.subr.mxu0 0.0
  %3690 = vmatpush1.msra.mxu0 0.0
  %3691 = vmatprep.mubr.f32.mxu0 0.0
  %3692 = vmatmul.mubr.f32.gmra.mrb[0].mxu0 %v3625
  %v3693 = vpop.f32.mrb[0].mxu0
  %v3694 = vadd.f32 0.0, %v3693
  %v3695 = vpop.f32.mrb[0].mxu0
  %3696 = vdwg.mxu0
  %v3697 = vadd.f32 %v3624, %v3694
  %v3698 = vtanh.pop %v3697
  %v3699 = vxor.u32 %v3697, 2147483648
  %v3700 = vmul.f32 %v3699, 1.442695
  %v3701 = vpow.pop %v3700
  %v3702 = vadd.f32 %v3701, 1.0
  %v3703 = vrcp.pop %v3702
  %v3704 = vmul.f32 1.0, %v3703
  %v3705 = vsel %vm54, %v3698, %v3704
  %v3706 = vmul.f32 %v3705, %v3612
  %3708 = vrot.lane.b32.xlu0 %v3705, 64
  %v3709 = vpop.permute.xlu0 %3708
  %v3711 = vmul.f32 %v3705, %v3709
  %3713 = vrot.lane.b32.xlu0 %v3711, 32
  %v3714 = vpop.permute.xlu0 %3713
  %v3716 = vadd.f32 %v3706, %v3714
  %v3717 = vtanh.pop %v3716
  %3719 = vrot.lane.b32.xlu0 %v3717, 64
  %v3720 = vpop.permute.xlu0 %3719
  %v3722 = vmul.f32 %v3705, %v3720
  %3724 = vrot.lane.b32.xlu0 %v3722, 32
  %v3725 = vpop.permute.xlu0 %3724
  %3727 = vst.msk [vmem:[%s1717] sm:$0xff] %vm74, %v3725
  %v3728 = vld [vmem:[%s1719] sm:$0xff]
  %v3729 = vsel %vm74, %v3725, 0
  %3731 = vmatprep.subr.mxu0 0.0
  %3732 = vmatpush1.msra.mxu0 %v3206
  %3733 = vmatprep.subr.mxu0 0.0
  %3734 = vmatpush1.msra.mxu0 %v3207
  %3735 = vmatprep.subr.mxu0 0.0
  %3736 = vmatpush1.msra.mxu0 %v3208
  %3737 = vmatprep.subr.mxu0 0.0
  %3738 = vmatpush1.msra.mxu0 %v3209
  %3739 = vmatprep.subr.mxu0 0.0
  %3740 = vmatpush1.msra.mxu0 0.0
  %3741 = vmatprep.subr.mxu0 0.0
  %3742 = vmatpush1.msra.mxu0 0.0
  %3743 = vmatprep.subr.mxu0 0.0
  %3744 = vmatpush1.msra.mxu0 0.0
  %3745 = vmatprep.subr.mxu0 0.0
  %3746 = vmatpush1.msra.mxu0 0.0
  %3747 = vmatprep.subr.mxu0 0.0
  %3748 = vmatpush1.msra.mxu0 0.0
  %3749 = vmatprep.subr.mxu0 0.0
  %3750 = vmatpush1.msra.mxu0 0.0
  %3751 = vmatprep.subr.mxu0 0.0
  %3752 = vmatpush1.msra.mxu0 0.0
  %3753 = vmatprep.subr.mxu0 0.0
  %3754 = vmatpush1.msra.mxu0 0.0
  %3755 = vmatprep.subr.mxu0 0.0
  %3756 = vmatpush1.msra.mxu0 0.0
  %3757 = vmatprep.subr.mxu0 0.0
  %3758 = vmatpush1.msra.mxu0 0.0
  %3759 = vmatprep.subr.mxu0 0.0
  %3760 = vmatpush1.msra.mxu0 0.0
  %3761 = vmatprep.subr.mxu0 0.0
  %3762 = vmatpush1.msra.mxu0 0.0
  %3763 = vmatprep.subr.mxu0 0.0
  %3764 = vmatpush1.msra.mxu0 0.0
  %3765 = vmatprep.subr.mxu0 0.0
  %3766 = vmatpush1.msra.mxu0 0.0
  %3767 = vmatprep.subr.mxu0 0.0
  %3768 = vmatpush1.msra.mxu0 0.0
  %3769 = vmatprep.subr.mxu0 0.0
  %3770 = vmatpush1.msra.mxu0 0.0
  %3771 = vmatprep.subr.mxu0 0.0
  %3772 = vmatpush1.msra.mxu0 0.0
  %3773 = vmatprep.subr.mxu0 0.0
  %3774 = vmatpush1.msra.mxu0 0.0
  %3775 = vmatprep.subr.mxu0 0.0
  %3776 = vmatpush1.msra.mxu0 0.0
  %3777 = vmatprep.subr.mxu0 0.0
  %3778 = vmatpush1.msra.mxu0 0.0
  %3779 = vmatprep.subr.mxu0 0.0
  %3780 = vmatpush1.msra.mxu0 0.0
  %3781 = vmatprep.subr.mxu0 0.0
  %3782 = vmatpush1.msra.mxu0 0.0
  %3783 = vmatprep.subr.mxu0 0.0
  %3784 = vmatpush1.msra.mxu0 0.0
  %3785 = vmatprep.subr.mxu0 0.0
  %3786 = vmatpush1.msra.mxu0 0.0
  %3787 = vmatprep.subr.mxu0 0.0
  %3788 = vmatpush1.msra.mxu0 0.0
  %3789 = vmatprep.subr.mxu0 0.0
  %3790 = vmatpush1.msra.mxu0 0.0
  %3791 = vmatprep.subr.mxu0 0.0
  %3792 = vmatpush1.msra.mxu0 0.0
  %3793 = vmatprep.subr.mxu0 0.0
  %3794 = vmatpush1.msra.mxu0 0.0
  %3795 = vmatprep.mubr.f32.mxu0 0.0
  %3796 = vmatmul.mubr.f32.gmra.mrb[0].mxu0 %v3729
  %v3797 = vpop.f32.mrb[0].mxu0
  %v3798 = vadd.f32 0.0, %v3797
  %v3799 = vpop.f32.mrb[0].mxu0
  %3800 = vdwg.mxu0
  %v3801 = vadd.f32 %v3728, %v3798
  %v3802 = vtanh.pop %v3801
  %v3803 = vxor.u32 %v3801, 2147483648
  %v3804 = vmul.f32 %v3803, 1.442695
  %v3805 = vpow.pop %v3804
  %v3806 = vadd.f32 %v3805, 1.0
  %v3807 = vrcp.pop %v3806
  %v3808 = vmul.f32 1.0, %v3807
  %v3809 = vsel %vm54, %v3802, %v3808
  %v3810 = vmul.f32 %v3809, %v3716
  %3812 = vrot.lane.b32.xlu0 %v3809, 64
  %v3813 = vpop.permute.xlu0 %3812
  %v3815 = vmul.f32 %v3809, %v3813
  %3817 = vrot.lane.b32.xlu0 %v3815, 32
  %v3818 = vpop.permute.xlu0 %3817
  %v3820 = vadd.f32 %v3810, %v3818
  %v3821 = vtanh.pop %v3820
  %3823 = vrot.lane.b32.xlu0 %v3821, 64
  %v3824 = vpop.permute.xlu0 %3823
  %v3826 = vmul.f32 %v3809, %v3824
  %3828 = vrot.lane.b32.xlu0 %v3826, 32
  %v3829 = vpop.permute.xlu0 %3828
  %3831 = vst.msk [vmem:[%s1823] sm:$0xff] %vm74, %v3829
  %v3832 = vld [vmem:[%s1825] sm:$0xff]
  %v3833 = vsel %vm74, %v3829, 0
  %3835 = vmatprep.subr.mxu0 0.0
  %3836 = vmatpush1.msra.mxu0 %v3206
  %3837 = vmatprep.subr.mxu0 0.0
  %3838 = vmatpush1.msra.mxu0 %v3207
  %3839 = vmatprep.subr.mxu0 0.0
  %3840 = vmatpush1.msra.mxu0 %v3208
  %3841 = vmatprep.subr.mxu0 0.0
  %3842 = vmatpush1.msra.mxu0 %v3209
  %3843 = vmatprep.subr.mxu0 0.0
  %3844 = vmatpush1.msra.mxu0 0.0
  %3845 = vmatprep.subr.mxu0 0.0
  %3846 = vmatpush1.msra.mxu0 0.0
  %3847 = vmatprep.subr.mxu0 0.0
  %3848 = vmatpush1.msra.mxu0 0.0
  %3849 = vmatprep.subr.mxu0 0.0
  %3850 = vmatpush1.msra.mxu0 0.0
  %3851 = vmatprep.subr.mxu0 0.0
  %3852 = vmatpush1.msra.mxu0 0.0
  %3853 = vmatprep.subr.mxu0 0.0
  %3854 = vmatpush1.msra.mxu0 0.0
  %3855 = vmatprep.subr.mxu0 0.0
  %3856 = vmatpush1.msra.mxu0 0.0
  %3857 = vmatprep.subr.mxu0 0.0
  %3858 = vmatpush1.msra.mxu0 0.0
  %3859 = vmatprep.subr.mxu0 0.0
  %3860 = vmatpush1.msra.mxu0 0.0
  %3861 = vmatprep.subr.mxu0 0.0
  %3862 = vmatpush1.msra.mxu0 0.0
  %3863 = vmatprep.subr.mxu0 0.0
  %3864 = vmatpush1.msra.mxu0 0.0
  %3865 = vmatprep.subr.mxu0 0.0
  %3866 = vmatpush1.msra.mxu0 0.0
  %3867 = vmatprep.subr.mxu0 0.0
  %3868 = vmatpush1.msra.mxu0 0.0
  %3869 = vmatprep.subr.mxu0 0.0
  %3870 = vmatpush1.msra.mxu0 0.0
  %3871 = vmatprep.subr.mxu0 0.0
  %3872 = vmatpush1.msra.mxu0 0.0
  %3873 = vmatprep.subr.mxu0 0.0
  %3874 = vmatpush1.msra.mxu0 0.0
  %3875 = vmatprep.subr.mxu0 0.0
  %3876 = vmatpush1.msra.mxu0 0.0
  %3877 = vmatprep.subr.mxu0 0.0
  %3878 = vmatpush1.msra.mxu0 0.0
  %3879 = vmatprep.subr.mxu0 0.0
  %3880 = vmatpush1.msra.mxu0 0.0
  %3881 = vmatprep.subr.mxu0 0.0
  %3882 = vmatpush1.msra.mxu0 0.0
  %3883 = vmatprep.subr.mxu0 0.0
  %3884 = vmatpush1.msra.mxu0 0.0
  %3885 = vmatprep.subr.mxu0 0.0
  %3886 = vmatpush1.msra.mxu0 0.0
  %3887 = vmatprep.subr.mxu0 0.0
  %3888 = vmatpush1.msra.mxu0 0.0
  %3889 = vmatprep.subr.mxu0 0.0
  %3890 = vmatpush1.msra.mxu0 0.0
  %3891 = vmatprep.subr.mxu0 0.0
  %3892 = vmatpush1.msra.mxu0 0.0
  %3893 = vmatprep.subr.mxu0 0.0
  %3894 = vmatpush1.msra.mxu0 0.0
  %3895 = vmatprep.subr.mxu0 0.0
  %3896 = vmatpush1.msra.mxu0 0.0
  %3897 = vmatprep.subr.mxu0 0.0
  %3898 = vmatpush1.msra.mxu0 0.0
  %3899 = vmatprep.mubr.f32.mxu0 0.0
  %3900 = vmatmul.mubr.f32.gmra.mrb[0].mxu0 %v3833
  %v3901 = vpop.f32.mrb[0].mxu0
  %v3902 = vadd.f32 0.0, %v3901
  %v3903 = vpop.f32.mrb[0].mxu0
  %3904 = vdwg.mxu0
  %v3905 = vadd.f32 %v3832, %v3902
  %v3906 = vtanh.pop %v3905
  %v3907 = vxor.u32 %v3905, 2147483648
  %v3908 = vmul.f32 %v3907, 1.442695
  %v3909 = vpow.pop %v3908
  %v3910 = vadd.f32 %v3909, 1.0
  %v3911 = vrcp.pop %v3910
  %v3912 = vmul.f32 1.0, %v3911
  %v3913 = vsel %vm54, %v3906, %v3912
  %v3914 = vmul.f32 %v3913, %v3820
  %3916 = vrot.lane.b32.xlu0 %v3913, 64
  %v3917 = vpop.permute.xlu0 %3916
  %v3919 = vmul.f32 %v3913, %v3917
  %3921 = vrot.lane.b32.xlu0 %v3919, 32
  %v3922 = vpop.permute.xlu0 %3921
  %v3924 = vadd.f32 %v3914, %v3922
  %v3925 = vtanh.pop %v3924
  %3927 = vrot.lane.b32.xlu0 %v3925, 64
  %v3928 = vpop.permute.xlu0 %3927
  %v3930 = vmul.f32 %v3913, %v3928
  %3932 = vrot.lane.b32.xlu0 %v3930, 32
  %v3933 = vpop.permute.xlu0 %3932
  %3935 = vst.msk [vmem:[%s1929] sm:$0xff] %vm74, %v3933
  %v3936 = vld [vmem:[#allocation3] sm:$0xff]
  %v3937 = vsel %vm74, %v3933, 0
  %3939 = vmatprep.subr.mxu0 0.0
  %3940 = vmatpush1.msra.mxu0 %v3206
  %3941 = vmatprep.subr.mxu0 0.0
  %3942 = vmatpush1.msra.mxu0 %v3207
  %3943 = vmatprep.subr.mxu0 0.0
  %3944 = vmatpush1.msra.mxu0 %v3208
  %3945 = vmatprep.subr.mxu0 0.0
  %3946 = vmatpush1.msra.mxu0 %v3209
  %3947 = vmatprep.subr.mxu0 0.0
  %3948 = vmatpush1.msra.mxu0 0.0
  %3949 = vmatprep.subr.mxu0 0.0
  %3950 = vmatpush1.msra.mxu0 0.0
  %3951 = vmatprep.subr.mxu0 0.0
  %3952 = vmatpush1.msra.mxu0 0.0
  %3953 = vmatprep.subr.mxu0 0.0
  %3954 = vmatpush1.msra.mxu0 0.0
  %3955 = vmatprep.subr.mxu0 0.0
  %3956 = vmatpush1.msra.mxu0 0.0
  %3957 = vmatprep.subr.mxu0 0.0
  %3958 = vmatpush1.msra.mxu0 0.0
  %3959 = vmatprep.subr.mxu0 0.0
  %3960 = vmatpush1.msra.mxu0 0.0
  %3961 = vmatprep.subr.mxu0 0.0
  %3962 = vmatpush1.msra.mxu0 0.0
  %3963 = vmatprep.subr.mxu0 0.0
  %3964 = vmatpush1.msra.mxu0 0.0
  %3965 = vmatprep.subr.mxu0 0.0
  %3966 = vmatpush1.msra.mxu0 0.0
  %3967 = vmatprep.subr.mxu0 0.0
  %3968 = vmatpush1.msra.mxu0 0.0
  %3969 = vmatprep.subr.mxu0 0.0
  %3970 = vmatpush1.msra.mxu0 0.0
  %3971 = vmatprep.subr.mxu0 0.0
  %3972 = vmatpush1.msra.mxu0 0.0
  %3973 = vmatprep.subr.mxu0 0.0
  %3974 = vmatpush1.msra.mxu0 0.0
  %3975 = vmatprep.subr.mxu0 0.0
  %3976 = vmatpush1.msra.mxu0 0.0
  %3977 = vmatprep.subr.mxu0 0.0
  %3978 = vmatpush1.msra.mxu0 0.0
  %3979 = vmatprep.subr.mxu0 0.0
  %3980 = vmatpush1.msra.mxu0 0.0
  %3981 = vmatprep.subr.mxu0 0.0
  %3982 = vmatpush1.msra.mxu0 0.0
  %3983 = vmatprep.subr.mxu0 0.0
  %3984 = vmatpush1.msra.mxu0 0.0
  %3985 = vmatprep.subr.mxu0 0.0
  %3986 = vmatpush1.msra.mxu0 0.0
  %3987 = vmatprep.subr.mxu0 0.0
  %3988 = vmatpush1.msra.mxu0 0.0
  %3989 = vmatprep.subr.mxu0 0.0
  %3990 = vmatpush1.msra.mxu0 0.0
  %3991 = vmatprep.subr.mxu0 0.0
  %3992 = vmatpush1.msra.mxu0 0.0
  %3993 = vmatprep.subr.mxu0 0.0
  %3994 = vmatpush1.msra.mxu0 0.0
  %3995 = vmatprep.subr.mxu0 0.0
  %3996 = vmatpush1.msra.mxu0 0.0
  %3997 = vmatprep.subr.mxu0 0.0
  %3998 = vmatpush1.msra.mxu0 0.0
  %3999 = vmatprep.subr.mxu0 0.0
  %4000 = vmatpush1.msra.mxu0 0.0
  %4001 = vmatprep.subr.mxu0 0.0
  %4002 = vmatpush1.msra.mxu0 0.0
  %4003 = vmatprep.mubr.f32.mxu0 0.0
  %4004 = vmatmul.mubr.f32.gmra.mrb[0].mxu0 %v3937
  %v4005 = vpop.f32.mrb[0].mxu0
  %v4006 = vadd.f32 0.0, %v4005
  %v4007 = vpop.f32.mrb[0].mxu0
  %4008 = vdwg.mxu0
  %v4009 = vadd.f32 %v3936, %v4006
  %v4010 = vtanh.pop %v4009
  %v4011 = vxor.u32 %v4009, 2147483648
  %v4012 = vmul.f32 %v4011, 1.442695
  %v4013 = vpow.pop %v4012
  %v4014 = vadd.f32 %v4013, 1.0
  %v4015 = vrcp.pop %v4014
  %v4016 = vmul.f32 1.0, %v4015
  %v4017 = vsel %vm54, %v4010, %v4016
  %v4018 = vmul.f32 %v4017, %v3924
  %4020 = vrot.lane.b32.xlu0 %v4017, 64
  %v4021 = vpop.permute.xlu0 %4020
  %v4023 = vmul.f32 %v4017, %v4021
  %4025 = vrot.lane.b32.xlu0 %v4023, 32
  %v4026 = vpop.permute.xlu0 %4025
  %v4028 = vadd.f32 %v4018, %v4026
  %v4029 = vtanh.pop %v4028
  %4031 = vrot.lane.b32.xlu0 %v4029, 64
  %v4032 = vpop.permute.xlu0 %4031
  %v4034 = vmul.f32 %v4017, %v4032
  %4036 = vrot.lane.b32.xlu0 %v4034, 32
  %v4037 = vpop.permute.xlu0 %4036
  %4039 = vst.msk [vmem:[#allocation5] sm:$0xff] %vm74, %v4037
  %4040 = vrot.lane.b32.xlu0 %v4034, 64
  %v4041 = vpop.permute.xlu0 %4040
  %v4043 = vsel %vm74, %v3203, %v4041
  %v4044 = vld [vmem:[%s13] sm:$0xff]
  %v4045 = vld [vmem:[%s13 + $0x8] sm:$0xff]
  %v4046 = vld [vmem:[%s13 + $0x10] sm:$0xff]
  %v4047 = vld [vmem:[%s13 + $0x18] sm:$0xff]
  %v4048 = vld [vmem:[%s13 + $0x20] sm:$0xff]
  %v4049 = vld [vmem:[%s13 + $0x28] sm:$0xff]
  %v4050 = vld [vmem:[%s13 + $0x30] sm:$0xff]
  %v4051 = vld [vmem:[%s13 + $0x38] sm:$0xff]
  %v4052 = vld [vmem:[%s14] sm:$0x1]
  %v4054 = vlaneseq
  %v4055 = vshrl.u32 %v4054, 7
  %v4056 = vsub.s32 0, %v4055
  %v4057 = vrot.slane %v4052, %v4056
  %v4060 = vsel %vm2106, %v4043, 0
  %4062 = vmatprep.subr.mxu0 0.0
  %4063 = vmatpush1.msra.mxu0 %v4044
  %4064 = vmatprep.subr.mxu0 0.0
  %4065 = vmatpush1.msra.mxu0 %v4045
  %4066 = vmatprep.subr.mxu0 0.0
  %4067 = vmatpush1.msra.mxu0 %v4046
  %4068 = vmatprep.subr.mxu0 0.0
  %4069 = vmatpush1.msra.mxu0 %v4047
  %4070 = vmatprep.subr.mxu0 0.0
  %4071 = vmatpush1.msra.mxu0 %v4048
  %4072 = vmatprep.subr.mxu0 0.0
  %4073 = vmatpush1.msra.mxu0 %v4049
  %4074 = vmatprep.subr.mxu0 0.0
  %4075 = vmatpush1.msra.mxu0 %v4050
  %4076 = vmatprep.subr.mxu0 0.0
  %4077 = vmatpush1.msra.mxu0 %v4051
  %4078 = vmatprep.subr.mxu0 0.0
  %4079 = vmatpush1.msra.mxu0 0.0
  %4080 = vmatprep.subr.mxu0 0.0
  %4081 = vmatpush1.msra.mxu0 0.0
  %4082 = vmatprep.subr.mxu0 0.0
  %4083 = vmatpush1.msra.mxu0 0.0
  %4084 = vmatprep.subr.mxu0 0.0
  %4085 = vmatpush1.msra.mxu0 0.0
  %4086 = vmatprep.subr.mxu0 0.0
  %4087 = vmatpush1.msra.mxu0 0.0
  %4088 = vmatprep.subr.mxu0 0.0
  %4089 = vmatpush1.msra.mxu0 0.0
  %4090 = vmatprep.subr.mxu0 0.0
  %4091 = vmatpush1.msra.mxu0 0.0
  %4092 = vmatprep.subr.mxu0 0.0
  %4093 = vmatpush1.msra.mxu0 0.0
  %4094 = vmatprep.subr.mxu0 0.0
  %4095 = vmatpush1.msra.mxu0 0.0
  %4096 = vmatprep.subr.mxu0 0.0
  %4097 = vmatpush1.msra.mxu0 0.0
  %4098 = vmatprep.subr.mxu0 0.0
  %4099 = vmatpush1.msra.mxu0 0.0
  %4100 = vmatprep.subr.mxu0 0.0
  %4101 = vmatpush1.msra.mxu0 0.0
  %4102 = vmatprep.subr.mxu0 0.0
  %4103 = vmatpush1.msra.mxu0 0.0
  %4104 = vmatprep.subr.mxu0 0.0
  %4105 = vmatpush1.msra.mxu0 0.0
  %4106 = vmatprep.subr.mxu0 0.0
  %4107 = vmatpush1.msra.mxu0 0.0
  %4108 = vmatprep.subr.mxu0 0.0
  %4109 = vmatpush1.msra.mxu0 0.0
  %4110 = vmatprep.subr.mxu0 0.0
  %4111 = vmatpush1.msra.mxu0 0.0
  %4112 = vmatprep.subr.mxu0 0.0
  %4113 = vmatpush1.msra.mxu0 0.0
  %4114 = vmatprep.subr.mxu0 0.0
  %4115 = vmatpush1.msra.mxu0 0.0
  %4116 = vmatprep.subr.mxu0 0.0
  %4117 = vmatpush1.msra.mxu0 0.0
  %4118 = vmatprep.subr.mxu0 0.0
  %4119 = vmatpush1.msra.mxu0 0.0
  %4120 = vmatprep.subr.mxu0 0.0
  %4121 = vmatpush1.msra.mxu0 0.0
  %4122 = vmatprep.subr.mxu0 0.0
  %4123 = vmatpush1.msra.mxu0 0.0
  %4124 = vmatprep.subr.mxu0 0.0
  %4125 = vmatpush1.msra.mxu0 0.0
  %4126 = vmatprep.mubr.f32.mxu0 0.0
  %4127 = vmatmul.mubr.f32.gmra.mrb[0].mxu0 %v4060
  %v4128 = vpop.f32.mrb[0].mxu0
  %v4129 = vadd.f32 %v4057, %v4128
  %v4130 = vpop.f32.mrb[0].mxu0
  %4131 = vdwg.mxu0
  %vm4132 = vcmask 15360
  %4133 = vst.msk [vmem:[%s15] sm:$0xff] %vm4132, %v4129
  // Predicated region
  $region62: #{lstm_sentiment_forward.1} parent=0 // pred_check
    _
  $region63: #{lstm_sentiment_forward.1} parent=0 // pred_check_branch
    %4135 = sbr.rel (0) target = $region65
  $region64: #{lstm_sentiment_forward.1} parent=0 // pred_region
    _
  $region65: #{lstm_sentiment_forward.1} parent=0 // pred_fallthru
    _
  // Predicated region
  $region66: #{lstm_sentiment_forward.1} parent=0 // pred_check
    _
  $region67: #{lstm_sentiment_forward.1} parent=0 // pred_check_branch
    %4137 = sbr.rel (0) target = $region69
  $region68: #{lstm_sentiment_forward.1} parent=0 // pred_region
    _
  $region69: #{lstm_sentiment_forward.1} parent=0 // pred_fallthru
    _

</llo_original>
